<compile_context>
chip_gen: v5e
topology: v5e:2x2
jax: 0.10.0
libtpu: 0.0.40
codegen_flags: <defaults>
</compile_context>

<pallas_src>
import functools

import jax
import jax.numpy as jnp
from jax import lax
from jax.experimental import pallas as pl
from jax.experimental.pallas import tpu as pltpu

H, W = 6, 7            # connect-4 board
S = H * W              # 42 spatial positions
C1, C2 = 32, 64        # conv channels
HID = 128              # fc hidden
NACT = 7               # policy head outputs
OUT_LANES = 128        # lane-dense output slab (p: lanes 0..6, v: lane 7)
FLAT = C2 * S          # 2688


# ---------------------------------------------------------------------------
# Fused kernel: conv1 -> ReLU -> conv2 -> ReLU -> fc -> ReLU -> p/v heads
# One grid step processes a block of `bb` boards (bb*42 im2col rows).
# ---------------------------------------------------------------------------
def _fused_kernel(x_ref, m_ref, w1_ref, b1_ref, w2_ref, b2_ref,
                  wfc_ref, bfc_ref, wh_ref, bh_ref, out_ref, *, bb):
    r = S * bb                                            # rows per block

    # ---- conv1 (1->32, k3, p1): single im2col matmul + bias + ReLU --------
    h1 = jnp.dot(x_ref[...], w1_ref[...], preferred_element_type=jnp.float32)
    h1 = jnp.maximum(h1 + b1_ref[...], 0.0)               # (r, 32)

    # ---- conv2 (32->64, k3, p1): 9 per-tap batched matmuls -----------------
    # Rows are spatial-major (row = s*bb + b): a tap offset (di, dj) is a row
    # shift of (di*7 + dj)*bb. Pad 8*bb zero rows on each side and mask the
    # positions whose source falls outside the 6x7 board.
    zpad = jnp.zeros((8 * bb, C1), jnp.float32)
    h1p = jnp.concatenate([zpad, h1, zpad], axis=0)       # ((S+16)*bb, 32)

    acc = jnp.zeros((r, C2), jnp.float32)
    for ki in range(3):
        for kj in range(3):
            t = ki * 3 + kj
            start = (8 + (ki - 1) * 7 + (kj - 1)) * bb    # static, bb-aligned
            src = h1p[start:start + r, :]                 # (r, 32)
            src = src * m_ref[:, t:t + 1]                 # zero invalid taps
            acc = acc + jnp.dot(src, w2_ref[t * C1:(t + 1) * C1, :],
                                preferred_element_type=jnp.float32)
    h2 = jnp.maximum(acc + b2_ref[...], 0.0)              # (r, 64)

    # ---- fc 2688 -> 128 (NCHW flatten folded into wfc row order) -----------
    z = jnp.zeros((bb, HID), jnp.float32)
    for s in range(S):
        z = z + jnp.dot(h2[s * bb:(s + 1) * bb, :],
                        wfc_ref[s * C2:(s + 1) * C2, :],
                        preferred_element_type=jnp.float32)
    z = jnp.maximum(z + bfc_ref[...], 0.0)                # (bb, 128)

    # ---- fused policy/value heads -> lane-dense (bb, 128) slab -------------
    pv = jnp.dot(z, wh_ref[...], preferred_element_type=jnp.float32)
    pv = pv + bh_ref[...]                                 # (bb, 128)
    lane = lax.broadcasted_iota(jnp.int32, (bb, OUT_LANES), 1)
    out_ref[...] = jnp.where(lane == NACT, jnp.tanh(pv), pv)


def _block_rows(n):
    """Samples per grid step: 128 for large batches, small power of two else."""
    if n >= 128:
        return 128
    bb = 8
    while bb < n:
        bb *= 2
    return bb


@jax.jit
def connect4_forward(x, params):
    # x: (N, 1, 6, 7) NCHW, like the PyTorch module (x.float() applied here)
    n = x.shape[0]
    bb = _block_rows(n)
    g = (n + bb - 1) // bb
    n_pad = g * bb

    xf = x.astype(jnp.float32).reshape(n, H, W)
    if n_pad != n:
        xf = jnp.pad(xf, ((0, n_pad - n), (0, 0), (0, 0)))
    xp = jnp.pad(xf, ((0, 0), (1, 1), (1, 1)))            # (n_pad, 8, 9)

    # conv1 im2col: x_col[b, s, t] = xp[b, h+ki, w+kj], s=h*7+w, t=ki*3+kj
    cols = [xp[:, ki:ki + H, kj:kj + W].reshape(n_pad, S)
            for ki in range(3) for kj in range(3)]
    x_col = jnp.stack(cols, axis=-1)                      # (n_pad, 42, 9)
    # spatial-major rows inside each batch block: row = (blk*42 + s)*bb + b
    x_rows = (x_col.reshape(g, bb, S, 9)
                   .transpose(0, 2, 1, 3)
                   .reshape(g * S * bb, 9))

    # per-tap validity masks (depend only on the spatial position s)
    s_idx = jnp.arange(S)
    h_idx, w_idx = s_idx // W, s_idx % W
    masks = [(((h_idx + ki - 1) >= 0) & ((h_idx + ki - 1) < H)
              & ((w_idx + kj - 1) >= 0) & ((w_idx + kj - 1) < W))
             for ki in range(3) for kj in range(3)]
    mask_rows = jnp.repeat(jnp.stack(masks, axis=-1).astype(jnp.float32),
                           bb, axis=0)                    # (42*bb, 9)

    # ---- parameter re-layouts (trace-time glue) ----------------------------
    w1r = params["w1"].reshape(C1, 9).T                           # (9, 32)
    b1r = params["b1"].reshape(1, C1)
    w2r = params["w2"].transpose(2, 3, 1, 0).reshape(9 * C1, C2)  # (288, 64)
    b2r = params["b2"].reshape(1, C2)
    # fold the NCHW flatten (index = c*42 + s) into wfc: rows ordered (s, c)
    wfcr = (params["wfc"].reshape(HID, C2, S)
                         .transpose(2, 1, 0)
                         .reshape(S * C2, HID))                   # (2688, 128)
    bfcr = params["bfc"].reshape(1, HID)
    whead = jnp.zeros((HID, OUT_LANES), jnp.float32)
    whead = whead.at[:, :NACT].set(params["wp"].T)                # (128, 128)
    whead = whead.at[:, NACT].set(params["wv"][0])
    bhead = jnp.zeros((1, OUT_LANES), jnp.float32)
    bhead = bhead.at[0, :NACT].set(params["bp"])
    bhead = bhead.at[0, NACT].set(params["bv"][0])

    const = lambda gi: (0, 0)                 # weights stay resident in VMEM
    out = pl.pallas_call(
        functools.partial(_fused_kernel, bb=bb),
        out_shape=jax.ShapeDtypeStruct((n_pad, OUT_LANES), jnp.float32),
        grid=(g,),
        in_specs=[
            pl.BlockSpec((S * bb, 9), lambda gi: (gi, 0)),        # x_rows
            pl.BlockSpec((S * bb, 9), const),                     # masks
            pl.BlockSpec((9, C1), const),                         # w1
            pl.BlockSpec((1, C1), const),                         # b1
            pl.BlockSpec((9 * C1, C2), const),                    # w2
            pl.BlockSpec((1, C2), const),                         # b2
            pl.BlockSpec((S * C2, HID), const),                   # wfc
            pl.BlockSpec((1, HID), const),                        # bfc
            pl.BlockSpec((HID, OUT_LANES), const),                # whead
            pl.BlockSpec((1, OUT_LANES), const),                  # bhead
        ],
        out_specs=pl.BlockSpec((bb, OUT_LANES), lambda gi: (gi, 0)),
        compiler_params=pltpu.CompilerParams(
            dimension_semantics=("parallel",)),
    )(x_rows, mask_rows, w1r, b1r, w2r, b2r, wfcr, bfcr, whead, bhead)

    # p in lanes 0..6, tanh(v) in lane 7 (matches torch .squeeze(-1))
    return out[:n, :NACT], out[:n, NACT]


# ---------------------------------------------------------------------------
# Parameters (deterministic synthetic init, PyTorch-convention shapes)
# ---------------------------------------------------------------------------
def init_params(key):
    ks = jax.random.split(key, 10)
    s = 0.05
    return dict(
        w1=jax.random.normal(ks[0], (C1, 1, 3, 3), jnp.float32) * s,
        b1=jax.random.normal(ks[1], (C1,), jnp.float32) * s,
        w2=jax.random.normal(ks[2], (C2, C1, 3, 3), jnp.float32) * s,
        b2=jax.random.normal(ks[3], (C2,), jnp.float32) * s,
        wfc=jax.random.normal(ks[4], (HID, FLAT), jnp.float32) * s,
        bfc=jax.random.normal(ks[5], (HID,), jnp.float32) * s,
        wp=jax.random.normal(ks[6], (NACT, HID), jnp.float32) * s,
        bp=jax.random.normal(ks[7], (NACT,), jnp.float32) * s,
        wv=jax.random.normal(ks[8], (1, HID), jnp.float32) * s,
        bv=jax.random.normal(ks[9], (1,), jnp.float32) * s,
    )


# ---------------------------------------------------------------------------
# Pure-JAX reference (for correctness check only)
# ---------------------------------------------------------------------------
def reference_forward(x, params):
    xf = x.astype(jnp.float32)
    h = lax.conv_general_dilated(xf, params["w1"], (1, 1), "SAME",
                                 dimension_numbers=("NCHW", "OIHW", "NCHW"))
    h = jax.nn.relu(h + params["b1"][None, :, None, None])
    h = lax.conv_general_dilated(h, params["w2"], (1, 1), "SAME",
                                 dimension_numbers=("NCHW", "OIHW", "NCHW"))
    h = jax.nn.relu(h + params["b2"][None, :, None, None])
    h = h.reshape(x.shape[0], -1)
    h = jax.nn.relu(h @ params["wfc"].T + params["bfc"])
    p = h @ params["wp"].T + params["bp"]
    v = jnp.tanh(h @ params["wv"].T + params["bv"])[:, 0]
    return p, v


if __name__ == "__main__":
    key = jax.random.PRNGKey(0)
    pkey, xkey, xkey2 = jax.random.split(key, 3)
    params = init_params(pkey)

    # board-like inputs in {-1, 0, 1}; also exercise a non-power-of-two batch
    for batch, k in ((2, xkey), (5, xkey2)):
        x = jax.random.randint(k, (batch, 1, H, W), -1, 2).astype(jnp.float32)
        p, v = connect4_forward(x, params)
        jax.block_until_ready((p, v))

        p_ref, v_ref = reference_forward(x, params)
        assert p.shape == (batch, NACT) and v.shape == (batch,)
        assert jnp.allclose(p, p_ref, atol=1e-3, rtol=1e-3), "policy mismatch"
        assert jnp.allclose(v, v_ref, atol=1e-3, rtol=1e-3), "value mismatch"

    # TODO(synk): act_prob (legal-move masking + softmax) is a host-side MCTS
    # helper, not part of the module forward pass; not implemented as a kernel.
    print("KERNEL_OK")
</pallas_src>

<mosaic_0001>
module attributes {stable_mosaic.version = 11 : i64} {
  func.func @_fused_kernel(%arg0: i32, %arg1: memref<336x9xf32, #tpu.memory_space<vmem>>, %arg2: memref<336x9xf32, #tpu.memory_space<vmem>>, %arg3: memref<9x32xf32, #tpu.memory_space<vmem>>, %arg4: memref<1x32xf32, #tpu.memory_space<vmem>>, %arg5: memref<288x64xf32, #tpu.memory_space<vmem>>, %arg6: memref<1x64xf32, #tpu.memory_space<vmem>>, %arg7: memref<2688x128xf32, #tpu.memory_space<vmem>>, %arg8: memref<1x128xf32, #tpu.memory_space<vmem>>, %arg9: memref<128x128xf32, #tpu.memory_space<vmem>>, %arg10: memref<1x128xf32, #tpu.memory_space<vmem>>, %arg11: memref<8x128xf32, #tpu.memory_space<vmem>>) attributes {dimension_semantics = [#tpu.dimension_semantics<parallel>], iteration_bounds = array<i64: 1>, scalar_prefetch = 0 : i64, scratch_operands = 0 : i64, tpu.core_type = #tpu.core_type<tc>, window_params = [{transform_indices = @transform_0, window_bounds = array<i64: 336, 9>}, {pipeline_mode = #tpu.pipeline_mode<synchronous>, transform_indices = @transform_1, window_bounds = array<i64: 336, 9>}, {pipeline_mode = #tpu.pipeline_mode<synchronous>, transform_indices = @transform_2, window_bounds = array<i64: 9, 32>}, {pipeline_mode = #tpu.pipeline_mode<synchronous>, transform_indices = @transform_3, window_bounds = array<i64: 1, 32>}, {pipeline_mode = #tpu.pipeline_mode<synchronous>, transform_indices = @transform_4, window_bounds = array<i64: 288, 64>}, {pipeline_mode = #tpu.pipeline_mode<synchronous>, transform_indices = @transform_5, window_bounds = array<i64: 1, 64>}, {pipeline_mode = #tpu.pipeline_mode<synchronous>, transform_indices = @transform_6, window_bounds = array<i64: 2688, 128>}, {pipeline_mode = #tpu.pipeline_mode<synchronous>, transform_indices = @transform_7, window_bounds = array<i64: 1, 128>}, {pipeline_mode = #tpu.pipeline_mode<synchronous>, transform_indices = @transform_8, window_bounds = array<i64: 128, 128>}, {pipeline_mode = #tpu.pipeline_mode<synchronous>, transform_indices = @transform_9, window_bounds = array<i64: 1, 128>}, {transform_indices = @transform_10, window_bounds = array<i64: 8, 128>}]} {
    %c0 = arith.constant 0 : index
    %c0_0 = arith.constant 0 : index
    %0 = vector.load %arg1[%c0, %c0_0] : memref<336x9xf32, #tpu.memory_space<vmem>>, vector<336x9xf32>
    %c0_1 = arith.constant 0 : index
    %c0_2 = arith.constant 0 : index
    %1 = vector.load %arg3[%c0_1, %c0_2] : memref<9x32xf32, #tpu.memory_space<vmem>>, vector<9x32xf32>
    %cst = arith.constant dense<0.000000e+00> : vector<336x32xf32>
    %2 = tpu.matmul %0, %1, %cst {dimension_numbers = #tpu.dot_dimension_numbers<[1], [0], [0], [1], [0, 0, 1, 1], [], []>} : vector<336x9xf32>, vector<9x32xf32>, vector<336x32xf32> -> vector<336x32xf32>
    %c0_3 = arith.constant 0 : index
    %c0_4 = arith.constant 0 : index
    %3 = vector.load %arg4[%c0_3, %c0_4] : memref<1x32xf32, #tpu.memory_space<vmem>>, vector<1x32xf32>
    %4 = vector.broadcast %3 : vector<1x32xf32> to vector<336x32xf32>
    %5 = arith.addf %2, %4 : vector<336x32xf32>
    %cst_5 = arith.constant 0.000000e+00 : f32
    %6 = vector.broadcast %cst_5 : f32 to vector<336x32xf32>
    %7 = arith.maximumf %5, %6 : vector<336x32xf32>
    %cst_6 = arith.constant 0.000000e+00 : f32
    %8 = vector.broadcast %cst_6 : f32 to vector<64x32xf32>
    %9 = tpu.concatenate %8, %7, %8 in 0 : vector<64x32xf32>, vector<336x32xf32>, vector<64x32xf32> -> vector<464x32xf32>
    %cst_7 = arith.constant 0.000000e+00 : f32
    %10 = vector.broadcast %cst_7 : f32 to vector<336x64xf32>
    %11 = vector.extract_strided_slice %9 {offsets = [0, 0], sizes = [336, 32], strides = [1, 1]} : vector<464x32xf32> to vector<336x32xf32>
    %c0_8 = arith.constant 0 : index
    %c0_9 = arith.constant 0 : index
    %12 = vector.load %arg2[%c0_8, %c0_9] : memref<336x9xf32, #tpu.memory_space<vmem>>, vector<336x1xf32>
    %13 = vector.broadcast %12 : vector<336x1xf32> to vector<336x32xf32>
    %14 = arith.mulf %11, %13 : vector<336x32xf32>
    %c0_10 = arith.constant 0 : index
    %c0_11 = arith.constant 0 : index
    %15 = vector.load %arg5[%c0_10, %c0_11] : memref<288x64xf32, #tpu.memory_space<vmem>>, vector<32x64xf32>
    %cst_12 = arith.constant dense<0.000000e+00> : vector<336x64xf32>
    %16 = tpu.matmul %14, %15, %cst_12 {dimension_numbers = #tpu.dot_dimension_numbers<[1], [0], [0], [1], [0, 0, 1, 1], [], []>} : vector<336x32xf32>, vector<32x64xf32>, vector<336x64xf32> -> vector<336x64xf32>
    %17 = arith.addf %10, %16 : vector<336x64xf32>
    %18 = vector.extract_strided_slice %9 {offsets = [8, 0], sizes = [336, 32], strides = [1, 1]} : vector<464x32xf32> to vector<336x32xf32>
    %c0_13 = arith.constant 0 : index
    %c1 = arith.constant 1 : index
    %19 = vector.load %arg2[%c0_13, %c1] : memref<336x9xf32, #tpu.memory_space<vmem>>, vector<336x1xf32>
    %20 = vector.broadcast %19 : vector<336x1xf32> to vector<336x32xf32>
    %21 = arith.mulf %18, %20 : vector<336x32xf32>
    %c32 = arith.constant 32 : index
    %c0_14 = arith.constant 0 : index
    %22 = vector.load %arg5[%c32, %c0_14] : memref<288x64xf32, #tpu.memory_space<vmem>>, vector<32x64xf32>
    %cst_15 = arith.constant dense<0.000000e+00> : vector<336x64xf32>
    %23 = tpu.matmul %21, %22, %cst_15 {dimension_numbers = #tpu.dot_dimension_numbers<[1], [0], [0], [1], [0, 0, 1, 1], [], []>} : vector<336x32xf32>, vector<32x64xf32>, vector<336x64xf32> -> vector<336x64xf32>
    %24 = arith.addf %17, %23 : vector<336x64xf32>
    %25 = vector.extract_strided_slice %9 {offsets = [16, 0], sizes = [336, 32], strides = [1, 1]} : vector<464x32xf32> to vector<336x32xf32>
    %c0_16 = arith.constant 0 : index
    %c2 = arith.constant 2 : index
    %26 = vector.load %arg2[%c0_16, %c2] : memref<336x9xf32, #tpu.memory_space<vmem>>, vector<336x1xf32>
    %27 = vector.broadcast %26 : vector<336x1xf32> to vector<336x32xf32>
    %28 = arith.mulf %25, %27 : vector<336x32xf32>
    %c64 = arith.constant 64 : index
    %c0_17 = arith.constant 0 : index
    %29 = vector.load %arg5[%c64, %c0_17] : memref<288x64xf32, #tpu.memory_space<vmem>>, vector<32x64xf32>
    %cst_18 = arith.constant dense<0.000000e+00> : vector<336x64xf32>
    %30 = tpu.matmul %28, %29, %cst_18 {dimension_numbers = #tpu.dot_dimension_numbers<[1], [0], [0], [1], [0, 0, 1, 1], [], []>} : vector<336x32xf32>, vector<32x64xf32>, vector<336x64xf32> -> vector<336x64xf32>
    %31 = arith.addf %24, %30 : vector<336x64xf32>
    %32 = vector.extract_strided_slice %9 {offsets = [56, 0], sizes = [336, 32], strides = [1, 1]} : vector<464x32xf32> to vector<336x32xf32>
    %c0_19 = arith.constant 0 : index
    %c3 = arith.constant 3 : index
    %33 = vector.load %arg2[%c0_19, %c3] : memref<336x9xf32, #tpu.memory_space<vmem>>, vector<336x1xf32>
    %34 = vector.broadcast %33 : vector<336x1xf32> to vector<336x32xf32>
    %35 = arith.mulf %32, %34 : vector<336x32xf32>
    %c96 = arith.constant 96 : index
    %c0_20 = arith.constant 0 : index
    %36 = vector.load %arg5[%c96, %c0_20] : memref<288x64xf32, #tpu.memory_space<vmem>>, vector<32x64xf32>
    %cst_21 = arith.constant dense<0.000000e+00> : vector<336x64xf32>
    %37 = tpu.matmul %35, %36, %cst_21 {dimension_numbers = #tpu.dot_dimension_numbers<[1], [0], [0], [1], [0, 0, 1, 1], [], []>} : vector<336x32xf32>, vector<32x64xf32>, vector<336x64xf32> -> vector<336x64xf32>
    %38 = arith.addf %31, %37 : vector<336x64xf32>
    %39 = vector.extract_strided_slice %9 {offsets = [64, 0], sizes = [336, 32], strides = [1, 1]} : vector<464x32xf32> to vector<336x32xf32>
    %c0_22 = arith.constant 0 : index
    %c4 = arith.constant 4 : index
    %40 = vector.load %arg2[%c0_22, %c4] : memref<336x9xf32, #tpu.memory_space<vmem>>, vector<336x1xf32>
    %41 = vector.broadcast %40 : vector<336x1xf32> to vector<336x32xf32>
    %42 = arith.mulf %39, %41 : vector<336x32xf32>
    %c128 = arith.constant 128 : index
    %c0_23 = arith.constant 0 : index
    %43 = vector.load %arg5[%c128, %c0_23] : memref<288x64xf32, #tpu.memory_space<vmem>>, vector<32x64xf32>
    %cst_24 = arith.constant dense<0.000000e+00> : vector<336x64xf32>
    %44 = tpu.matmul %42, %43, %cst_24 {dimension_numbers = #tpu.dot_dimension_numbers<[1], [0], [0], [1], [0, 0, 1, 1], [], []>} : vector<336x32xf32>, vector<32x64xf32>, vector<336x64xf32> -> vector<336x64xf32>
    %45 = arith.addf %38, %44 : vector<336x64xf32>
    %46 = vector.extract_strided_slice %9 {offsets = [72, 0], sizes = [336, 32], strides = [1, 1]} : vector<464x32xf32> to vector<336x32xf32>
    %c0_25 = arith.constant 0 : index
    %c5 = arith.constant 5 : index
    %47 = vector.load %arg2[%c0_25, %c5] : memref<336x9xf32, #tpu.memory_space<vmem>>, vector<336x1xf32>
    %48 = vector.broadcast %47 : vector<336x1xf32> to vector<336x32xf32>
    %49 = arith.mulf %46, %48 : vector<336x32xf32>
    %c160 = arith.constant 160 : index
    %c0_26 = arith.constant 0 : index
    %50 = vector.load %arg5[%c160, %c0_26] : memref<288x64xf32, #tpu.memory_space<vmem>>, vector<32x64xf32>
    %cst_27 = arith.constant dense<0.000000e+00> : vector<336x64xf32>
    %51 = tpu.matmul %49, %50, %cst_27 {dimension_numbers = #tpu.dot_dimension_numbers<[1], [0], [0], [1], [0, 0, 1, 1], [], []>} : vector<336x32xf32>, vector<32x64xf32>, vector<336x64xf32> -> vector<336x64xf32>
    %52 = arith.addf %45, %51 : vector<336x64xf32>
    %53 = vector.extract_strided_slice %9 {offsets = [112, 0], sizes = [336, 32], strides = [1, 1]} : vector<464x32xf32> to vector<336x32xf32>
    %c0_28 = arith.constant 0 : index
    %c6 = arith.constant 6 : index
    %54 = vector.load %arg2[%c0_28, %c6] : memref<336x9xf32, #tpu.memory_space<vmem>>, vector<336x1xf32>
    %55 = vector.broadcast %54 : vector<336x1xf32> to vector<336x32xf32>
    %56 = arith.mulf %53, %55 : vector<336x32xf32>
    %c192 = arith.constant 192 : index
    %c0_29 = arith.constant 0 : index
    %57 = vector.load %arg5[%c192, %c0_29] : memref<288x64xf32, #tpu.memory_space<vmem>>, vector<32x64xf32>
    %cst_30 = arith.constant dense<0.000000e+00> : vector<336x64xf32>
    %58 = tpu.matmul %56, %57, %cst_30 {dimension_numbers = #tpu.dot_dimension_numbers<[1], [0], [0], [1], [0, 0, 1, 1], [], []>} : vector<336x32xf32>, vector<32x64xf32>, vector<336x64xf32> -> vector<336x64xf32>
    %59 = arith.addf %52, %58 : vector<336x64xf32>
    %60 = vector.extract_strided_slice %9 {offsets = [120, 0], sizes = [336, 32], strides = [1, 1]} : vector<464x32xf32> to vector<336x32xf32>
    %c0_31 = arith.constant 0 : index
    %c7 = arith.constant 7 : index
    %61 = vector.load %arg2[%c0_31, %c7] : memref<336x9xf32, #tpu.memory_space<vmem>>, vector<336x1xf32>
    %62 = vector.broadcast %61 : vector<336x1xf32> to vector<336x32xf32>
    %63 = arith.mulf %60, %62 : vector<336x32xf32>
    %c224 = arith.constant 224 : index
    %c0_32 = arith.constant 0 : index
    %64 = vector.load %arg5[%c224, %c0_32] : memref<288x64xf32, #tpu.memory_space<vmem>>, vector<32x64xf32>
    %cst_33 = arith.constant dense<0.000000e+00> : vector<336x64xf32>
    %65 = tpu.matmul %63, %64, %cst_33 {dimension_numbers = #tpu.dot_dimension_numbers<[1], [0], [0], [1], [0, 0, 1, 1], [], []>} : vector<336x32xf32>, vector<32x64xf32>, vector<336x64xf32> -> vector<336x64xf32>
    %66 = arith.addf %59, %65 : vector<336x64xf32>
    %67 = vector.extract_strided_slice %9 {offsets = [128, 0], sizes = [336, 32], strides = [1, 1]} : vector<464x32xf32> to vector<336x32xf32>
    %c0_34 = arith.constant 0 : index
    %c8 = arith.constant 8 : index
    %68 = vector.load %arg2[%c0_34, %c8] : memref<336x9xf32, #tpu.memory_space<vmem>>, vector<336x1xf32>
    %69 = vector.broadcast %68 : vector<336x1xf32> to vector<336x32xf32>
    %70 = arith.mulf %67, %69 : vector<336x32xf32>
    %c256 = arith.constant 256 : index
    %c0_35 = arith.constant 0 : index
    %71 = vector.load %arg5[%c256, %c0_35] : memref<288x64xf32, #tpu.memory_space<vmem>>, vector<32x64xf32>
    %cst_36 = arith.constant dense<0.000000e+00> : vector<336x64xf32>
    %72 = tpu.matmul %70, %71, %cst_36 {dimension_numbers = #tpu.dot_dimension_numbers<[1], [0], [0], [1], [0, 0, 1, 1], [], []>} : vector<336x32xf32>, vector<32x64xf32>, vector<336x64xf32> -> vector<336x64xf32>
    %73 = arith.addf %66, %72 : vector<336x64xf32>
    %c0_37 = arith.constant 0 : index
    %c0_38 = arith.constant 0 : index
    %74 = vector.load %arg6[%c0_37, %c0_38] : memref<1x64xf32, #tpu.memory_space<vmem>>, vector<1x64xf32>
    %75 = vector.broadcast %74 : vector<1x64xf32> to vector<336x64xf32>
    %76 = arith.addf %73, %75 : vector<336x64xf32>
    %cst_39 = arith.constant 0.000000e+00 : f32
    %77 = vector.broadcast %cst_39 : f32 to vector<336x64xf32>
    %78 = arith.maximumf %76, %77 : vector<336x64xf32>
    %cst_40 = arith.constant 0.000000e+00 : f32
    %79 = vector.broadcast %cst_40 : f32 to vector<8x128xf32>
    %80 = vector.extract_strided_slice %78 {offsets = [0, 0], sizes = [8, 64], strides = [1, 1]} : vector<336x64xf32> to vector<8x64xf32>
    %c0_41 = arith.constant 0 : index
    %c0_42 = arith.constant 0 : index
    %81 = vector.load %arg7[%c0_41, %c0_42] : memref<2688x128xf32, #tpu.memory_space<vmem>>, vector<64x128xf32>
    %cst_43 = arith.constant dense<0.000000e+00> : vector<8x128xf32>
    %82 = tpu.matmul %80, %81, %cst_43 {dimension_numbers = #tpu.dot_dimension_numbers<[1], [0], [0], [1], [0, 0, 1, 1], [], []>} : vector<8x64xf32>, vector<64x128xf32>, vector<8x128xf32> -> vector<8x128xf32>
    %83 = arith.addf %79, %82 : vector<8x128xf32>
    %84 = vector.extract_strided_slice %78 {offsets = [8, 0], sizes = [8, 64], strides = [1, 1]} : vector<336x64xf32> to vector<8x64xf32>
    %c64_44 = arith.constant 64 : index
    %c0_45 = arith.constant 0 : index
    %85 = vector.load %arg7[%c64_44, %c0_45] : memref<2688x128xf32, #tpu.memory_space<vmem>>, vector<64x128xf32>
    %cst_46 = arith.constant dense<0.000000e+00> : vector<8x128xf32>
    %86 = tpu.matmul %84, %85, %cst_46 {dimension_numbers = #tpu.dot_dimension_numbers<[1], [0], [0], [1], [0, 0, 1, 1], [], []>} : vector<8x64xf32>, vector<64x128xf32>, vector<8x128xf32> -> vector<8x128xf32>
    %87 = arith.addf %83, %86 : vector<8x128xf32>
    %88 = vector.extract_strided_slice %78 {offsets = [16, 0], sizes = [8, 64], strides = [1, 1]} : vector<336x64xf32> to vector<8x64xf32>
    %c128_47 = arith.constant 128 : index
    %c0_48 = arith.constant 0 : index
    %89 = vector.load %arg7[%c128_47, %c0_48] : memref<2688x128xf32, #tpu.memory_space<vmem>>, vector<64x128xf32>
    %cst_49 = arith.constant dense<0.000000e+00> : vector<8x128xf32>
    %90 = tpu.matmul %88, %89, %cst_49 {dimension_numbers = #tpu.dot_dimension_numbers<[1], [0], [0], [1], [0, 0, 1, 1], [], []>} : vector<8x64xf32>, vector<64x128xf32>, vector<8x128xf32> -> vector<8x128xf32>
    %91 = arith.addf %87, %90 : vector<8x128xf32>
    %92 = vector.extract_strided_slice %78 {offsets = [24, 0], sizes = [8, 64], strides = [1, 1]} : vector<336x64xf32> to vector<8x64xf32>
    %c192_50 = arith.constant 192 : index
    %c0_51 = arith.constant 0 : index
    %93 = vector.load %arg7[%c192_50, %c0_51] : memref<2688x128xf32, #tpu.memory_space<vmem>>, vector<64x128xf32>
    %cst_52 = arith.constant dense<0.000000e+00> : vector<8x128xf32>
    %94 = tpu.matmul %92, %93, %cst_52 {dimension_numbers = #tpu.dot_dimension_numbers<[1], [0], [0], [1], [0, 0, 1, 1], [], []>} : vector<8x64xf32>, vector<64x128xf32>, vector<8x128xf32> -> vector<8x128xf32>
    %95 = arith.addf %91, %94 : vector<8x128xf32>
    %96 = vector.extract_strided_slice %78 {offsets = [32, 0], sizes = [8, 64], strides = [1, 1]} : vector<336x64xf32> to vector<8x64xf32>
    %c256_53 = arith.constant 256 : index
    %c0_54 = arith.constant 0 : index
    %97 = vector.load %arg7[%c256_53, %c0_54] : memref<2688x128xf32, #tpu.memory_space<vmem>>, vector<64x128xf32>
    %cst_55 = arith.constant dense<0.000000e+00> : vector<8x128xf32>
    %98 = tpu.matmul %96, %97, %cst_55 {dimension_numbers = #tpu.dot_dimension_numbers<[1], [0], [0], [1], [0, 0, 1, 1], [], []>} : vector<8x64xf32>, vector<64x128xf32>, vector<8x128xf32> -> vector<8x128xf32>
    %99 = arith.addf %95, %98 : vector<8x128xf32>
    %100 = vector.extract_strided_slice %78 {offsets = [40, 0], sizes = [8, 64], strides = [1, 1]} : vector<336x64xf32> to vector<8x64xf32>
    %c320 = arith.constant 320 : index
    %c0_56 = arith.constant 0 : index
    %101 = vector.load %arg7[%c320, %c0_56] : memref<2688x128xf32, #tpu.memory_space<vmem>>, vector<64x128xf32>
    %cst_57 = arith.constant dense<0.000000e+00> : vector<8x128xf32>
    %102 = tpu.matmul %100, %101, %cst_57 {dimension_numbers = #tpu.dot_dimension_numbers<[1], [0], [0], [1], [0, 0, 1, 1], [], []>} : vector<8x64xf32>, vector<64x128xf32>, vector<8x128xf32> -> vector<8x128xf32>
    %103 = arith.addf %99, %102 : vector<8x128xf32>
    %104 = vector.extract_strided_slice %78 {offsets = [48, 0], sizes = [8, 64], strides = [1, 1]} : vector<336x64xf32> to vector<8x64xf32>
    %c384 = arith.constant 384 : index
    %c0_58 = arith.constant 0 : index
    %105 = vector.load %arg7[%c384, %c0_58] : memref<2688x128xf32, #tpu.memory_space<vmem>>, vector<64x128xf32>
    %cst_59 = arith.constant dense<0.000000e+00> : vector<8x128xf32>
    %106 = tpu.matmul %104, %105, %cst_59 {dimension_numbers = #tpu.dot_dimension_numbers<[1], [0], [0], [1], [0, 0, 1, 1], [], []>} : vector<8x64xf32>, vector<64x128xf32>, vector<8x128xf32> -> vector<8x128xf32>
    %107 = arith.addf %103, %106 : vector<8x128xf32>
    %108 = vector.extract_strided_slice %78 {offsets = [56, 0], sizes = [8, 64], strides = [1, 1]} : vector<336x64xf32> to vector<8x64xf32>
    %c448 = arith.constant 448 : index
    %c0_60 = arith.constant 0 : index
    %109 = vector.load %arg7[%c448, %c0_60] : memref<2688x128xf32, #tpu.memory_space<vmem>>, vector<64x128xf32>
    %cst_61 = arith.constant dense<0.000000e+00> : vector<8x128xf32>
    %110 = tpu.matmul %108, %109, %cst_61 {dimension_numbers = #tpu.dot_dimension_numbers<[1], [0], [0], [1], [0, 0, 1, 1], [], []>} : vector<8x64xf32>, vector<64x128xf32>, vector<8x128xf32> -> vector<8x128xf32>
    %111 = arith.addf %107, %110 : vector<8x128xf32>
    %112 = vector.extract_strided_slice %78 {offsets = [64, 0], sizes = [8, 64], strides = [1, 1]} : vector<336x64xf32> to vector<8x64xf32>
    %c512 = arith.constant 512 : index
    %c0_62 = arith.constant 0 : index
    %113 = vector.load %arg7[%c512, %c0_62] : memref<2688x128xf32, #tpu.memory_space<vmem>>, vector<64x128xf32>
    %cst_63 = arith.constant dense<0.000000e+00> : vector<8x128xf32>
    %114 = tpu.matmul %112, %113, %cst_63 {dimension_numbers = #tpu.dot_dimension_numbers<[1], [0], [0], [1], [0, 0, 1, 1], [], []>} : vector<8x64xf32>, vector<64x128xf32>, vector<8x128xf32> -> vector<8x128xf32>
    %115 = arith.addf %111, %114 : vector<8x128xf32>
    %116 = vector.extract_strided_slice %78 {offsets = [72, 0], sizes = [8, 64], strides = [1, 1]} : vector<336x64xf32> to vector<8x64xf32>
    %c576 = arith.constant 576 : index
    %c0_64 = arith.constant 0 : index
    %117 = vector.load %arg7[%c576, %c0_64] : memref<2688x128xf32, #tpu.memory_space<vmem>>, vector<64x128xf32>
    %cst_65 = arith.constant dense<0.000000e+00> : vector<8x128xf32>
    %118 = tpu.matmul %116, %117, %cst_65 {dimension_numbers = #tpu.dot_dimension_numbers<[1], [0], [0], [1], [0, 0, 1, 1], [], []>} : vector<8x64xf32>, vector<64x128xf32>, vector<8x128xf32> -> vector<8x128xf32>
    %119 = arith.addf %115, %118 : vector<8x128xf32>
    %120 = vector.extract_strided_slice %78 {offsets = [80, 0], sizes = [8, 64], strides = [1, 1]} : vector<336x64xf32> to vector<8x64xf32>
    %c640 = arith.constant 640 : index
    %c0_66 = arith.constant 0 : index
    %121 = vector.load %arg7[%c640, %c0_66] : memref<2688x128xf32, #tpu.memory_space<vmem>>, vector<64x128xf32>
    %cst_67 = arith.constant dense<0.000000e+00> : vector<8x128xf32>
    %122 = tpu.matmul %120, %121, %cst_67 {dimension_numbers = #tpu.dot_dimension_numbers<[1], [0], [0], [1], [0, 0, 1, 1], [], []>} : vector<8x64xf32>, vector<64x128xf32>, vector<8x128xf32> -> vector<8x128xf32>
    %123 = arith.addf %119, %122 : vector<8x128xf32>
    %124 = vector.extract_strided_slice %78 {offsets = [88, 0], sizes = [8, 64], strides = [1, 1]} : vector<336x64xf32> to vector<8x64xf32>
    %c704 = arith.constant 704 : index
    %c0_68 = arith.constant 0 : index
    %125 = vector.load %arg7[%c704, %c0_68] : memref<2688x128xf32, #tpu.memory_space<vmem>>, vector<64x128xf32>
    %cst_69 = arith.constant dense<0.000000e+00> : vector<8x128xf32>
    %126 = tpu.matmul %124, %125, %cst_69 {dimension_numbers = #tpu.dot_dimension_numbers<[1], [0], [0], [1], [0, 0, 1, 1], [], []>} : vector<8x64xf32>, vector<64x128xf32>, vector<8x128xf32> -> vector<8x128xf32>
    %127 = arith.addf %123, %126 : vector<8x128xf32>
    %128 = vector.extract_strided_slice %78 {offsets = [96, 0], sizes = [8, 64], strides = [1, 1]} : vector<336x64xf32> to vector<8x64xf32>
    %c768 = arith.constant 768 : index
    %c0_70 = arith.constant 0 : index
    %129 = vector.load %arg7[%c768, %c0_70] : memref<2688x128xf32, #tpu.memory_space<vmem>>, vector<64x128xf32>
    %cst_71 = arith.constant dense<0.000000e+00> : vector<8x128xf32>
    %130 = tpu.matmul %128, %129, %cst_71 {dimension_numbers = #tpu.dot_dimension_numbers<[1], [0], [0], [1], [0, 0, 1, 1], [], []>} : vector<8x64xf32>, vector<64x128xf32>, vector<8x128xf32> -> vector<8x128xf32>
    %131 = arith.addf %127, %130 : vector<8x128xf32>
    %132 = vector.extract_strided_slice %78 {offsets = [104, 0], sizes = [8, 64], strides = [1, 1]} : vector<336x64xf32> to vector<8x64xf32>
    %c832 = arith.constant 832 : index
    %c0_72 = arith.constant 0 : index
    %133 = vector.load %arg7[%c832, %c0_72] : memref<2688x128xf32, #tpu.memory_space<vmem>>, vector<64x128xf32>
    %cst_73 = arith.constant dense<0.000000e+00> : vector<8x128xf32>
    %134 = tpu.matmul %132, %133, %cst_73 {dimension_numbers = #tpu.dot_dimension_numbers<[1], [0], [0], [1], [0, 0, 1, 1], [], []>} : vector<8x64xf32>, vector<64x128xf32>, vector<8x128xf32> -> vector<8x128xf32>
    %135 = arith.addf %131, %134 : vector<8x128xf32>
    %136 = vector.extract_strided_slice %78 {offsets = [112, 0], sizes = [8, 64], strides = [1, 1]} : vector<336x64xf32> to vector<8x64xf32>
    %c896 = arith.constant 896 : index
    %c0_74 = arith.constant 0 : index
    %137 = vector.load %arg7[%c896, %c0_74] : memref<2688x128xf32, #tpu.memory_space<vmem>>, vector<64x128xf32>
    %cst_75 = arith.constant dense<0.000000e+00> : vector<8x128xf32>
    %138 = tpu.matmul %136, %137, %cst_75 {dimension_numbers = #tpu.dot_dimension_numbers<[1], [0], [0], [1], [0, 0, 1, 1], [], []>} : vector<8x64xf32>, vector<64x128xf32>, vector<8x128xf32> -> vector<8x128xf32>
    %139 = arith.addf %135, %138 : vector<8x128xf32>
    %140 = vector.extract_strided_slice %78 {offsets = [120, 0], sizes = [8, 64], strides = [1, 1]} : vector<336x64xf32> to vector<8x64xf32>
    %c960 = arith.constant 960 : index
    %c0_76 = arith.constant 0 : index
    %141 = vector.load %arg7[%c960, %c0_76] : memref<2688x128xf32, #tpu.memory_space<vmem>>, vector<64x128xf32>
    %cst_77 = arith.constant dense<0.000000e+00> : vector<8x128xf32>
    %142 = tpu.matmul %140, %141, %cst_77 {dimension_numbers = #tpu.dot_dimension_numbers<[1], [0], [0], [1], [0, 0, 1, 1], [], []>} : vector<8x64xf32>, vector<64x128xf32>, vector<8x128xf32> -> vector<8x128xf32>
    %143 = arith.addf %139, %142 : vector<8x128xf32>
    %144 = vector.extract_strided_slice %78 {offsets = [128, 0], sizes = [8, 64], strides = [1, 1]} : vector<336x64xf32> to vector<8x64xf32>
    %c1024 = arith.constant 1024 : index
    %c0_78 = arith.constant 0 : index
    %145 = vector.load %arg7[%c1024, %c0_78] : memref<2688x128xf32, #tpu.memory_space<vmem>>, vector<64x128xf32>
    %cst_79 = arith.constant dense<0.000000e+00> : vector<8x128xf32>
    %146 = tpu.matmul %144, %145, %cst_79 {dimension_numbers = #tpu.dot_dimension_numbers<[1], [0], [0], [1], [0, 0, 1, 1], [], []>} : vector<8x64xf32>, vector<64x128xf32>, vector<8x128xf32> -> vector<8x128xf32>
    %147 = arith.addf %143, %146 : vector<8x128xf32>
    %148 = vector.extract_strided_slice %78 {offsets = [136, 0], sizes = [8, 64], strides = [1, 1]} : vector<336x64xf32> to vector<8x64xf32>
    %c1088 = arith.constant 1088 : index
    %c0_80 = arith.constant 0 : index
    %149 = vector.load %arg7[%c1088, %c0_80] : memref<2688x128xf32, #tpu.memory_space<vmem>>, vector<64x128xf32>
    %cst_81 = arith.constant dense<0.000000e+00> : vector<8x128xf32>
    %150 = tpu.matmul %148, %149, %cst_81 {dimension_numbers = #tpu.dot_dimension_numbers<[1], [0], [0], [1], [0, 0, 1, 1], [], []>} : vector<8x64xf32>, vector<64x128xf32>, vector<8x128xf32> -> vector<8x128xf32>
    %151 = arith.addf %147, %150 : vector<8x128xf32>
    %152 = vector.extract_strided_slice %78 {offsets = [144, 0], sizes = [8, 64], strides = [1, 1]} : vector<336x64xf32> to vector<8x64xf32>
    %c1152 = arith.constant 1152 : index
    %c0_82 = arith.constant 0 : index
    %153 = vector.load %arg7[%c1152, %c0_82] : memref<2688x128xf32, #tpu.memory_space<vmem>>, vector<64x128xf32>
    %cst_83 = arith.constant dense<0.000000e+00> : vector<8x128xf32>
    %154 = tpu.matmul %152, %153, %cst_83 {dimension_numbers = #tpu.dot_dimension_numbers<[1], [0], [0], [1], [0, 0, 1, 1], [], []>} : vector<8x64xf32>, vector<64x128xf32>, vector<8x128xf32> -> vector<8x128xf32>
    %155 = arith.addf %151, %154 : vector<8x128xf32>
    %156 = vector.extract_strided_slice %78 {offsets = [152, 0], sizes = [8, 64], strides = [1, 1]} : vector<336x64xf32> to vector<8x64xf32>
    %c1216 = arith.constant 1216 : index
    %c0_84 = arith.constant 0 : index
    %157 = vector.load %arg7[%c1216, %c0_84] : memref<2688x128xf32, #tpu.memory_space<vmem>>, vector<64x128xf32>
    %cst_85 = arith.constant dense<0.000000e+00> : vector<8x128xf32>
    %158 = tpu.matmul %156, %157, %cst_85 {dimension_numbers = #tpu.dot_dimension_numbers<[1], [0], [0], [1], [0, 0, 1, 1], [], []>} : vector<8x64xf32>, vector<64x128xf32>, vector<8x128xf32> -> vector<8x128xf32>
    %159 = arith.addf %155, %158 : vector<8x128xf32>
    %160 = vector.extract_strided_slice %78 {offsets = [160, 0], sizes = [8, 64], strides = [1, 1]} : vector<336x64xf32> to vector<8x64xf32>
    %c1280 = arith.constant 1280 : index
    %c0_86 = arith.constant 0 : index
    %161 = vector.load %arg7[%c1280, %c0_86] : memref<2688x128xf32, #tpu.memory_space<vmem>>, vector<64x128xf32>
    %cst_87 = arith.constant dense<0.000000e+00> : vector<8x128xf32>
    %162 = tpu.matmul %160, %161, %cst_87 {dimension_numbers = #tpu.dot_dimension_numbers<[1], [0], [0], [1], [0, 0, 1, 1], [], []>} : vector<8x64xf32>, vector<64x128xf32>, vector<8x128xf32> -> vector<8x128xf32>
    %163 = arith.addf %159, %162 : vector<8x128xf32>
    %164 = vector.extract_strided_slice %78 {offsets = [168, 0], sizes = [8, 64], strides = [1, 1]} : vector<336x64xf32> to vector<8x64xf32>
    %c1344 = arith.constant 1344 : index
    %c0_88 = arith.constant 0 : index
    %165 = vector.load %arg7[%c1344, %c0_88] : memref<2688x128xf32, #tpu.memory_space<vmem>>, vector<64x128xf32>
    %cst_89 = arith.constant dense<0.000000e+00> : vector<8x128xf32>
    %166 = tpu.matmul %164, %165, %cst_89 {dimension_numbers = #tpu.dot_dimension_numbers<[1], [0], [0], [1], [0, 0, 1, 1], [], []>} : vector<8x64xf32>, vector<64x128xf32>, vector<8x128xf32> -> vector<8x128xf32>
    %167 = arith.addf %163, %166 : vector<8x128xf32>
    %168 = vector.extract_strided_slice %78 {offsets = [176, 0], sizes = [8, 64], strides = [1, 1]} : vector<336x64xf32> to vector<8x64xf32>
    %c1408 = arith.constant 1408 : index
    %c0_90 = arith.constant 0 : index
    %169 = vector.load %arg7[%c1408, %c0_90] : memref<2688x128xf32, #tpu.memory_space<vmem>>, vector<64x128xf32>
    %cst_91 = arith.constant dense<0.000000e+00> : vector<8x128xf32>
    %170 = tpu.matmul %168, %169, %cst_91 {dimension_numbers = #tpu.dot_dimension_numbers<[1], [0], [0], [1], [0, 0, 1, 1], [], []>} : vector<8x64xf32>, vector<64x128xf32>, vector<8x128xf32> -> vector<8x128xf32>
    %171 = arith.addf %167, %170 : vector<8x128xf32>
    %172 = vector.extract_strided_slice %78 {offsets = [184, 0], sizes = [8, 64], strides = [1, 1]} : vector<336x64xf32> to vector<8x64xf32>
    %c1472 = arith.constant 1472 : index
    %c0_92 = arith.constant 0 : index
    %173 = vector.load %arg7[%c1472, %c0_92] : memref<2688x128xf32, #tpu.memory_space<vmem>>, vector<64x128xf32>
    %cst_93 = arith.constant dense<0.000000e+00> : vector<8x128xf32>
    %174 = tpu.matmul %172, %173, %cst_93 {dimension_numbers = #tpu.dot_dimension_numbers<[1], [0], [0], [1], [0, 0, 1, 1], [], []>} : vector<8x64xf32>, vector<64x128xf32>, vector<8x128xf32> -> vector<8x128xf32>
    %175 = arith.addf %171, %174 : vector<8x128xf32>
    %176 = vector.extract_strided_slice %78 {offsets = [192, 0], sizes = [8, 64], strides = [1, 1]} : vector<336x64xf32> to vector<8x64xf32>
    %c1536 = arith.constant 1536 : index
    %c0_94 = arith.constant 0 : index
    %177 = vector.load %arg7[%c1536, %c0_94] : memref<2688x128xf32, #tpu.memory_space<vmem>>, vector<64x128xf32>
    %cst_95 = arith.constant dense<0.000000e+00> : vector<8x128xf32>
    %178 = tpu.matmul %176, %177, %cst_95 {dimension_numbers = #tpu.dot_dimension_numbers<[1], [0], [0], [1], [0, 0, 1, 1], [], []>} : vector<8x64xf32>, vector<64x128xf32>, vector<8x128xf32> -> vector<8x128xf32>
    %179 = arith.addf %175, %178 : vector<8x128xf32>
    %180 = vector.extract_strided_slice %78 {offsets = [200, 0], sizes = [8, 64], strides = [1, 1]} : vector<336x64xf32> to vector<8x64xf32>
    %c1600 = arith.constant 1600 : index
    %c0_96 = arith.constant 0 : index
    %181 = vector.load %arg7[%c1600, %c0_96] : memref<2688x128xf32, #tpu.memory_space<vmem>>, vector<64x128xf32>
    %cst_97 = arith.constant dense<0.000000e+00> : vector<8x128xf32>
    %182 = tpu.matmul %180, %181, %cst_97 {dimension_numbers = #tpu.dot_dimension_numbers<[1], [0], [0], [1], [0, 0, 1, 1], [], []>} : vector<8x64xf32>, vector<64x128xf32>, vector<8x128xf32> -> vector<8x128xf32>
    %183 = arith.addf %179, %182 : vector<8x128xf32>
    %184 = vector.extract_strided_slice %78 {offsets = [208, 0], sizes = [8, 64], strides = [1, 1]} : vector<336x64xf32> to vector<8x64xf32>
    %c1664 = arith.constant 1664 : index
    %c0_98 = arith.constant 0 : index
    %185 = vector.load %arg7[%c1664, %c0_98] : memref<2688x128xf32, #tpu.memory_space<vmem>>, vector<64x128xf32>
    %cst_99 = arith.constant dense<0.000000e+00> : vector<8x128xf32>
    %186 = tpu.matmul %184, %185, %cst_99 {dimension_numbers = #tpu.dot_dimension_numbers<[1], [0], [0], [1], [0, 0, 1, 1], [], []>} : vector<8x64xf32>, vector<64x128xf32>, vector<8x128xf32> -> vector<8x128xf32>
    %187 = arith.addf %183, %186 : vector<8x128xf32>
    %188 = vector.extract_strided_slice %78 {offsets = [216, 0], sizes = [8, 64], strides = [1, 1]} : vector<336x64xf32> to vector<8x64xf32>
    %c1728 = arith.constant 1728 : index
    %c0_100 = arith.constant 0 : index
    %189 = vector.load %arg7[%c1728, %c0_100] : memref<2688x128xf32, #tpu.memory_space<vmem>>, vector<64x128xf32>
    %cst_101 = arith.constant dense<0.000000e+00> : vector<8x128xf32>
    %190 = tpu.matmul %188, %189, %cst_101 {dimension_numbers = #tpu.dot_dimension_numbers<[1], [0], [0], [1], [0, 0, 1, 1], [], []>} : vector<8x64xf32>, vector<64x128xf32>, vector<8x128xf32> -> vector<8x128xf32>
    %191 = arith.addf %187, %190 : vector<8x128xf32>
    %192 = vector.extract_strided_slice %78 {offsets = [224, 0], sizes = [8, 64], strides = [1, 1]} : vector<336x64xf32> to vector<8x64xf32>
    %c1792 = arith.constant 1792 : index
    %c0_102 = arith.constant 0 : index
    %193 = vector.load %arg7[%c1792, %c0_102] : memref<2688x128xf32, #tpu.memory_space<vmem>>, vector<64x128xf32>
    %cst_103 = arith.constant dense<0.000000e+00> : vector<8x128xf32>
    %194 = tpu.matmul %192, %193, %cst_103 {dimension_numbers = #tpu.dot_dimension_numbers<[1], [0], [0], [1], [0, 0, 1, 1], [], []>} : vector<8x64xf32>, vector<64x128xf32>, vector<8x128xf32> -> vector<8x128xf32>
    %195 = arith.addf %191, %194 : vector<8x128xf32>
    %196 = vector.extract_strided_slice %78 {offsets = [232, 0], sizes = [8, 64], strides = [1, 1]} : vector<336x64xf32> to vector<8x64xf32>
    %c1856 = arith.constant 1856 : index
    %c0_104 = arith.constant 0 : index
    %197 = vector.load %arg7[%c1856, %c0_104] : memref<2688x128xf32, #tpu.memory_space<vmem>>, vector<64x128xf32>
    %cst_105 = arith.constant dense<0.000000e+00> : vector<8x128xf32>
    %198 = tpu.matmul %196, %197, %cst_105 {dimension_numbers = #tpu.dot_dimension_numbers<[1], [0], [0], [1], [0, 0, 1, 1], [], []>} : vector<8x64xf32>, vector<64x128xf32>, vector<8x128xf32> -> vector<8x128xf32>
    %199 = arith.addf %195, %198 : vector<8x128xf32>
    %200 = vector.extract_strided_slice %78 {offsets = [240, 0], sizes = [8, 64], strides = [1, 1]} : vector<336x64xf32> to vector<8x64xf32>
    %c1920 = arith.constant 1920 : index
    %c0_106 = arith.constant 0 : index
    %201 = vector.load %arg7[%c1920, %c0_106] : memref<2688x128xf32, #tpu.memory_space<vmem>>, vector<64x128xf32>
    %cst_107 = arith.constant dense<0.000000e+00> : vector<8x128xf32>
    %202 = tpu.matmul %200, %201, %cst_107 {dimension_numbers = #tpu.dot_dimension_numbers<[1], [0], [0], [1], [0, 0, 1, 1], [], []>} : vector<8x64xf32>, vector<64x128xf32>, vector<8x128xf32> -> vector<8x128xf32>
    %203 = arith.addf %199, %202 : vector<8x128xf32>
    %204 = vector.extract_strided_slice %78 {offsets = [248, 0], sizes = [8, 64], strides = [1, 1]} : vector<336x64xf32> to vector<8x64xf32>
    %c1984 = arith.constant 1984 : index
    %c0_108 = arith.constant 0 : index
    %205 = vector.load %arg7[%c1984, %c0_108] : memref<2688x128xf32, #tpu.memory_space<vmem>>, vector<64x128xf32>
    %cst_109 = arith.constant dense<0.000000e+00> : vector<8x128xf32>
    %206 = tpu.matmul %204, %205, %cst_109 {dimension_numbers = #tpu.dot_dimension_numbers<[1], [0], [0], [1], [0, 0, 1, 1], [], []>} : vector<8x64xf32>, vector<64x128xf32>, vector<8x128xf32> -> vector<8x128xf32>
    %207 = arith.addf %203, %206 : vector<8x128xf32>
    %208 = vector.extract_strided_slice %78 {offsets = [256, 0], sizes = [8, 64], strides = [1, 1]} : vector<336x64xf32> to vector<8x64xf32>
    %c2048 = arith.constant 2048 : index
    %c0_110 = arith.constant 0 : index
    %209 = vector.load %arg7[%c2048, %c0_110] : memref<2688x128xf32, #tpu.memory_space<vmem>>, vector<64x128xf32>
    %cst_111 = arith.constant dense<0.000000e+00> : vector<8x128xf32>
    %210 = tpu.matmul %208, %209, %cst_111 {dimension_numbers = #tpu.dot_dimension_numbers<[1], [0], [0], [1], [0, 0, 1, 1], [], []>} : vector<8x64xf32>, vector<64x128xf32>, vector<8x128xf32> -> vector<8x128xf32>
    %211 = arith.addf %207, %210 : vector<8x128xf32>
    %212 = vector.extract_strided_slice %78 {offsets = [264, 0], sizes = [8, 64], strides = [1, 1]} : vector<336x64xf32> to vector<8x64xf32>
    %c2112 = arith.constant 2112 : index
    %c0_112 = arith.constant 0 : index
    %213 = vector.load %arg7[%c2112, %c0_112] : memref<2688x128xf32, #tpu.memory_space<vmem>>, vector<64x128xf32>
    %cst_113 = arith.constant dense<0.000000e+00> : vector<8x128xf32>
    %214 = tpu.matmul %212, %213, %cst_113 {dimension_numbers = #tpu.dot_dimension_numbers<[1], [0], [0], [1], [0, 0, 1, 1], [], []>} : vector<8x64xf32>, vector<64x128xf32>, vector<8x128xf32> -> vector<8x128xf32>
    %215 = arith.addf %211, %214 : vector<8x128xf32>
    %216 = vector.extract_strided_slice %78 {offsets = [272, 0], sizes = [8, 64], strides = [1, 1]} : vector<336x64xf32> to vector<8x64xf32>
    %c2176 = arith.constant 2176 : index
    %c0_114 = arith.constant 0 : index
    %217 = vector.load %arg7[%c2176, %c0_114] : memref<2688x128xf32, #tpu.memory_space<vmem>>, vector<64x128xf32>
    %cst_115 = arith.constant dense<0.000000e+00> : vector<8x128xf32>
    %218 = tpu.matmul %216, %217, %cst_115 {dimension_numbers = #tpu.dot_dimension_numbers<[1], [0], [0], [1], [0, 0, 1, 1], [], []>} : vector<8x64xf32>, vector<64x128xf32>, vector<8x128xf32> -> vector<8x128xf32>
    %219 = arith.addf %215, %218 : vector<8x128xf32>
    %220 = vector.extract_strided_slice %78 {offsets = [280, 0], sizes = [8, 64], strides = [1, 1]} : vector<336x64xf32> to vector<8x64xf32>
    %c2240 = arith.constant 2240 : index
    %c0_116 = arith.constant 0 : index
    %221 = vector.load %arg7[%c2240, %c0_116] : memref<2688x128xf32, #tpu.memory_space<vmem>>, vector<64x128xf32>
    %cst_117 = arith.constant dense<0.000000e+00> : vector<8x128xf32>
    %222 = tpu.matmul %220, %221, %cst_117 {dimension_numbers = #tpu.dot_dimension_numbers<[1], [0], [0], [1], [0, 0, 1, 1], [], []>} : vector<8x64xf32>, vector<64x128xf32>, vector<8x128xf32> -> vector<8x128xf32>
    %223 = arith.addf %219, %222 : vector<8x128xf32>
    %224 = vector.extract_strided_slice %78 {offsets = [288, 0], sizes = [8, 64], strides = [1, 1]} : vector<336x64xf32> to vector<8x64xf32>
    %c2304 = arith.constant 2304 : index
    %c0_118 = arith.constant 0 : index
    %225 = vector.load %arg7[%c2304, %c0_118] : memref<2688x128xf32, #tpu.memory_space<vmem>>, vector<64x128xf32>
    %cst_119 = arith.constant dense<0.000000e+00> : vector<8x128xf32>
    %226 = tpu.matmul %224, %225, %cst_119 {dimension_numbers = #tpu.dot_dimension_numbers<[1], [0], [0], [1], [0, 0, 1, 1], [], []>} : vector<8x64xf32>, vector<64x128xf32>, vector<8x128xf32> -> vector<8x128xf32>
    %227 = arith.addf %223, %226 : vector<8x128xf32>
    %228 = vector.extract_strided_slice %78 {offsets = [296, 0], sizes = [8, 64], strides = [1, 1]} : vector<336x64xf32> to vector<8x64xf32>
    %c2368 = arith.constant 2368 : index
    %c0_120 = arith.constant 0 : index
    %229 = vector.load %arg7[%c2368, %c0_120] : memref<2688x128xf32, #tpu.memory_space<vmem>>, vector<64x128xf32>
    %cst_121 = arith.constant dense<0.000000e+00> : vector<8x128xf32>
    %230 = tpu.matmul %228, %229, %cst_121 {dimension_numbers = #tpu.dot_dimension_numbers<[1], [0], [0], [1], [0, 0, 1, 1], [], []>} : vector<8x64xf32>, vector<64x128xf32>, vector<8x128xf32> -> vector<8x128xf32>
    %231 = arith.addf %227, %230 : vector<8x128xf32>
    %232 = vector.extract_strided_slice %78 {offsets = [304, 0], sizes = [8, 64], strides = [1, 1]} : vector<336x64xf32> to vector<8x64xf32>
    %c2432 = arith.constant 2432 : index
    %c0_122 = arith.constant 0 : index
    %233 = vector.load %arg7[%c2432, %c0_122] : memref<2688x128xf32, #tpu.memory_space<vmem>>, vector<64x128xf32>
    %cst_123 = arith.constant dense<0.000000e+00> : vector<8x128xf32>
    %234 = tpu.matmul %232, %233, %cst_123 {dimension_numbers = #tpu.dot_dimension_numbers<[1], [0], [0], [1], [0, 0, 1, 1], [], []>} : vector<8x64xf32>, vector<64x128xf32>, vector<8x128xf32> -> vector<8x128xf32>
    %235 = arith.addf %231, %234 : vector<8x128xf32>
    %236 = vector.extract_strided_slice %78 {offsets = [312, 0], sizes = [8, 64], strides = [1, 1]} : vector<336x64xf32> to vector<8x64xf32>
    %c2496 = arith.constant 2496 : index
    %c0_124 = arith.constant 0 : index
    %237 = vector.load %arg7[%c2496, %c0_124] : memref<2688x128xf32, #tpu.memory_space<vmem>>, vector<64x128xf32>
    %cst_125 = arith.constant dense<0.000000e+00> : vector<8x128xf32>
    %238 = tpu.matmul %236, %237, %cst_125 {dimension_numbers = #tpu.dot_dimension_numbers<[1], [0], [0], [1], [0, 0, 1, 1], [], []>} : vector<8x64xf32>, vector<64x128xf32>, vector<8x128xf32> -> vector<8x128xf32>
    %239 = arith.addf %235, %238 : vector<8x128xf32>
    %240 = vector.extract_strided_slice %78 {offsets = [320, 0], sizes = [8, 64], strides = [1, 1]} : vector<336x64xf32> to vector<8x64xf32>
    %c2560 = arith.constant 2560 : index
    %c0_126 = arith.constant 0 : index
    %241 = vector.load %arg7[%c2560, %c0_126] : memref<2688x128xf32, #tpu.memory_space<vmem>>, vector<64x128xf32>
    %cst_127 = arith.constant dense<0.000000e+00> : vector<8x128xf32>
    %242 = tpu.matmul %240, %241, %cst_127 {dimension_numbers = #tpu.dot_dimension_numbers<[1], [0], [0], [1], [0, 0, 1, 1], [], []>} : vector<8x64xf32>, vector<64x128xf32>, vector<8x128xf32> -> vector<8x128xf32>
    %243 = arith.addf %239, %242 : vector<8x128xf32>
    %244 = vector.extract_strided_slice %78 {offsets = [328, 0], sizes = [8, 64], strides = [1, 1]} : vector<336x64xf32> to vector<8x64xf32>
    %c2624 = arith.constant 2624 : index
    %c0_128 = arith.constant 0 : index
    %245 = vector.load %arg7[%c2624, %c0_128] : memref<2688x128xf32, #tpu.memory_space<vmem>>, vector<64x128xf32>
    %cst_129 = arith.constant dense<0.000000e+00> : vector<8x128xf32>
    %246 = tpu.matmul %244, %245, %cst_129 {dimension_numbers = #tpu.dot_dimension_numbers<[1], [0], [0], [1], [0, 0, 1, 1], [], []>} : vector<8x64xf32>, vector<64x128xf32>, vector<8x128xf32> -> vector<8x128xf32>
    %247 = arith.addf %243, %246 : vector<8x128xf32>
    %c0_130 = arith.constant 0 : index
    %c0_131 = arith.constant 0 : index
    %248 = vector.load %arg8[%c0_130, %c0_131] : memref<1x128xf32, #tpu.memory_space<vmem>>, vector<1x128xf32>
    %249 = vector.broadcast %248 : vector<1x128xf32> to vector<8x128xf32>
    %250 = arith.addf %247, %249 : vector<8x128xf32>
    %cst_132 = arith.constant 0.000000e+00 : f32
    %251 = vector.broadcast %cst_132 : f32 to vector<8x128xf32>
    %252 = arith.maximumf %250, %251 : vector<8x128xf32>
    %c0_133 = arith.constant 0 : index
    %c0_134 = arith.constant 0 : index
    %253 = vector.load %arg9[%c0_133, %c0_134] : memref<128x128xf32, #tpu.memory_space<vmem>>, vector<128x128xf32>
    %cst_135 = arith.constant dense<0.000000e+00> : vector<8x128xf32>
    %254 = tpu.matmul %252, %253, %cst_135 {dimension_numbers = #tpu.dot_dimension_numbers<[1], [0], [0], [1], [0, 0, 1, 1], [], []>} : vector<8x128xf32>, vector<128x128xf32>, vector<8x128xf32> -> vector<8x128xf32>
    %c0_136 = arith.constant 0 : index
    %c0_137 = arith.constant 0 : index
    %255 = vector.load %arg10[%c0_136, %c0_137] : memref<1x128xf32, #tpu.memory_space<vmem>>, vector<1x128xf32>
    %256 = vector.broadcast %255 : vector<1x128xf32> to vector<8x128xf32>
    %257 = arith.addf %254, %256 : vector<8x128xf32>
    %258 = tpu.iota {dimensions = array<i32: 1>} : vector<8x128xi32>
    %c7_i32 = arith.constant 7 : i32
    %259 = vector.broadcast %c7_i32 : i32 to vector<8x128xi32>
    %260 = arith.cmpi eq, %258, %259 : vector<8x128xi32>
    %261 = math.tanh %257 : vector<8x128xf32>
    %262 = arith.select %260, %261, %257 : vector<8x128xi1>, vector<8x128xf32>
    %c0_138 = arith.constant 0 : index
    %c0_139 = arith.constant 0 : index
    %263 = vector.load %arg11[%c0_138, %c0_139] : memref<8x128xf32, #tpu.memory_space<vmem>>, vector<8x128xf32>
    tpu.vector_store %arg11[%c0_138, %c0_139], %262 {strides = array<i32>} : memref<8x128xf32, #tpu.memory_space<vmem>>, vector<8x128xf32>,
    return
  }
  func.func @transform_0(%arg0: i32) -> (i32, i32) {
    %c0_i32 = arith.constant 0 : i32
    %c0_i32_0 = arith.constant 0 : i32
    return %arg0, %c0_i32 : i32, i32
  }
  func.func @transform_1(%arg0: i32) -> (i32, i32) {
    %c0_i32 = arith.constant 0 : i32
    %c0_i32_0 = arith.constant 0 : i32
    %c0_i32_1 = arith.constant 0 : i32
    return %c0_i32, %c0_i32_0 : i32, i32
  }
  func.func @transform_2(%arg0: i32) -> (i32, i32) {
    %c0_i32 = arith.constant 0 : i32
    %c0_i32_0 = arith.constant 0 : i32
    %c0_i32_1 = arith.constant 0 : i32
    return %c0_i32, %c0_i32_0 : i32, i32
  }
  func.func @transform_3(%arg0: i32) -> (i32, i32) {
    %c0_i32 = arith.constant 0 : i32
    %c0_i32_0 = arith.constant 0 : i32
    %c0_i32_1 = arith.constant 0 : i32
    return %c0_i32, %c0_i32_0 : i32, i32
  }
  func.func @transform_4(%arg0: i32) -> (i32, i32) {
    %c0_i32 = arith.constant 0 : i32
    %c0_i32_0 = arith.constant 0 : i32
    %c0_i32_1 = arith.constant 0 : i32
    return %c0_i32, %c0_i32_0 : i32, i32
  }
  func.func @transform_5(%arg0: i32) -> (i32, i32) {
    %c0_i32 = arith.constant 0 : i32
    %c0_i32_0 = arith.constant 0 : i32
    %c0_i32_1 = arith.constant 0 : i32
    return %c0_i32, %c0_i32_0 : i32, i32
  }
  func.func @transform_6(%arg0: i32) -> (i32, i32) {
    %c0_i32 = arith.constant 0 : i32
    %c0_i32_0 = arith.constant 0 : i32
    %c0_i32_1 = arith.constant 0 : i32
    return %c0_i32, %c0_i32_0 : i32, i32
  }
  func.func @transform_7(%arg0: i32) -> (i32, i32) {
    %c0_i32 = arith.constant 0 : i32
    %c0_i32_0 = arith.constant 0 : i32
    %c0_i32_1 = arith.constant 0 : i32
    return %c0_i32, %c0_i32_0 : i32, i32
  }
  func.func @transform_8(%arg0: i32) -> (i32, i32) {
    %c0_i32 = arith.constant 0 : i32
    %c0_i32_0 = arith.constant 0 : i32
    %c0_i32_1 = arith.constant 0 : i32
    return %c0_i32, %c0_i32_0 : i32, i32
  }
  func.func @transform_9(%arg0: i32) -> (i32, i32) {
    %c0_i32 = arith.constant 0 : i32
    %c0_i32_0 = arith.constant 0 : i32
    %c0_i32_1 = arith.constant 0 : i32
    return %c0_i32, %c0_i32_0 : i32, i32
  }
  func.func @transform_10(%arg0: i32) -> (i32, i32) {
    %c0_i32 = arith.constant 0 : i32
    %c0_i32_0 = arith.constant 0 : i32
    return %arg0, %c0_i32 : i32, i32
  }
}

</mosaic_0001>

<llo_original>
// kernel: connect4_forward.1
$region0: #{connect4_forward.1}
  #allocation0 [shape = 'u32[]', space=smem, size = 0x4, offset = 0x4, fixed_abs, tag = 'smem constant byte address 0x4 - core index']
  #allocation1 [shape = 'u32[72,128]{1,0:T(1,128)}', space=vmem, size = 0x9000, scoped, tag = 'internal scratch']
  %s0 = inlined_call_operand.vmem [shape: f32[336,9], index: 0, kind: input, shape index: {}]
  %s1 = inlined_call_operand.vmem [shape: f32[336,9], index: 1, kind: input, shape index: {}]
  %s2 = inlined_call_operand.vmem [shape: f32[9,32], index: 2, kind: input, shape index: {}]
  %s3 = inlined_call_operand.vmem [shape: f32[1,32], index: 3, kind: input, shape index: {}]
  %s4 = inlined_call_operand.vmem [shape: f32[288,64], index: 4, kind: input, shape index: {}]
  %s5 = inlined_call_operand.vmem [shape: f32[1,64], index: 5, kind: input, shape index: {}]
  %s6 = inlined_call_operand.vmem [shape: f32[2688,128], index: 6, kind: input, shape index: {}]
  %s7 = inlined_call_operand.vmem [shape: f32[1,128], index: 7, kind: input, shape index: {}]
  %s8 = inlined_call_operand.vmem [shape: f32[128,128], index: 8, kind: input, shape index: {}]
  %s9 = inlined_call_operand.vmem [shape: f32[1,128], index: 9, kind: input, shape index: {}]
  %s10 = inlined_call_operand.vmem [shape: f32[8,128], index: 10, kind: output, shape index: {}]
  %s11 = sld [smem:[#allocation0]]
  $region50: #{connect4_forward.1} parent=0
    _
  %s13 = ssub.s32 1, %s11
  %s14 = scalar_select 0, %s13, %s11
  // Predicated region
  $region2: #{connect4_forward.1} parent=0 // pred_check
    _
  $region3: #{connect4_forward.1} parent=0 // pred_check_branch
    %16 = sbr.rel (0) target = $region5
  $region4: #{connect4_forward.1} parent=0 // pred_region
    _
  $region5: #{connect4_forward.1} parent=0 // pred_fallthru
    _
  // Predicated region
  $region6: #{connect4_forward.1} parent=0 // pred_check
    _
  $region7: #{connect4_forward.1} parent=0 // pred_check_branch
    %18 = sbr.rel (0) target = $region9
  $region8: #{connect4_forward.1} parent=0 // pred_region
    _
  $region9: #{connect4_forward.1} parent=0 // pred_fallthru
    _
  // Predicated region
  $region10: #{connect4_forward.1} parent=0 // pred_check
    _
  $region11: #{connect4_forward.1} parent=0 // pred_check_branch
    %20 = sbr.rel (0) target = $region13
  $region12: #{connect4_forward.1} parent=0 // pred_region
    _
  $region13: #{connect4_forward.1} parent=0 // pred_fallthru
    _
  // Predicated region
  $region14: #{connect4_forward.1} parent=0 // pred_check
    _
  $region15: #{connect4_forward.1} parent=0 // pred_check_branch
    %22 = sbr.rel (0) target = $region17
  $region16: #{connect4_forward.1} parent=0 // pred_region
    _
  $region17: #{connect4_forward.1} parent=0 // pred_fallthru
    _
  // Predicated region
  $region18: #{connect4_forward.1} parent=0 // pred_check
    _
  $region19: #{connect4_forward.1} parent=0 // pred_check_branch
    %24 = sbr.rel (0) target = $region21
  $region20: #{connect4_forward.1} parent=0 // pred_region
    _
  $region21: #{connect4_forward.1} parent=0 // pred_fallthru
    _
  // Predicated region
  $region22: #{connect4_forward.1} parent=0 // pred_check
    _
  $region23: #{connect4_forward.1} parent=0 // pred_check_branch
    %26 = sbr.rel (0) target = $region25
  $region24: #{connect4_forward.1} parent=0 // pred_region
    _
  $region25: #{connect4_forward.1} parent=0 // pred_fallthru
    _
  // Predicated region
  $region26: #{connect4_forward.1} parent=0 // pred_check
    _
  $region27: #{connect4_forward.1} parent=0 // pred_check_branch
    %28 = sbr.rel (0) target = $region29
  $region28: #{connect4_forward.1} parent=0 // pred_region
    _
  $region29: #{connect4_forward.1} parent=0 // pred_fallthru
    _
  // Predicated region
  $region30: #{connect4_forward.1} parent=0 // pred_check
    _
  $region31: #{connect4_forward.1} parent=0 // pred_check_branch
    %30 = sbr.rel (0) target = $region33
  $region32: #{connect4_forward.1} parent=0 // pred_region
    _
  $region33: #{connect4_forward.1} parent=0 // pred_fallthru
    _
  // Predicated region
  $region34: #{connect4_forward.1} parent=0 // pred_check
    _
  $region35: #{connect4_forward.1} parent=0 // pred_check_branch
    %32 = sbr.rel (0) target = $region37
  $region36: #{connect4_forward.1} parent=0 // pred_region
    _
  $region37: #{connect4_forward.1} parent=0 // pred_fallthru
    _
  // Predicated region
  $region38: #{connect4_forward.1} parent=0 // pred_check
    _
  $region39: #{connect4_forward.1} parent=0 // pred_check_branch
    %34 = sbr.rel (0) target = $region41
  $region40: #{connect4_forward.1} parent=0 // pred_region
    _
  $region41: #{connect4_forward.1} parent=0 // pred_fallthru
    _
  %v35 = vld [vmem:[%s0] sm:$0xff]
  %v36 = vld [vmem:[%s0 + $0x8] sm:$0xff]
  %v37 = vld [vmem:[%s0 + $0x10] sm:$0xff]
  %v38 = vld [vmem:[%s0 + $0x18] sm:$0xff]
  %v39 = vld [vmem:[%s0 + $0x20] sm:$0xff]
  %v40 = vld [vmem:[%s0 + $0x28] sm:$0xff]
  %v41 = vld [vmem:[%s0 + $0x30] sm:$0xff]
  %v42 = vld [vmem:[%s0 + $0x38] sm:$0xff]
  %v43 = vld [vmem:[%s0 + $0x40] sm:$0xff]
  %v44 = vld [vmem:[%s0 + $0x48] sm:$0xff]
  %v45 = vld [vmem:[%s0 + $0x50] sm:$0xff]
  %v46 = vld [vmem:[%s0 + $0x58] sm:$0xff]
  %v47 = vld [vmem:[%s0 + $0x60] sm:$0xff]
  %v48 = vld [vmem:[%s0 + $0x68] sm:$0xff]
  %v49 = vld [vmem:[%s0 + $0x70] sm:$0xff]
  %v50 = vld [vmem:[%s0 + $0x78] sm:$0xff]
  %v51 = vld [vmem:[%s0 + $0x80] sm:$0xff]
  %v52 = vld [vmem:[%s0 + $0x88] sm:$0xff]
  %v53 = vld [vmem:[%s0 + $0x90] sm:$0xff]
  %v54 = vld [vmem:[%s0 + $0x98] sm:$0xff]
  %v55 = vld [vmem:[%s0 + $0xa0] sm:$0xff]
  %v56 = vld [vmem:[%s0 + $0xa8] sm:$0xff]
  %v57 = vld [vmem:[%s0 + $0xb0] sm:$0xff]
  %v58 = vld [vmem:[%s0 + $0xb8] sm:$0xff]
  %v59 = vld [vmem:[%s0 + $0xc0] sm:$0xff]
  %v60 = vld [vmem:[%s0 + $0xc8] sm:$0xff]
  %v61 = vld [vmem:[%s0 + $0xd0] sm:$0xff]
  %v62 = vld [vmem:[%s0 + $0xd8] sm:$0xff]
  %v63 = vld [vmem:[%s0 + $0xe0] sm:$0xff]
  %v64 = vld [vmem:[%s0 + $0xe8] sm:$0xff]
  %v65 = vld [vmem:[%s0 + $0xf0] sm:$0xff]
  %v66 = vld [vmem:[%s0 + $0xf8] sm:$0xff]
  %v67 = vld [vmem:[%s0 + $0x100] sm:$0xff]
  %v68 = vld [vmem:[%s0 + $0x108] sm:$0xff]
  %v69 = vld [vmem:[%s0 + $0x110] sm:$0xff]
  %v70 = vld [vmem:[%s0 + $0x118] sm:$0xff]
  %v71 = vld [vmem:[%s0 + $0x120] sm:$0xff]
  %v72 = vld [vmem:[%s0 + $0x128] sm:$0xff]
  %v73 = vld [vmem:[%s0 + $0x130] sm:$0xff]
  %v74 = vld [vmem:[%s0 + $0x138] sm:$0xff]
  %v75 = vld [vmem:[%s0 + $0x140] sm:$0xff]
  %v76 = vld [vmem:[%s0 + $0x148] sm:$0xff]
  %v77 = vld [vmem:[%s2] sm:$0xff]
  %v78 = vld [vmem:[%s2 + $0x8] sm:$0x1]
  %v79 = vld [vmem:[%s3] sm:$0x1]
  %v81 = vperm.slane %v79, 0
  %vm83 = vcmask 72704
  %v85 = vsel %vm83, %v35, 0
  %v88 = vsel %vm83, %v36, 0
  %v91 = vsel %vm83, %v37, 0
  %v94 = vsel %vm83, %v38, 0
  %v97 = vsel %vm83, %v39, 0
  %v100 = vsel %vm83, %v40, 0
  %v103 = vsel %vm83, %v41, 0
  %v106 = vsel %vm83, %v42, 0
  %v109 = vsel %vm83, %v43, 0
  %v112 = vsel %vm83, %v44, 0
  %v115 = vsel %vm83, %v45, 0
  %v118 = vsel %vm83, %v46, 0
  %v121 = vsel %vm83, %v47, 0
  %v124 = vsel %vm83, %v48, 0
  %v127 = vsel %vm83, %v49, 0
  %v130 = vsel %vm83, %v50, 0
  %v133 = vsel %vm83, %v51, 0
  %v136 = vsel %vm83, %v52, 0
  %v139 = vsel %vm83, %v53, 0
  %v142 = vsel %vm83, %v54, 0
  %v145 = vsel %vm83, %v55, 0
  %v148 = vsel %vm83, %v56, 0
  %v151 = vsel %vm83, %v57, 0
  %v154 = vsel %vm83, %v58, 0
  %v157 = vsel %vm83, %v59, 0
  %v160 = vsel %vm83, %v60, 0
  %v163 = vsel %vm83, %v61, 0
  %v166 = vsel %vm83, %v62, 0
  %v169 = vsel %vm83, %v63, 0
  %v172 = vsel %vm83, %v64, 0
  %v175 = vsel %vm83, %v65, 0
  %v178 = vsel %vm83, %v66, 0
  %v181 = vsel %vm83, %v67, 0
  %v184 = vsel %vm83, %v68, 0
  %v187 = vsel %vm83, %v69, 0
  %v190 = vsel %vm83, %v70, 0
  %v193 = vsel %vm83, %v71, 0
  %v196 = vsel %vm83, %v72, 0
  %v199 = vsel %vm83, %v73, 0
  %v202 = vsel %vm83, %v74, 0
  %v205 = vsel %vm83, %v75, 0
  %v208 = vsel %vm83, %v76, 0
  %vm210 = vcmask 1040384
  %v212 = vsel %vm210, %v78, 0
  %214 = vmatpush.msra.mxu0 0.0
  %215 = vmatpush.msra.mxu0 0.0
  %216 = vmatpush.msra.mxu0 0.0
  %217 = vmatpush.msra.mxu0 0.0
  %218 = vmatpush.msra.mxu0 0.0
  %219 = vmatpush.msra.mxu0 0.0
  %220 = vmatpush.msra.mxu0 0.0
  %221 = vmatpush.msra.mxu0 0.0
  %222 = vmatpush.msra.mxu0 0.0
  %223 = vmatpush.msra.mxu0 0.0
  %224 = vmatpush.msra.mxu0 0.0
  %225 = vmatpush.msra.mxu0 0.0
  %226 = vmatpush.msra.mxu0 0.0
  %227 = vmatpush.msra.mxu0 0.0
  %228 = vmatpush.msra.mxu0 %v212
  %229 = vmatpush.msra.mxu0 %v77
  %230 = vmatmul.f32.gmra.mxu0 %v85
  %v231 = vpop.f32.mrf.mxu0
  %v232 = vadd.f32 %v81, %v231
  %233 = vmatmul.f32.gmra.mxu0 %v88
  %v234 = vpop.f32.mrf.mxu0
  %v235 = vadd.f32 %v81, %v234
  %236 = vmatmul.f32.gmra.mxu0 %v91
  %v237 = vpop.f32.mrf.mxu0
  %v238 = vadd.f32 %v81, %v237
  %239 = vmatmul.f32.gmra.mxu0 %v94
  %v240 = vpop.f32.mrf.mxu0
  %v241 = vadd.f32 %v81, %v240
  %242 = vmatmul.f32.gmra.mxu0 %v97
  %v243 = vpop.f32.mrf.mxu0
  %v244 = vadd.f32 %v81, %v243
  %245 = vmatmul.f32.gmra.mxu0 %v100
  %v246 = vpop.f32.mrf.mxu0
  %v247 = vadd.f32 %v81, %v246
  %248 = vmatmul.f32.gmra.mxu0 %v103
  %v249 = vpop.f32.mrf.mxu0
  %v250 = vadd.f32 %v81, %v249
  %251 = vmatmul.f32.gmra.mxu0 %v106
  %v252 = vpop.f32.mrf.mxu0
  %v253 = vadd.f32 %v81, %v252
  %254 = vmatmul.f32.gmra.mxu0 %v109
  %v255 = vpop.f32.mrf.mxu0
  %v256 = vadd.f32 %v81, %v255
  %257 = vmatmul.f32.gmra.mxu0 %v112
  %v258 = vpop.f32.mrf.mxu0
  %v259 = vadd.f32 %v81, %v258
  %260 = vmatmul.f32.gmra.mxu0 %v115
  %v261 = vpop.f32.mrf.mxu0
  %v262 = vadd.f32 %v81, %v261
  %263 = vmatmul.f32.gmra.mxu0 %v118
  %v264 = vpop.f32.mrf.mxu0
  %v265 = vadd.f32 %v81, %v264
  %266 = vmatmul.f32.gmra.mxu0 %v121
  %v267 = vpop.f32.mrf.mxu0
  %v268 = vadd.f32 %v81, %v267
  %269 = vmatmul.f32.gmra.mxu0 %v124
  %v270 = vpop.f32.mrf.mxu0
  %v271 = vadd.f32 %v81, %v270
  %272 = vmatmul.f32.gmra.mxu0 %v127
  %v273 = vpop.f32.mrf.mxu0
  %v274 = vadd.f32 %v81, %v273
  %275 = vmatmul.f32.gmra.mxu0 %v130
  %v276 = vpop.f32.mrf.mxu0
  %v277 = vadd.f32 %v81, %v276
  %278 = vmatmul.f32.gmra.mxu0 %v133
  %v279 = vpop.f32.mrf.mxu0
  %v280 = vadd.f32 %v81, %v279
  %281 = vmatmul.f32.gmra.mxu0 %v136
  %v282 = vpop.f32.mrf.mxu0
  %v283 = vadd.f32 %v81, %v282
  %284 = vmatmul.f32.gmra.mxu0 %v139
  %v285 = vpop.f32.mrf.mxu0
  %v286 = vadd.f32 %v81, %v285
  %287 = vmatmul.f32.gmra.mxu0 %v142
  %v288 = vpop.f32.mrf.mxu0
  %v289 = vadd.f32 %v81, %v288
  %290 = vmatmul.f32.gmra.mxu0 %v145
  %v291 = vpop.f32.mrf.mxu0
  %v292 = vadd.f32 %v81, %v291
  %293 = vmatmul.f32.gmra.mxu0 %v148
  %v294 = vpop.f32.mrf.mxu0
  %v295 = vadd.f32 %v81, %v294
  %296 = vmatmul.f32.gmra.mxu0 %v151
  %v297 = vpop.f32.mrf.mxu0
  %v298 = vadd.f32 %v81, %v297
  %299 = vmatmul.f32.gmra.mxu0 %v154
  %v300 = vpop.f32.mrf.mxu0
  %v301 = vadd.f32 %v81, %v300
  %302 = vmatmul.f32.gmra.mxu0 %v157
  %v303 = vpop.f32.mrf.mxu0
  %v304 = vadd.f32 %v81, %v303
  %305 = vmatmul.f32.gmra.mxu0 %v160
  %v306 = vpop.f32.mrf.mxu0
  %v307 = vadd.f32 %v81, %v306
  %308 = vmatmul.f32.gmra.mxu0 %v163
  %v309 = vpop.f32.mrf.mxu0
  %v310 = vadd.f32 %v81, %v309
  %311 = vmatmul.f32.gmra.mxu0 %v166
  %v312 = vpop.f32.mrf.mxu0
  %v313 = vadd.f32 %v81, %v312
  %314 = vmatmul.f32.gmra.mxu0 %v169
  %v315 = vpop.f32.mrf.mxu0
  %v316 = vadd.f32 %v81, %v315
  %317 = vmatmul.f32.gmra.mxu0 %v172
  %v318 = vpop.f32.mrf.mxu0
  %v319 = vadd.f32 %v81, %v318
  %320 = vmatmul.f32.gmra.mxu0 %v175
  %v321 = vpop.f32.mrf.mxu0
  %v322 = vadd.f32 %v81, %v321
  %323 = vmatmul.f32.gmra.mxu0 %v178
  %v324 = vpop.f32.mrf.mxu0
  %v325 = vadd.f32 %v81, %v324
  %326 = vmatmul.f32.gmra.mxu0 %v181
  %v327 = vpop.f32.mrf.mxu0
  %v328 = vadd.f32 %v81, %v327
  %329 = vmatmul.f32.gmra.mxu0 %v184
  %v330 = vpop.f32.mrf.mxu0
  %v331 = vadd.f32 %v81, %v330
  %332 = vmatmul.f32.gmra.mxu0 %v187
  %v333 = vpop.f32.mrf.mxu0
  %v334 = vadd.f32 %v81, %v333
  %335 = vmatmul.f32.gmra.mxu0 %v190
  %v336 = vpop.f32.mrf.mxu0
  %v337 = vadd.f32 %v81, %v336
  %338 = vmatmul.f32.gmra.mxu0 %v193
  %v339 = vpop.f32.mrf.mxu0
  %v340 = vadd.f32 %v81, %v339
  %341 = vmatmul.f32.gmra.mxu0 %v196
  %v342 = vpop.f32.mrf.mxu0
  %v343 = vadd.f32 %v81, %v342
  %344 = vmatmul.f32.gmra.mxu0 %v199
  %v345 = vpop.f32.mrf.mxu0
  %v346 = vadd.f32 %v81, %v345
  %347 = vmatmul.f32.gmra.mxu0 %v202
  %v348 = vpop.f32.mrf.mxu0
  %v349 = vadd.f32 %v81, %v348
  %350 = vmatmul.f32.gmra.mxu0 %v205
  %v351 = vpop.f32.mrf.mxu0
  %v352 = vadd.f32 %v81, %v351
  %353 = vmatmul.f32.gmra.mxu0 %v208
  %v354 = vpop.f32.mrf.mxu0
  %v355 = vadd.f32 %v81, %v354
  %356 = vdwg.mxu0
  %v357 = vmax.f32 %v232, 0.0
  %v358 = vmax.f32 %v235, 0.0
  %v359 = vmax.f32 %v238, 0.0
  %v360 = vmax.f32 %v241, 0.0
  %v361 = vmax.f32 %v244, 0.0
  %v362 = vmax.f32 %v247, 0.0
  %v363 = vmax.f32 %v250, 0.0
  %v364 = vmax.f32 %v253, 0.0
  %v365 = vmax.f32 %v256, 0.0
  %v366 = vmax.f32 %v259, 0.0
  %v367 = vmax.f32 %v262, 0.0
  %v368 = vmax.f32 %v265, 0.0
  %v369 = vmax.f32 %v268, 0.0
  %v370 = vmax.f32 %v271, 0.0
  %v371 = vmax.f32 %v274, 0.0
  %v372 = vmax.f32 %v277, 0.0
  %v373 = vmax.f32 %v280, 0.0
  %v374 = vmax.f32 %v283, 0.0
  %v375 = vmax.f32 %v286, 0.0
  %v376 = vmax.f32 %v289, 0.0
  %v377 = vmax.f32 %v292, 0.0
  %v378 = vmax.f32 %v295, 0.0
  %v379 = vmax.f32 %v298, 0.0
  %v380 = vmax.f32 %v301, 0.0
  %v381 = vmax.f32 %v304, 0.0
  %v382 = vmax.f32 %v307, 0.0
  %v383 = vmax.f32 %v310, 0.0
  %v384 = vmax.f32 %v313, 0.0
  %v385 = vmax.f32 %v316, 0.0
  %v386 = vmax.f32 %v319, 0.0
  %v387 = vmax.f32 %v322, 0.0
  %v388 = vmax.f32 %v325, 0.0
  %v389 = vmax.f32 %v328, 0.0
  %v390 = vmax.f32 %v331, 0.0
  %v391 = vmax.f32 %v334, 0.0
  %v392 = vmax.f32 %v337, 0.0
  %v393 = vmax.f32 %v340, 0.0
  %v394 = vmax.f32 %v343, 0.0
  %v395 = vmax.f32 %v346, 0.0
  %v396 = vmax.f32 %v349, 0.0
  %v397 = vmax.f32 %v352, 0.0
  %v398 = vmax.f32 %v355, 0.0
  %v399 = vld [vmem:[%s1] sm:$0xff]
  %v400 = vld [vmem:[%s1 + $0x8] sm:$0xff]
  %v401 = vld [vmem:[%s1 + $0x10] sm:$0xff]
  %v402 = vld [vmem:[%s1 + $0x18] sm:$0xff]
  %v403 = vld [vmem:[%s1 + $0x20] sm:$0xff]
  %v404 = vld [vmem:[%s1 + $0x28] sm:$0xff]
  %v405 = vld [vmem:[%s1 + $0x30] sm:$0xff]
  %v406 = vld [vmem:[%s1 + $0x38] sm:$0xff]
  %v407 = vld [vmem:[%s1 + $0x40] sm:$0xff]
  %v408 = vld [vmem:[%s1 + $0x48] sm:$0xff]
  %v409 = vld [vmem:[%s1 + $0x50] sm:$0xff]
  %v410 = vld [vmem:[%s1 + $0x58] sm:$0xff]
  %v411 = vld [vmem:[%s1 + $0x60] sm:$0xff]
  %v412 = vld [vmem:[%s1 + $0x68] sm:$0xff]
  %v413 = vld [vmem:[%s1 + $0x70] sm:$0xff]
  %v414 = vld [vmem:[%s1 + $0x78] sm:$0xff]
  %v415 = vld [vmem:[%s1 + $0x80] sm:$0xff]
  %v416 = vld [vmem:[%s1 + $0x88] sm:$0xff]
  %v417 = vld [vmem:[%s1 + $0x90] sm:$0xff]
  %v418 = vld [vmem:[%s1 + $0x98] sm:$0xff]
  %v419 = vld [vmem:[%s1 + $0xa0] sm:$0xff]
  %v420 = vld [vmem:[%s1 + $0xa8] sm:$0xff]
  %v421 = vld [vmem:[%s1 + $0xb0] sm:$0xff]
  %v422 = vld [vmem:[%s1 + $0xb8] sm:$0xff]
  %v423 = vld [vmem:[%s1 + $0xc0] sm:$0xff]
  %v424 = vld [vmem:[%s1 + $0xc8] sm:$0xff]
  %v425 = vld [vmem:[%s1 + $0xd0] sm:$0xff]
  %v426 = vld [vmem:[%s1 + $0xd8] sm:$0xff]
  %v427 = vld [vmem:[%s1 + $0xe0] sm:$0xff]
  %v428 = vld [vmem:[%s1 + $0xe8] sm:$0xff]
  %v429 = vld [vmem:[%s1 + $0xf0] sm:$0xff]
  %v430 = vld [vmem:[%s1 + $0xf8] sm:$0xff]
  %v431 = vld [vmem:[%s1 + $0x100] sm:$0xff]
  %v432 = vld [vmem:[%s1 + $0x108] sm:$0xff]
  %v433 = vld [vmem:[%s1 + $0x110] sm:$0xff]
  %v434 = vld [vmem:[%s1 + $0x118] sm:$0xff]
  %v435 = vld [vmem:[%s1 + $0x120] sm:$0xff]
  %v436 = vld [vmem:[%s1 + $0x128] sm:$0xff]
  %v437 = vld [vmem:[%s1 + $0x130] sm:$0xff]
  %v438 = vld [vmem:[%s1 + $0x138] sm:$0xff]
  %v439 = vld [vmem:[%s1 + $0x140] sm:$0xff]
  %v440 = vld [vmem:[%s1 + $0x148] sm:$0xff]
  %442 = vset.pattern.permute.xlu0 0
  %443 = vperm.xlu0 %442, %v399
  %v444 = vpop.permute.xlu0 %443
  %447 = vset.pattern.permute.xlu0 0
  %448 = vperm.xlu0 %447, %v400
  %v449 = vpop.permute.xlu0 %448
  %452 = vset.pattern.permute.xlu0 0
  %453 = vperm.xlu0 %452, %v401
  %v454 = vpop.permute.xlu0 %453
  %457 = vset.pattern.permute.xlu0 0
  %458 = vperm.xlu0 %457, %v402
  %v459 = vpop.permute.xlu0 %458
  %462 = vset.pattern.permute.xlu0 0
  %463 = vperm.xlu0 %462, %v403
  %v464 = vpop.permute.xlu0 %463
  %467 = vset.pattern.permute.xlu0 0
  %468 = vperm.xlu0 %467, %v404
  %v469 = vpop.permute.xlu0 %468
  %472 = vset.pattern.permute.xlu0 0
  %473 = vperm.xlu0 %472, %v405
  %v474 = vpop.permute.xlu0 %473
  %477 = vset.pattern.permute.xlu0 0
  %478 = vperm.xlu0 %477, %v406
  %v479 = vpop.permute.xlu0 %478
  %482 = vset.pattern.permute.xlu0 0
  %483 = vperm.xlu0 %482, %v407
  %v484 = vpop.permute.xlu0 %483
  %487 = vset.pattern.permute.xlu0 0
  %488 = vperm.xlu0 %487, %v408
  %v489 = vpop.permute.xlu0 %488
  %492 = vset.pattern.permute.xlu0 0
  %493 = vperm.xlu0 %492, %v409
  %v494 = vpop.permute.xlu0 %493
  %497 = vset.pattern.permute.xlu0 0
  %498 = vperm.xlu0 %497, %v410
  %v499 = vpop.permute.xlu0 %498
  %502 = vset.pattern.permute.xlu0 0
  %503 = vperm.xlu0 %502, %v411
  %v504 = vpop.permute.xlu0 %503
  %507 = vset.pattern.permute.xlu0 0
  %508 = vperm.xlu0 %507, %v412
  %v509 = vpop.permute.xlu0 %508
  %512 = vset.pattern.permute.xlu0 0
  %513 = vperm.xlu0 %512, %v413
  %v514 = vpop.permute.xlu0 %513
  %517 = vset.pattern.permute.xlu0 0
  %518 = vperm.xlu0 %517, %v414
  %v519 = vpop.permute.xlu0 %518
  %522 = vset.pattern.permute.xlu0 0
  %523 = vperm.xlu0 %522, %v415
  %v524 = vpop.permute.xlu0 %523
  %527 = vset.pattern.permute.xlu0 0
  %528 = vperm.xlu0 %527, %v416
  %v529 = vpop.permute.xlu0 %528
  %532 = vset.pattern.permute.xlu0 0
  %533 = vperm.xlu0 %532, %v417
  %v534 = vpop.permute.xlu0 %533
  %537 = vset.pattern.permute.xlu0 0
  %538 = vperm.xlu0 %537, %v418
  %v539 = vpop.permute.xlu0 %538
  %542 = vset.pattern.permute.xlu0 0
  %543 = vperm.xlu0 %542, %v419
  %v544 = vpop.permute.xlu0 %543
  %547 = vset.pattern.permute.xlu0 0
  %548 = vperm.xlu0 %547, %v420
  %v549 = vpop.permute.xlu0 %548
  %552 = vset.pattern.permute.xlu0 0
  %553 = vperm.xlu0 %552, %v421
  %v554 = vpop.permute.xlu0 %553
  %557 = vset.pattern.permute.xlu0 0
  %558 = vperm.xlu0 %557, %v422
  %v559 = vpop.permute.xlu0 %558
  %562 = vset.pattern.permute.xlu0 0
  %563 = vperm.xlu0 %562, %v423
  %v564 = vpop.permute.xlu0 %563
  %567 = vset.pattern.permute.xlu0 0
  %568 = vperm.xlu0 %567, %v424
  %v569 = vpop.permute.xlu0 %568
  %572 = vset.pattern.permute.xlu0 0
  %573 = vperm.xlu0 %572, %v425
  %v574 = vpop.permute.xlu0 %573
  %577 = vset.pattern.permute.xlu0 0
  %578 = vperm.xlu0 %577, %v426
  %v579 = vpop.permute.xlu0 %578
  %582 = vset.pattern.permute.xlu0 0
  %583 = vperm.xlu0 %582, %v427
  %v584 = vpop.permute.xlu0 %583
  %587 = vset.pattern.permute.xlu0 0
  %588 = vperm.xlu0 %587, %v428
  %v589 = vpop.permute.xlu0 %588
  %592 = vset.pattern.permute.xlu0 0
  %593 = vperm.xlu0 %592, %v429
  %v594 = vpop.permute.xlu0 %593
  %597 = vset.pattern.permute.xlu0 0
  %598 = vperm.xlu0 %597, %v430
  %v599 = vpop.permute.xlu0 %598
  %602 = vset.pattern.permute.xlu0 0
  %603 = vperm.xlu0 %602, %v431
  %v604 = vpop.permute.xlu0 %603
  %607 = vset.pattern.permute.xlu0 0
  %608 = vperm.xlu0 %607, %v432
  %v609 = vpop.permute.xlu0 %608
  %612 = vset.pattern.permute.xlu0 0
  %613 = vperm.xlu0 %612, %v433
  %v614 = vpop.permute.xlu0 %613
  %617 = vset.pattern.permute.xlu0 0
  %618 = vperm.xlu0 %617, %v434
  %v619 = vpop.permute.xlu0 %618
  %622 = vset.pattern.permute.xlu0 0
  %623 = vperm.xlu0 %622, %v435
  %v624 = vpop.permute.xlu0 %623
  %627 = vset.pattern.permute.xlu0 0
  %628 = vperm.xlu0 %627, %v436
  %v629 = vpop.permute.xlu0 %628
  %632 = vset.pattern.permute.xlu0 0
  %633 = vperm.xlu0 %632, %v437
  %v634 = vpop.permute.xlu0 %633
  %637 = vset.pattern.permute.xlu0 0
  %638 = vperm.xlu0 %637, %v438
  %v639 = vpop.permute.xlu0 %638
  %642 = vset.pattern.permute.xlu0 0
  %643 = vperm.xlu0 %642, %v439
  %v644 = vpop.permute.xlu0 %643
  %647 = vset.pattern.permute.xlu0 0
  %648 = vperm.xlu0 %647, %v440
  %v649 = vpop.permute.xlu0 %648
  %v651 = vmul.f32 %v444, 0.0
  %v652 = vmul.f32 %v449, 0.0
  %v653 = vmul.f32 %v454, 0.0
  %v654 = vmul.f32 %v459, 0.0
  %v655 = vmul.f32 %v464, 0.0
  %v656 = vmul.f32 %v469, 0.0
  %v657 = vmul.f32 %v474, 0.0
  %v658 = vmul.f32 %v479, 0.0
  %v659 = vmul.f32 %v357, %v484
  %v660 = vmul.f32 %v358, %v489
  %v661 = vmul.f32 %v359, %v494
  %v662 = vmul.f32 %v360, %v499
  %v663 = vmul.f32 %v361, %v504
  %v664 = vmul.f32 %v362, %v509
  %v665 = vmul.f32 %v363, %v514
  %v666 = vmul.f32 %v364, %v519
  %v667 = vmul.f32 %v365, %v524
  %v668 = vmul.f32 %v366, %v529
  %v669 = vmul.f32 %v367, %v534
  %v670 = vmul.f32 %v368, %v539
  %v671 = vmul.f32 %v369, %v544
  %v672 = vmul.f32 %v370, %v549
  %v673 = vmul.f32 %v371, %v554
  %v674 = vmul.f32 %v372, %v559
  %v675 = vmul.f32 %v373, %v564
  %v676 = vmul.f32 %v374, %v569
  %v677 = vmul.f32 %v375, %v574
  %v678 = vmul.f32 %v376, %v579
  %v679 = vmul.f32 %v377, %v584
  %v680 = vmul.f32 %v378, %v589
  %v681 = vmul.f32 %v379, %v594
  %v682 = vmul.f32 %v380, %v599
  %v683 = vmul.f32 %v381, %v604
  %v684 = vmul.f32 %v382, %v609
  %v685 = vmul.f32 %v383, %v614
  %v686 = vmul.f32 %v384, %v619
  %v687 = vmul.f32 %v385, %v624
  %v688 = vmul.f32 %v386, %v629
  %v689 = vmul.f32 %v387, %v634
  %v690 = vmul.f32 %v388, %v639
  %v691 = vmul.f32 %v389, %v644
  %v692 = vmul.f32 %v390, %v649
  %v693 = vld [vmem:[%s4] sm:$0xff]
  %v694 = vld [vmem:[%s4 + $0x8] sm:$0xff]
  %v695 = vld [vmem:[%s4 + $0x10] sm:$0xff]
  %v696 = vld [vmem:[%s4 + $0x18] sm:$0xff]
  %697 = vset.pattern.permute.xlu0 1
  %698 = vperm.xlu0 %697, %v399
  %v699 = vpop.permute.xlu0 %698
  %701 = vset.pattern.permute.xlu0 1
  %702 = vperm.xlu0 %701, %v400
  %v703 = vpop.permute.xlu0 %702
  %705 = vset.pattern.permute.xlu0 1
  %706 = vperm.xlu0 %705, %v401
  %v707 = vpop.permute.xlu0 %706
  %709 = vset.pattern.permute.xlu0 1
  %710 = vperm.xlu0 %709, %v402
  %v711 = vpop.permute.xlu0 %710
  %713 = vset.pattern.permute.xlu0 1
  %714 = vperm.xlu0 %713, %v403
  %v715 = vpop.permute.xlu0 %714
  %717 = vset.pattern.permute.xlu0 1
  %718 = vperm.xlu0 %717, %v404
  %v719 = vpop.permute.xlu0 %718
  %721 = vset.pattern.permute.xlu0 1
  %722 = vperm.xlu0 %721, %v405
  %v723 = vpop.permute.xlu0 %722
  %725 = vset.pattern.permute.xlu0 1
  %726 = vperm.xlu0 %725, %v406
  %v727 = vpop.permute.xlu0 %726
  %729 = vset.pattern.permute.xlu0 1
  %730 = vperm.xlu0 %729, %v407
  %v731 = vpop.permute.xlu0 %730
  %733 = vset.pattern.permute.xlu0 1
  %734 = vperm.xlu0 %733, %v408
  %v735 = vpop.permute.xlu0 %734
  %737 = vset.pattern.permute.xlu0 1
  %738 = vperm.xlu0 %737, %v409
  %v739 = vpop.permute.xlu0 %738
  %741 = vset.pattern.permute.xlu0 1
  %742 = vperm.xlu0 %741, %v410
  %v743 = vpop.permute.xlu0 %742
  %745 = vset.pattern.permute.xlu0 1
  %746 = vperm.xlu0 %745, %v411
  %v747 = vpop.permute.xlu0 %746
  %749 = vset.pattern.permute.xlu0 1
  %750 = vperm.xlu0 %749, %v412
  %v751 = vpop.permute.xlu0 %750
  %753 = vset.pattern.permute.xlu0 1
  %754 = vperm.xlu0 %753, %v413
  %v755 = vpop.permute.xlu0 %754
  %757 = vset.pattern.permute.xlu0 1
  %758 = vperm.xlu0 %757, %v414
  %v759 = vpop.permute.xlu0 %758
  %761 = vset.pattern.permute.xlu0 1
  %762 = vperm.xlu0 %761, %v415
  %v763 = vpop.permute.xlu0 %762
  %765 = vset.pattern.permute.xlu0 1
  %766 = vperm.xlu0 %765, %v416
  %v767 = vpop.permute.xlu0 %766
  %769 = vset.pattern.permute.xlu0 1
  %770 = vperm.xlu0 %769, %v417
  %v771 = vpop.permute.xlu0 %770
  %773 = vset.pattern.permute.xlu0 1
  %774 = vperm.xlu0 %773, %v418
  %v775 = vpop.permute.xlu0 %774
  %777 = vset.pattern.permute.xlu0 1
  %778 = vperm.xlu0 %777, %v419
  %v779 = vpop.permute.xlu0 %778
  %781 = vset.pattern.permute.xlu0 1
  %782 = vperm.xlu0 %781, %v420
  %v783 = vpop.permute.xlu0 %782
  %785 = vset.pattern.permute.xlu0 1
  %786 = vperm.xlu0 %785, %v421
  %v787 = vpop.permute.xlu0 %786
  %789 = vset.pattern.permute.xlu0 1
  %790 = vperm.xlu0 %789, %v422
  %v791 = vpop.permute.xlu0 %790
  %793 = vset.pattern.permute.xlu0 1
  %794 = vperm.xlu0 %793, %v423
  %v795 = vpop.permute.xlu0 %794
  %797 = vset.pattern.permute.xlu0 1
  %798 = vperm.xlu0 %797, %v424
  %v799 = vpop.permute.xlu0 %798
  %801 = vset.pattern.permute.xlu0 1
  %802 = vperm.xlu0 %801, %v425
  %v803 = vpop.permute.xlu0 %802
  %805 = vset.pattern.permute.xlu0 1
  %806 = vperm.xlu0 %805, %v426
  %v807 = vpop.permute.xlu0 %806
  %809 = vset.pattern.permute.xlu0 1
  %810 = vperm.xlu0 %809, %v427
  %v811 = vpop.permute.xlu0 %810
  %813 = vset.pattern.permute.xlu0 1
  %814 = vperm.xlu0 %813, %v428
  %v815 = vpop.permute.xlu0 %814
  %817 = vset.pattern.permute.xlu0 1
  %818 = vperm.xlu0 %817, %v429
  %v819 = vpop.permute.xlu0 %818
  %821 = vset.pattern.permute.xlu0 1
  %822 = vperm.xlu0 %821, %v430
  %v823 = vpop.permute.xlu0 %822
  %825 = vset.pattern.permute.xlu0 1
  %826 = vperm.xlu0 %825, %v431
  %v827 = vpop.permute.xlu0 %826
  %829 = vset.pattern.permute.xlu0 1
  %830 = vperm.xlu0 %829, %v432
  %v831 = vpop.permute.xlu0 %830
  %833 = vset.pattern.permute.xlu0 1
  %834 = vperm.xlu0 %833, %v433
  %v835 = vpop.permute.xlu0 %834
  %837 = vset.pattern.permute.xlu0 1
  %838 = vperm.xlu0 %837, %v434
  %v839 = vpop.permute.xlu0 %838
  %841 = vset.pattern.permute.xlu0 1
  %842 = vperm.xlu0 %841, %v435
  %v843 = vpop.permute.xlu0 %842
  %845 = vset.pattern.permute.xlu0 1
  %846 = vperm.xlu0 %845, %v436
  %v847 = vpop.permute.xlu0 %846
  %849 = vset.pattern.permute.xlu0 1
  %850 = vperm.xlu0 %849, %v437
  %v851 = vpop.permute.xlu0 %850
  %853 = vset.pattern.permute.xlu0 1
  %854 = vperm.xlu0 %853, %v438
  %v855 = vpop.permute.xlu0 %854
  %857 = vset.pattern.permute.xlu0 1
  %858 = vperm.xlu0 %857, %v439
  %v859 = vpop.permute.xlu0 %858
  %861 = vset.pattern.permute.xlu0 1
  %862 = vperm.xlu0 %861, %v440
  %v863 = vpop.permute.xlu0 %862
  %v865 = vmul.f32 %v699, 0.0
  %v866 = vmul.f32 %v703, 0.0
  %v867 = vmul.f32 %v707, 0.0
  %v868 = vmul.f32 %v711, 0.0
  %v869 = vmul.f32 %v715, 0.0
  %v870 = vmul.f32 %v719, 0.0
  %v871 = vmul.f32 %v723, 0.0
  %v872 = vmul.f32 %v357, %v727
  %v873 = vmul.f32 %v358, %v731
  %v874 = vmul.f32 %v359, %v735
  %v875 = vmul.f32 %v360, %v739
  %v876 = vmul.f32 %v361, %v743
  %v877 = vmul.f32 %v362, %v747
  %v878 = vmul.f32 %v363, %v751
  %v879 = vmul.f32 %v364, %v755
  %v880 = vmul.f32 %v365, %v759
  %v881 = vmul.f32 %v366, %v763
  %v882 = vmul.f32 %v367, %v767
  %v883 = vmul.f32 %v368, %v771
  %v884 = vmul.f32 %v369, %v775
  %v885 = vmul.f32 %v370, %v779
  %v886 = vmul.f32 %v371, %v783
  %v887 = vmul.f32 %v372, %v787
  %v888 = vmul.f32 %v373, %v791
  %v889 = vmul.f32 %v374, %v795
  %v890 = vmul.f32 %v375, %v799
  %v891 = vmul.f32 %v376, %v803
  %v892 = vmul.f32 %v377, %v807
  %v893 = vmul.f32 %v378, %v811
  %v894 = vmul.f32 %v379, %v815
  %v895 = vmul.f32 %v380, %v819
  %v896 = vmul.f32 %v381, %v823
  %v897 = vmul.f32 %v382, %v827
  %v898 = vmul.f32 %v383, %v831
  %v899 = vmul.f32 %v384, %v835
  %v900 = vmul.f32 %v385, %v839
  %v901 = vmul.f32 %v386, %v843
  %v902 = vmul.f32 %v387, %v847
  %v903 = vmul.f32 %v388, %v851
  %v904 = vmul.f32 %v389, %v855
  %v905 = vmul.f32 %v390, %v859
  %v906 = vmul.f32 %v391, %v863
  %v907 = vld [vmem:[%s4 + $0x20] sm:$0xff]
  %v908 = vld [vmem:[%s4 + $0x28] sm:$0xff]
  %v909 = vld [vmem:[%s4 + $0x30] sm:$0xff]
  %v910 = vld [vmem:[%s4 + $0x38] sm:$0xff]
  %vm911 = vcmask 261120
  %v913 = vsel %vm911, %v865, 0
  %v916 = vsel %vm911, %v866, 0
  %v919 = vsel %vm911, %v867, 0
  %v922 = vsel %vm911, %v868, 0
  %v925 = vsel %vm911, %v869, 0
  %v928 = vsel %vm911, %v870, 0
  %v931 = vsel %vm911, %v871, 0
  %v934 = vsel %vm911, %v872, 0
  %v937 = vsel %vm911, %v873, 0
  %v940 = vsel %vm911, %v874, 0
  %v943 = vsel %vm911, %v875, 0
  %v946 = vsel %vm911, %v876, 0
  %v949 = vsel %vm911, %v877, 0
  %v952 = vsel %vm911, %v878, 0
  %v955 = vsel %vm911, %v879, 0
  %v958 = vsel %vm911, %v880, 0
  %v961 = vsel %vm911, %v881, 0
  %v964 = vsel %vm911, %v882, 0
  %v967 = vsel %vm911, %v883, 0
  %v970 = vsel %vm911, %v884, 0
  %v973 = vsel %vm911, %v885, 0
  %v976 = vsel %vm911, %v886, 0
  %v979 = vsel %vm911, %v887, 0
  %v982 = vsel %vm911, %v888, 0
  %v985 = vsel %vm911, %v889, 0
  %v988 = vsel %vm911, %v890, 0
  %v991 = vsel %vm911, %v891, 0
  %v994 = vsel %vm911, %v892, 0
  %v997 = vsel %vm911, %v893, 0
  %v1000 = vsel %vm911, %v894, 0
  %v1003 = vsel %vm911, %v895, 0
  %v1006 = vsel %vm911, %v896, 0
  %v1009 = vsel %vm911, %v897, 0
  %v1012 = vsel %vm911, %v898, 0
  %v1015 = vsel %vm911, %v899, 0
  %v1018 = vsel %vm911, %v900, 0
  %v1021 = vsel %vm911, %v901, 0
  %v1024 = vsel %vm911, %v902, 0
  %v1027 = vsel %vm911, %v903, 0
  %v1030 = vsel %vm911, %v904, 0
  %v1033 = vsel %vm911, %v905, 0
  %v1036 = vsel %vm911, %v906, 0
  %1038 = vmatpush.msra.mxu0 0.0
  %1039 = vmatpush.msra.mxu0 0.0
  %1040 = vmatpush.msra.mxu0 0.0
  %1041 = vmatpush.msra.mxu0 0.0
  %1042 = vmatpush.msra.mxu0 0.0
  %1043 = vmatpush.msra.mxu0 0.0
  %1044 = vmatpush.msra.mxu0 0.0
  %1045 = vmatpush.msra.mxu0 0.0
  %1046 = vmatpush.msra.mxu0 0.0
  %1047 = vmatpush.msra.mxu0 0.0
  %1048 = vmatpush.msra.mxu0 0.0
  %1049 = vmatpush.msra.mxu0 0.0
  %1050 = vmatpush.msra.mxu0 %v910
  %1051 = vmatpush.msra.mxu0 %v909
  %1052 = vmatpush.msra.mxu0 %v908
  %1053 = vmatpush.msra.mxu0 %v907
  %1054 = vmatmul.f32.gmra.mxu0 %v913
  %v1055 = vpop.f32.mrf.mxu0
  %v1056 = vadd.f32 0.0, %v1055
  %1057 = vmatmul.f32.gmra.mxu0 %v916
  %v1058 = vpop.f32.mrf.mxu0
  %v1059 = vadd.f32 0.0, %v1058
  %1060 = vmatmul.f32.gmra.mxu0 %v919
  %v1061 = vpop.f32.mrf.mxu0
  %v1062 = vadd.f32 0.0, %v1061
  %1063 = vmatmul.f32.gmra.mxu0 %v922
  %v1064 = vpop.f32.mrf.mxu0
  %v1065 = vadd.f32 0.0, %v1064
  %1066 = vmatmul.f32.gmra.mxu0 %v925
  %v1067 = vpop.f32.mrf.mxu0
  %v1068 = vadd.f32 0.0, %v1067
  %1069 = vmatmul.f32.gmra.mxu0 %v928
  %v1070 = vpop.f32.mrf.mxu0
  %v1071 = vadd.f32 0.0, %v1070
  %1072 = vmatmul.f32.gmra.mxu0 %v931
  %v1073 = vpop.f32.mrf.mxu0
  %v1074 = vadd.f32 0.0, %v1073
  %1075 = vmatmul.f32.gmra.mxu0 %v934
  %v1076 = vpop.f32.mrf.mxu0
  %v1077 = vadd.f32 0.0, %v1076
  %1078 = vmatmul.f32.gmra.mxu0 %v937
  %v1079 = vpop.f32.mrf.mxu0
  %v1080 = vadd.f32 0.0, %v1079
  %1081 = vmatmul.f32.gmra.mxu0 %v940
  %v1082 = vpop.f32.mrf.mxu0
  %v1083 = vadd.f32 0.0, %v1082
  %1084 = vmatmul.f32.gmra.mxu0 %v943
  %v1085 = vpop.f32.mrf.mxu0
  %v1086 = vadd.f32 0.0, %v1085
  %1087 = vmatmul.f32.gmra.mxu0 %v946
  %v1088 = vpop.f32.mrf.mxu0
  %v1089 = vadd.f32 0.0, %v1088
  %1090 = vmatmul.f32.gmra.mxu0 %v949
  %v1091 = vpop.f32.mrf.mxu0
  %v1092 = vadd.f32 0.0, %v1091
  %1093 = vmatmul.f32.gmra.mxu0 %v952
  %v1094 = vpop.f32.mrf.mxu0
  %v1095 = vadd.f32 0.0, %v1094
  %1096 = vmatmul.f32.gmra.mxu0 %v955
  %v1097 = vpop.f32.mrf.mxu0
  %v1098 = vadd.f32 0.0, %v1097
  %1099 = vmatmul.f32.gmra.mxu0 %v958
  %v1100 = vpop.f32.mrf.mxu0
  %v1101 = vadd.f32 0.0, %v1100
  %1102 = vmatmul.f32.gmra.mxu0 %v961
  %v1103 = vpop.f32.mrf.mxu0
  %v1104 = vadd.f32 0.0, %v1103
  %1105 = vmatmul.f32.gmra.mxu0 %v964
  %v1106 = vpop.f32.mrf.mxu0
  %v1107 = vadd.f32 0.0, %v1106
  %1108 = vmatmul.f32.gmra.mxu0 %v967
  %v1109 = vpop.f32.mrf.mxu0
  %v1110 = vadd.f32 0.0, %v1109
  %1111 = vmatmul.f32.gmra.mxu0 %v970
  %v1112 = vpop.f32.mrf.mxu0
  %v1113 = vadd.f32 0.0, %v1112
  %1114 = vmatmul.f32.gmra.mxu0 %v973
  %v1115 = vpop.f32.mrf.mxu0
  %v1116 = vadd.f32 0.0, %v1115
  %1117 = vmatmul.f32.gmra.mxu0 %v976
  %v1118 = vpop.f32.mrf.mxu0
  %v1119 = vadd.f32 0.0, %v1118
  %1120 = vmatmul.f32.gmra.mxu0 %v979
  %v1121 = vpop.f32.mrf.mxu0
  %v1122 = vadd.f32 0.0, %v1121
  %1123 = vmatmul.f32.gmra.mxu0 %v982
  %v1124 = vpop.f32.mrf.mxu0
  %v1125 = vadd.f32 0.0, %v1124
  %1126 = vmatmul.f32.gmra.mxu0 %v985
  %v1127 = vpop.f32.mrf.mxu0
  %v1128 = vadd.f32 0.0, %v1127
  %1129 = vmatmul.f32.gmra.mxu0 %v988
  %v1130 = vpop.f32.mrf.mxu0
  %v1131 = vadd.f32 0.0, %v1130
  %1132 = vmatmul.f32.gmra.mxu0 %v991
  %v1133 = vpop.f32.mrf.mxu0
  %v1134 = vadd.f32 0.0, %v1133
  %1135 = vmatmul.f32.gmra.mxu0 %v994
  %v1136 = vpop.f32.mrf.mxu0
  %v1137 = vadd.f32 0.0, %v1136
  %1138 = vmatmul.f32.gmra.mxu0 %v997
  %v1139 = vpop.f32.mrf.mxu0
  %v1140 = vadd.f32 0.0, %v1139
  %1141 = vmatmul.f32.gmra.mxu0 %v1000
  %v1142 = vpop.f32.mrf.mxu0
  %v1143 = vadd.f32 0.0, %v1142
  %1144 = vmatmul.f32.gmra.mxu0 %v1003
  %v1145 = vpop.f32.mrf.mxu0
  %v1146 = vadd.f32 0.0, %v1145
  %1147 = vmatmul.f32.gmra.mxu0 %v1006
  %v1148 = vpop.f32.mrf.mxu0
  %v1149 = vadd.f32 0.0, %v1148
  %1150 = vmatmul.f32.gmra.mxu0 %v1009
  %v1151 = vpop.f32.mrf.mxu0
  %v1152 = vadd.f32 0.0, %v1151
  %1153 = vmatmul.f32.gmra.mxu0 %v1012
  %v1154 = vpop.f32.mrf.mxu0
  %v1155 = vadd.f32 0.0, %v1154
  %1156 = vmatmul.f32.gmra.mxu0 %v1015
  %v1157 = vpop.f32.mrf.mxu0
  %v1158 = vadd.f32 0.0, %v1157
  %1159 = vmatmul.f32.gmra.mxu0 %v1018
  %v1160 = vpop.f32.mrf.mxu0
  %v1161 = vadd.f32 0.0, %v1160
  %1162 = vmatmul.f32.gmra.mxu0 %v1021
  %v1163 = vpop.f32.mrf.mxu0
  %v1164 = vadd.f32 0.0, %v1163
  %1165 = vmatmul.f32.gmra.mxu0 %v1024
  %v1166 = vpop.f32.mrf.mxu0
  %v1167 = vadd.f32 0.0, %v1166
  %1168 = vmatmul.f32.gmra.mxu0 %v1027
  %v1169 = vpop.f32.mrf.mxu0
  %v1170 = vadd.f32 0.0, %v1169
  %1171 = vmatmul.f32.gmra.mxu0 %v1030
  %v1172 = vpop.f32.mrf.mxu0
  %v1173 = vadd.f32 0.0, %v1172
  %1174 = vmatmul.f32.gmra.mxu0 %v1033
  %v1175 = vpop.f32.mrf.mxu0
  %v1176 = vadd.f32 0.0, %v1175
  %1177 = vmatmul.f32.gmra.mxu0 %v1036
  %v1178 = vpop.f32.mrf.mxu0
  %v1179 = vadd.f32 0.0, %v1178
  %1180 = vdwg.mxu0
  %v1182 = vsel %vm911, %v651, 0
  %v1185 = vsel %vm911, %v652, 0
  %v1188 = vsel %vm911, %v653, 0
  %v1191 = vsel %vm911, %v654, 0
  %v1194 = vsel %vm911, %v655, 0
  %v1197 = vsel %vm911, %v656, 0
  %v1200 = vsel %vm911, %v657, 0
  %v1203 = vsel %vm911, %v658, 0
  %v1206 = vsel %vm911, %v659, 0
  %v1209 = vsel %vm911, %v660, 0
  %v1212 = vsel %vm911, %v661, 0
  %v1215 = vsel %vm911, %v662, 0
  %v1218 = vsel %vm911, %v663, 0
  %v1221 = vsel %vm911, %v664, 0
  %v1224 = vsel %vm911, %v665, 0
  %v1227 = vsel %vm911, %v666, 0
  %v1230 = vsel %vm911, %v667, 0
  %v1233 = vsel %vm911, %v668, 0
  %v1236 = vsel %vm911, %v669, 0
  %v1239 = vsel %vm911, %v670, 0
  %v1242 = vsel %vm911, %v671, 0
  %v1245 = vsel %vm911, %v672, 0
  %v1248 = vsel %vm911, %v673, 0
  %v1251 = vsel %vm911, %v674, 0
  %v1254 = vsel %vm911, %v675, 0
  %v1257 = vsel %vm911, %v676, 0
  %v1260 = vsel %vm911, %v677, 0
  %v1263 = vsel %vm911, %v678, 0
  %v1266 = vsel %vm911, %v679, 0
  %v1269 = vsel %vm911, %v680, 0
  %v1272 = vsel %vm911, %v681, 0
  %v1275 = vsel %vm911, %v682, 0
  %v1278 = vsel %vm911, %v683, 0
  %v1281 = vsel %vm911, %v684, 0
  %v1284 = vsel %vm911, %v685, 0
  %v1287 = vsel %vm911, %v686, 0
  %v1290 = vsel %vm911, %v687, 0
  %v1293 = vsel %vm911, %v688, 0
  %v1296 = vsel %vm911, %v689, 0
  %v1299 = vsel %vm911, %v690, 0
  %v1302 = vsel %vm911, %v691, 0
  %v1305 = vsel %vm911, %v692, 0
  %1307 = vmatpush.msra.mxu0 0.0
  %1308 = vmatpush.msra.mxu0 0.0
  %1309 = vmatpush.msra.mxu0 0.0
  %1310 = vmatpush.msra.mxu0 0.0
  %1311 = vmatpush.msra.mxu0 0.0
  %1312 = vmatpush.msra.mxu0 0.0
  %1313 = vmatpush.msra.mxu0 0.0
  %1314 = vmatpush.msra.mxu0 0.0
  %1315 = vmatpush.msra.mxu0 0.0
  %1316 = vmatpush.msra.mxu0 0.0
  %1317 = vmatpush.msra.mxu0 0.0
  %1318 = vmatpush.msra.mxu0 0.0
  %1319 = vmatpush.msra.mxu0 %v696
  %1320 = vmatpush.msra.mxu0 %v695
  %1321 = vmatpush.msra.mxu0 %v694
  %1322 = vmatpush.msra.mxu0 %v693
  %1323 = vmatmul.f32.gmra.mxu0 %v1182
  %v1324 = vpop.f32.mrf.mxu0
  %v1325 = vadd.f32 %v1056, %v1324
  %1326 = vmatmul.f32.gmra.mxu0 %v1185
  %v1327 = vpop.f32.mrf.mxu0
  %v1328 = vadd.f32 %v1059, %v1327
  %1329 = vmatmul.f32.gmra.mxu0 %v1188
  %v1330 = vpop.f32.mrf.mxu0
  %v1331 = vadd.f32 %v1062, %v1330
  %1332 = vmatmul.f32.gmra.mxu0 %v1191
  %v1333 = vpop.f32.mrf.mxu0
  %v1334 = vadd.f32 %v1065, %v1333
  %1335 = vmatmul.f32.gmra.mxu0 %v1194
  %v1336 = vpop.f32.mrf.mxu0
  %v1337 = vadd.f32 %v1068, %v1336
  %1338 = vmatmul.f32.gmra.mxu0 %v1197
  %v1339 = vpop.f32.mrf.mxu0
  %v1340 = vadd.f32 %v1071, %v1339
  %1341 = vmatmul.f32.gmra.mxu0 %v1200
  %v1342 = vpop.f32.mrf.mxu0
  %v1343 = vadd.f32 %v1074, %v1342
  %1344 = vmatmul.f32.gmra.mxu0 %v1203
  %v1345 = vpop.f32.mrf.mxu0
  %v1346 = vadd.f32 %v1077, %v1345
  %1347 = vmatmul.f32.gmra.mxu0 %v1206
  %v1348 = vpop.f32.mrf.mxu0
  %v1349 = vadd.f32 %v1080, %v1348
  %1350 = vmatmul.f32.gmra.mxu0 %v1209
  %v1351 = vpop.f32.mrf.mxu0
  %v1352 = vadd.f32 %v1083, %v1351
  %1353 = vmatmul.f32.gmra.mxu0 %v1212
  %v1354 = vpop.f32.mrf.mxu0
  %v1355 = vadd.f32 %v1086, %v1354
  %1356 = vmatmul.f32.gmra.mxu0 %v1215
  %v1357 = vpop.f32.mrf.mxu0
  %v1358 = vadd.f32 %v1089, %v1357
  %1359 = vmatmul.f32.gmra.mxu0 %v1218
  %v1360 = vpop.f32.mrf.mxu0
  %v1361 = vadd.f32 %v1092, %v1360
  %1362 = vmatmul.f32.gmra.mxu0 %v1221
  %v1363 = vpop.f32.mrf.mxu0
  %v1364 = vadd.f32 %v1095, %v1363
  %1365 = vmatmul.f32.gmra.mxu0 %v1224
  %v1366 = vpop.f32.mrf.mxu0
  %v1367 = vadd.f32 %v1098, %v1366
  %1368 = vmatmul.f32.gmra.mxu0 %v1227
  %v1369 = vpop.f32.mrf.mxu0
  %v1370 = vadd.f32 %v1101, %v1369
  %1371 = vmatmul.f32.gmra.mxu0 %v1230
  %v1372 = vpop.f32.mrf.mxu0
  %v1373 = vadd.f32 %v1104, %v1372
  %1374 = vmatmul.f32.gmra.mxu0 %v1233
  %v1375 = vpop.f32.mrf.mxu0
  %v1376 = vadd.f32 %v1107, %v1375
  %1377 = vmatmul.f32.gmra.mxu0 %v1236
  %v1378 = vpop.f32.mrf.mxu0
  %v1379 = vadd.f32 %v1110, %v1378
  %1380 = vmatmul.f32.gmra.mxu0 %v1239
  %v1381 = vpop.f32.mrf.mxu0
  %v1382 = vadd.f32 %v1113, %v1381
  %1383 = vmatmul.f32.gmra.mxu0 %v1242
  %v1384 = vpop.f32.mrf.mxu0
  %v1385 = vadd.f32 %v1116, %v1384
  %1386 = vmatmul.f32.gmra.mxu0 %v1245
  %v1387 = vpop.f32.mrf.mxu0
  %v1388 = vadd.f32 %v1119, %v1387
  %1389 = vmatmul.f32.gmra.mxu0 %v1248
  %v1390 = vpop.f32.mrf.mxu0
  %v1391 = vadd.f32 %v1122, %v1390
  %1392 = vmatmul.f32.gmra.mxu0 %v1251
  %v1393 = vpop.f32.mrf.mxu0
  %v1394 = vadd.f32 %v1125, %v1393
  %1395 = vmatmul.f32.gmra.mxu0 %v1254
  %v1396 = vpop.f32.mrf.mxu0
  %v1397 = vadd.f32 %v1128, %v1396
  %1398 = vmatmul.f32.gmra.mxu0 %v1257
  %v1399 = vpop.f32.mrf.mxu0
  %v1400 = vadd.f32 %v1131, %v1399
  %1401 = vmatmul.f32.gmra.mxu0 %v1260
  %v1402 = vpop.f32.mrf.mxu0
  %v1403 = vadd.f32 %v1134, %v1402
  %1404 = vmatmul.f32.gmra.mxu0 %v1263
  %v1405 = vpop.f32.mrf.mxu0
  %v1406 = vadd.f32 %v1137, %v1405
  %1407 = vmatmul.f32.gmra.mxu0 %v1266
  %v1408 = vpop.f32.mrf.mxu0
  %v1409 = vadd.f32 %v1140, %v1408
  %1410 = vmatmul.f32.gmra.mxu0 %v1269
  %v1411 = vpop.f32.mrf.mxu0
  %v1412 = vadd.f32 %v1143, %v1411
  %1413 = vmatmul.f32.gmra.mxu0 %v1272
  %v1414 = vpop.f32.mrf.mxu0
  %v1415 = vadd.f32 %v1146, %v1414
  %1416 = vmatmul.f32.gmra.mxu0 %v1275
  %v1417 = vpop.f32.mrf.mxu0
  %v1418 = vadd.f32 %v1149, %v1417
  %1419 = vmatmul.f32.gmra.mxu0 %v1278
  %v1420 = vpop.f32.mrf.mxu0
  %v1421 = vadd.f32 %v1152, %v1420
  %1422 = vmatmul.f32.gmra.mxu0 %v1281
  %v1423 = vpop.f32.mrf.mxu0
  %v1424 = vadd.f32 %v1155, %v1423
  %1425 = vmatmul.f32.gmra.mxu0 %v1284
  %v1426 = vpop.f32.mrf.mxu0
  %v1427 = vadd.f32 %v1158, %v1426
  %1428 = vmatmul.f32.gmra.mxu0 %v1287
  %v1429 = vpop.f32.mrf.mxu0
  %v1430 = vadd.f32 %v1161, %v1429
  %1431 = vmatmul.f32.gmra.mxu0 %v1290
  %v1432 = vpop.f32.mrf.mxu0
  %v1433 = vadd.f32 %v1164, %v1432
  %1434 = vmatmul.f32.gmra.mxu0 %v1293
  %v1435 = vpop.f32.mrf.mxu0
  %v1436 = vadd.f32 %v1167, %v1435
  %1437 = vmatmul.f32.gmra.mxu0 %v1296
  %v1438 = vpop.f32.mrf.mxu0
  %v1439 = vadd.f32 %v1170, %v1438
  %1440 = vmatmul.f32.gmra.mxu0 %v1299
  %v1441 = vpop.f32.mrf.mxu0
  %v1442 = vadd.f32 %v1173, %v1441
  %1443 = vmatmul.f32.gmra.mxu0 %v1302
  %v1444 = vpop.f32.mrf.mxu0
  %v1445 = vadd.f32 %v1176, %v1444
  %1446 = vmatmul.f32.gmra.mxu0 %v1305
  %v1447 = vpop.f32.mrf.mxu0
  %v1448 = vadd.f32 %v1179, %v1447
  %1449 = vdwg.mxu0
  %1450 = vset.pattern.permute.xlu0 2
  %1451 = vperm.xlu0 %1450, %v399
  %v1452 = vpop.permute.xlu0 %1451
  %1454 = vset.pattern.permute.xlu0 2
  %1455 = vperm.xlu0 %1454, %v400
  %v1456 = vpop.permute.xlu0 %1455
  %1458 = vset.pattern.permute.xlu0 2
  %1459 = vperm.xlu0 %1458, %v401
  %v1460 = vpop.permute.xlu0 %1459
  %1462 = vset.pattern.permute.xlu0 2
  %1463 = vperm.xlu0 %1462, %v402
  %v1464 = vpop.permute.xlu0 %1463
  %1466 = vset.pattern.permute.xlu0 2
  %1467 = vperm.xlu0 %1466, %v403
  %v1468 = vpop.permute.xlu0 %1467
  %1470 = vset.pattern.permute.xlu0 2
  %1471 = vperm.xlu0 %1470, %v404
  %v1472 = vpop.permute.xlu0 %1471
  %1474 = vset.pattern.permute.xlu0 2
  %1475 = vperm.xlu0 %1474, %v405
  %v1476 = vpop.permute.xlu0 %1475
  %1478 = vset.pattern.permute.xlu0 2
  %1479 = vperm.xlu0 %1478, %v406
  %v1480 = vpop.permute.xlu0 %1479
  %1482 = vset.pattern.permute.xlu0 2
  %1483 = vperm.xlu0 %1482, %v407
  %v1484 = vpop.permute.xlu0 %1483
  %1486 = vset.pattern.permute.xlu0 2
  %1487 = vperm.xlu0 %1486, %v408
  %v1488 = vpop.permute.xlu0 %1487
  %1490 = vset.pattern.permute.xlu0 2
  %1491 = vperm.xlu0 %1490, %v409
  %v1492 = vpop.permute.xlu0 %1491
  %1494 = vset.pattern.permute.xlu0 2
  %1495 = vperm.xlu0 %1494, %v410
  %v1496 = vpop.permute.xlu0 %1495
  %1498 = vset.pattern.permute.xlu0 2
  %1499 = vperm.xlu0 %1498, %v411
  %v1500 = vpop.permute.xlu0 %1499
  %1502 = vset.pattern.permute.xlu0 2
  %1503 = vperm.xlu0 %1502, %v412
  %v1504 = vpop.permute.xlu0 %1503
  %1506 = vset.pattern.permute.xlu0 2
  %1507 = vperm.xlu0 %1506, %v413
  %v1508 = vpop.permute.xlu0 %1507
  %1510 = vset.pattern.permute.xlu0 2
  %1511 = vperm.xlu0 %1510, %v414
  %v1512 = vpop.permute.xlu0 %1511
  %1514 = vset.pattern.permute.xlu0 2
  %1515 = vperm.xlu0 %1514, %v415
  %v1516 = vpop.permute.xlu0 %1515
  %1518 = vset.pattern.permute.xlu0 2
  %1519 = vperm.xlu0 %1518, %v416
  %v1520 = vpop.permute.xlu0 %1519
  %1522 = vset.pattern.permute.xlu0 2
  %1523 = vperm.xlu0 %1522, %v417
  %v1524 = vpop.permute.xlu0 %1523
  %1526 = vset.pattern.permute.xlu0 2
  %1527 = vperm.xlu0 %1526, %v418
  %v1528 = vpop.permute.xlu0 %1527
  %1530 = vset.pattern.permute.xlu0 2
  %1531 = vperm.xlu0 %1530, %v419
  %v1532 = vpop.permute.xlu0 %1531
  %1534 = vset.pattern.permute.xlu0 2
  %1535 = vperm.xlu0 %1534, %v420
  %v1536 = vpop.permute.xlu0 %1535
  %1538 = vset.pattern.permute.xlu0 2
  %1539 = vperm.xlu0 %1538, %v421
  %v1540 = vpop.permute.xlu0 %1539
  %1542 = vset.pattern.permute.xlu0 2
  %1543 = vperm.xlu0 %1542, %v422
  %v1544 = vpop.permute.xlu0 %1543
  %1546 = vset.pattern.permute.xlu0 2
  %1547 = vperm.xlu0 %1546, %v423
  %v1548 = vpop.permute.xlu0 %1547
  %1550 = vset.pattern.permute.xlu0 2
  %1551 = vperm.xlu0 %1550, %v424
  %v1552 = vpop.permute.xlu0 %1551
  %1554 = vset.pattern.permute.xlu0 2
  %1555 = vperm.xlu0 %1554, %v425
  %v1556 = vpop.permute.xlu0 %1555
  %1558 = vset.pattern.permute.xlu0 2
  %1559 = vperm.xlu0 %1558, %v426
  %v1560 = vpop.permute.xlu0 %1559
  %1562 = vset.pattern.permute.xlu0 2
  %1563 = vperm.xlu0 %1562, %v427
  %v1564 = vpop.permute.xlu0 %1563
  %1566 = vset.pattern.permute.xlu0 2
  %1567 = vperm.xlu0 %1566, %v428
  %v1568 = vpop.permute.xlu0 %1567
  %1570 = vset.pattern.permute.xlu0 2
  %1571 = vperm.xlu0 %1570, %v429
  %v1572 = vpop.permute.xlu0 %1571
  %1574 = vset.pattern.permute.xlu0 2
  %1575 = vperm.xlu0 %1574, %v430
  %v1576 = vpop.permute.xlu0 %1575
  %1578 = vset.pattern.permute.xlu0 2
  %1579 = vperm.xlu0 %1578, %v431
  %v1580 = vpop.permute.xlu0 %1579
  %1582 = vset.pattern.permute.xlu0 2
  %1583 = vperm.xlu0 %1582, %v432
  %v1584 = vpop.permute.xlu0 %1583
  %1586 = vset.pattern.permute.xlu0 2
  %1587 = vperm.xlu0 %1586, %v433
  %v1588 = vpop.permute.xlu0 %1587
  %1590 = vset.pattern.permute.xlu0 2
  %1591 = vperm.xlu0 %1590, %v434
  %v1592 = vpop.permute.xlu0 %1591
  %1594 = vset.pattern.permute.xlu0 2
  %1595 = vperm.xlu0 %1594, %v435
  %v1596 = vpop.permute.xlu0 %1595
  %1598 = vset.pattern.permute.xlu0 2
  %1599 = vperm.xlu0 %1598, %v436
  %v1600 = vpop.permute.xlu0 %1599
  %1602 = vset.pattern.permute.xlu0 2
  %1603 = vperm.xlu0 %1602, %v437
  %v1604 = vpop.permute.xlu0 %1603
  %1606 = vset.pattern.permute.xlu0 2
  %1607 = vperm.xlu0 %1606, %v438
  %v1608 = vpop.permute.xlu0 %1607
  %1610 = vset.pattern.permute.xlu0 2
  %1611 = vperm.xlu0 %1610, %v439
  %v1612 = vpop.permute.xlu0 %1611
  %1614 = vset.pattern.permute.xlu0 2
  %1615 = vperm.xlu0 %1614, %v440
  %v1616 = vpop.permute.xlu0 %1615
  %v1618 = vmul.f32 %v1452, 0.0
  %v1619 = vmul.f32 %v1456, 0.0
  %v1620 = vmul.f32 %v1460, 0.0
  %v1621 = vmul.f32 %v1464, 0.0
  %v1622 = vmul.f32 %v1468, 0.0
  %v1623 = vmul.f32 %v1472, 0.0
  %v1624 = vmul.f32 %v357, %v1476
  %v1625 = vmul.f32 %v358, %v1480
  %v1626 = vmul.f32 %v359, %v1484
  %v1627 = vmul.f32 %v360, %v1488
  %v1628 = vmul.f32 %v361, %v1492
  %v1629 = vmul.f32 %v362, %v1496
  %v1630 = vmul.f32 %v363, %v1500
  %v1631 = vmul.f32 %v364, %v1504
  %v1632 = vmul.f32 %v365, %v1508
  %v1633 = vmul.f32 %v366, %v1512
  %v1634 = vmul.f32 %v367, %v1516
  %v1635 = vmul.f32 %v368, %v1520
  %v1636 = vmul.f32 %v369, %v1524
  %v1637 = vmul.f32 %v370, %v1528
  %v1638 = vmul.f32 %v371, %v1532
  %v1639 = vmul.f32 %v372, %v1536
  %v1640 = vmul.f32 %v373, %v1540
  %v1641 = vmul.f32 %v374, %v1544
  %v1642 = vmul.f32 %v375, %v1548
  %v1643 = vmul.f32 %v376, %v1552
  %v1644 = vmul.f32 %v377, %v1556
  %v1645 = vmul.f32 %v378, %v1560
  %v1646 = vmul.f32 %v379, %v1564
  %v1647 = vmul.f32 %v380, %v1568
  %v1648 = vmul.f32 %v381, %v1572
  %v1649 = vmul.f32 %v382, %v1576
  %v1650 = vmul.f32 %v383, %v1580
  %v1651 = vmul.f32 %v384, %v1584
  %v1652 = vmul.f32 %v385, %v1588
  %v1653 = vmul.f32 %v386, %v1592
  %v1654 = vmul.f32 %v387, %v1596
  %v1655 = vmul.f32 %v388, %v1600
  %v1656 = vmul.f32 %v389, %v1604
  %v1657 = vmul.f32 %v390, %v1608
  %v1658 = vmul.f32 %v391, %v1612
  %v1659 = vmul.f32 %v392, %v1616
  %v1660 = vld [vmem:[%s4 + $0x40] sm:$0xff]
  %v1661 = vld [vmem:[%s4 + $0x48] sm:$0xff]
  %v1662 = vld [vmem:[%s4 + $0x50] sm:$0xff]
  %v1663 = vld [vmem:[%s4 + $0x58] sm:$0xff]
  %v1665 = vsel %vm911, %v1618, 0
  %v1668 = vsel %vm911, %v1619, 0
  %v1671 = vsel %vm911, %v1620, 0
  %v1674 = vsel %vm911, %v1621, 0
  %v1677 = vsel %vm911, %v1622, 0
  %v1680 = vsel %vm911, %v1623, 0
  %v1683 = vsel %vm911, %v1624, 0
  %v1686 = vsel %vm911, %v1625, 0
  %v1689 = vsel %vm911, %v1626, 0
  %v1692 = vsel %vm911, %v1627, 0
  %v1695 = vsel %vm911, %v1628, 0
  %v1698 = vsel %vm911, %v1629, 0
  %v1701 = vsel %vm911, %v1630, 0
  %v1704 = vsel %vm911, %v1631, 0
  %v1707 = vsel %vm911, %v1632, 0
  %v1710 = vsel %vm911, %v1633, 0
  %v1713 = vsel %vm911, %v1634, 0
  %v1716 = vsel %vm911, %v1635, 0
  %v1719 = vsel %vm911, %v1636, 0
  %v1722 = vsel %vm911, %v1637, 0
  %v1725 = vsel %vm911, %v1638, 0
  %v1728 = vsel %vm911, %v1639, 0
  %v1731 = vsel %vm911, %v1640, 0
  %v1734 = vsel %vm911, %v1641, 0
  %v1737 = vsel %vm911, %v1642, 0
  %v1740 = vsel %vm911, %v1643, 0
  %v1743 = vsel %vm911, %v1644, 0
  %v1746 = vsel %vm911, %v1645, 0
  %v1749 = vsel %vm911, %v1646, 0
  %v1752 = vsel %vm911, %v1647, 0
  %v1755 = vsel %vm911, %v1648, 0
  %v1758 = vsel %vm911, %v1649, 0
  %v1761 = vsel %vm911, %v1650, 0
  %v1764 = vsel %vm911, %v1651, 0
  %v1767 = vsel %vm911, %v1652, 0
  %v1770 = vsel %vm911, %v1653, 0
  %v1773 = vsel %vm911, %v1654, 0
  %v1776 = vsel %vm911, %v1655, 0
  %v1779 = vsel %vm911, %v1656, 0
  %v1782 = vsel %vm911, %v1657, 0
  %v1785 = vsel %vm911, %v1658, 0
  %v1788 = vsel %vm911, %v1659, 0
  %1790 = vmatpush.msra.mxu0 0.0
  %1791 = vmatpush.msra.mxu0 0.0
  %1792 = vmatpush.msra.mxu0 0.0
  %1793 = vmatpush.msra.mxu0 0.0
  %1794 = vmatpush.msra.mxu0 0.0
  %1795 = vmatpush.msra.mxu0 0.0
  %1796 = vmatpush.msra.mxu0 0.0
  %1797 = vmatpush.msra.mxu0 0.0
  %1798 = vmatpush.msra.mxu0 0.0
  %1799 = vmatpush.msra.mxu0 0.0
  %1800 = vmatpush.msra.mxu0 0.0
  %1801 = vmatpush.msra.mxu0 0.0
  %1802 = vmatpush.msra.mxu0 %v1663
  %1803 = vmatpush.msra.mxu0 %v1662
  %1804 = vmatpush.msra.mxu0 %v1661
  %1805 = vmatpush.msra.mxu0 %v1660
  %1806 = vmatmul.f32.gmra.mxu0 %v1665
  %v1807 = vpop.f32.mrf.mxu0
  %v1808 = vadd.f32 0.0, %v1807
  %1809 = vmatmul.f32.gmra.mxu0 %v1668
  %v1810 = vpop.f32.mrf.mxu0
  %v1811 = vadd.f32 0.0, %v1810
  %1812 = vmatmul.f32.gmra.mxu0 %v1671
  %v1813 = vpop.f32.mrf.mxu0
  %v1814 = vadd.f32 0.0, %v1813
  %1815 = vmatmul.f32.gmra.mxu0 %v1674
  %v1816 = vpop.f32.mrf.mxu0
  %v1817 = vadd.f32 0.0, %v1816
  %1818 = vmatmul.f32.gmra.mxu0 %v1677
  %v1819 = vpop.f32.mrf.mxu0
  %v1820 = vadd.f32 0.0, %v1819
  %1821 = vmatmul.f32.gmra.mxu0 %v1680
  %v1822 = vpop.f32.mrf.mxu0
  %v1823 = vadd.f32 0.0, %v1822
  %1824 = vmatmul.f32.gmra.mxu0 %v1683
  %v1825 = vpop.f32.mrf.mxu0
  %v1826 = vadd.f32 0.0, %v1825
  %1827 = vmatmul.f32.gmra.mxu0 %v1686
  %v1828 = vpop.f32.mrf.mxu0
  %v1829 = vadd.f32 0.0, %v1828
  %1830 = vmatmul.f32.gmra.mxu0 %v1689
  %v1831 = vpop.f32.mrf.mxu0
  %v1832 = vadd.f32 0.0, %v1831
  %1833 = vmatmul.f32.gmra.mxu0 %v1692
  %v1834 = vpop.f32.mrf.mxu0
  %v1835 = vadd.f32 0.0, %v1834
  %1836 = vmatmul.f32.gmra.mxu0 %v1695
  %v1837 = vpop.f32.mrf.mxu0
  %v1838 = vadd.f32 0.0, %v1837
  %1839 = vmatmul.f32.gmra.mxu0 %v1698
  %v1840 = vpop.f32.mrf.mxu0
  %v1841 = vadd.f32 0.0, %v1840
  %1842 = vmatmul.f32.gmra.mxu0 %v1701
  %v1843 = vpop.f32.mrf.mxu0
  %v1844 = vadd.f32 0.0, %v1843
  %1845 = vmatmul.f32.gmra.mxu0 %v1704
  %v1846 = vpop.f32.mrf.mxu0
  %v1847 = vadd.f32 0.0, %v1846
  %1848 = vmatmul.f32.gmra.mxu0 %v1707
  %v1849 = vpop.f32.mrf.mxu0
  %v1850 = vadd.f32 0.0, %v1849
  %1851 = vmatmul.f32.gmra.mxu0 %v1710
  %v1852 = vpop.f32.mrf.mxu0
  %v1853 = vadd.f32 0.0, %v1852
  %1854 = vmatmul.f32.gmra.mxu0 %v1713
  %v1855 = vpop.f32.mrf.mxu0
  %v1856 = vadd.f32 0.0, %v1855
  %1857 = vmatmul.f32.gmra.mxu0 %v1716
  %v1858 = vpop.f32.mrf.mxu0
  %v1859 = vadd.f32 0.0, %v1858
  %1860 = vmatmul.f32.gmra.mxu0 %v1719
  %v1861 = vpop.f32.mrf.mxu0
  %v1862 = vadd.f32 0.0, %v1861
  %1863 = vmatmul.f32.gmra.mxu0 %v1722
  %v1864 = vpop.f32.mrf.mxu0
  %v1865 = vadd.f32 0.0, %v1864
  %1866 = vmatmul.f32.gmra.mxu0 %v1725
  %v1867 = vpop.f32.mrf.mxu0
  %v1868 = vadd.f32 0.0, %v1867
  %1869 = vmatmul.f32.gmra.mxu0 %v1728
  %v1870 = vpop.f32.mrf.mxu0
  %v1871 = vadd.f32 0.0, %v1870
  %1872 = vmatmul.f32.gmra.mxu0 %v1731
  %v1873 = vpop.f32.mrf.mxu0
  %v1874 = vadd.f32 0.0, %v1873
  %1875 = vmatmul.f32.gmra.mxu0 %v1734
  %v1876 = vpop.f32.mrf.mxu0
  %v1877 = vadd.f32 0.0, %v1876
  %1878 = vmatmul.f32.gmra.mxu0 %v1737
  %v1879 = vpop.f32.mrf.mxu0
  %v1880 = vadd.f32 0.0, %v1879
  %1881 = vmatmul.f32.gmra.mxu0 %v1740
  %v1882 = vpop.f32.mrf.mxu0
  %v1883 = vadd.f32 0.0, %v1882
  %1884 = vmatmul.f32.gmra.mxu0 %v1743
  %v1885 = vpop.f32.mrf.mxu0
  %v1886 = vadd.f32 0.0, %v1885
  %1887 = vmatmul.f32.gmra.mxu0 %v1746
  %v1888 = vpop.f32.mrf.mxu0
  %v1889 = vadd.f32 0.0, %v1888
  %1890 = vmatmul.f32.gmra.mxu0 %v1749
  %v1891 = vpop.f32.mrf.mxu0
  %v1892 = vadd.f32 0.0, %v1891
  %1893 = vmatmul.f32.gmra.mxu0 %v1752
  %v1894 = vpop.f32.mrf.mxu0
  %v1895 = vadd.f32 0.0, %v1894
  %1896 = vmatmul.f32.gmra.mxu0 %v1755
  %v1897 = vpop.f32.mrf.mxu0
  %v1898 = vadd.f32 0.0, %v1897
  %1899 = vmatmul.f32.gmra.mxu0 %v1758
  %v1900 = vpop.f32.mrf.mxu0
  %v1901 = vadd.f32 0.0, %v1900
  %1902 = vmatmul.f32.gmra.mxu0 %v1761
  %v1903 = vpop.f32.mrf.mxu0
  %v1904 = vadd.f32 0.0, %v1903
  %1905 = vmatmul.f32.gmra.mxu0 %v1764
  %v1906 = vpop.f32.mrf.mxu0
  %v1907 = vadd.f32 0.0, %v1906
  %1908 = vmatmul.f32.gmra.mxu0 %v1767
  %v1909 = vpop.f32.mrf.mxu0
  %v1910 = vadd.f32 0.0, %v1909
  %1911 = vmatmul.f32.gmra.mxu0 %v1770
  %v1912 = vpop.f32.mrf.mxu0
  %v1913 = vadd.f32 0.0, %v1912
  %1914 = vmatmul.f32.gmra.mxu0 %v1773
  %v1915 = vpop.f32.mrf.mxu0
  %v1916 = vadd.f32 0.0, %v1915
  %1917 = vmatmul.f32.gmra.mxu0 %v1776
  %v1918 = vpop.f32.mrf.mxu0
  %v1919 = vadd.f32 0.0, %v1918
  %1920 = vmatmul.f32.gmra.mxu0 %v1779
  %v1921 = vpop.f32.mrf.mxu0
  %v1922 = vadd.f32 0.0, %v1921
  %1923 = vmatmul.f32.gmra.mxu0 %v1782
  %v1924 = vpop.f32.mrf.mxu0
  %v1925 = vadd.f32 0.0, %v1924
  %1926 = vmatmul.f32.gmra.mxu0 %v1785
  %v1927 = vpop.f32.mrf.mxu0
  %v1928 = vadd.f32 0.0, %v1927
  %1929 = vmatmul.f32.gmra.mxu0 %v1788
  %v1930 = vpop.f32.mrf.mxu0
  %v1931 = vadd.f32 0.0, %v1930
  %1932 = vdwg.mxu0
  %v1933 = vadd.f32 %v1325, %v1808
  %v1934 = vadd.f32 %v1328, %v1811
  %v1935 = vadd.f32 %v1331, %v1814
  %v1936 = vadd.f32 %v1334, %v1817
  %v1937 = vadd.f32 %v1337, %v1820
  %v1938 = vadd.f32 %v1340, %v1823
  %v1939 = vadd.f32 %v1343, %v1826
  %v1940 = vadd.f32 %v1346, %v1829
  %v1941 = vadd.f32 %v1349, %v1832
  %v1942 = vadd.f32 %v1352, %v1835
  %v1943 = vadd.f32 %v1355, %v1838
  %v1944 = vadd.f32 %v1358, %v1841
  %v1945 = vadd.f32 %v1361, %v1844
  %v1946 = vadd.f32 %v1364, %v1847
  %v1947 = vadd.f32 %v1367, %v1850
  %v1948 = vadd.f32 %v1370, %v1853
  %v1949 = vadd.f32 %v1373, %v1856
  %v1950 = vadd.f32 %v1376, %v1859
  %v1951 = vadd.f32 %v1379, %v1862
  %v1952 = vadd.f32 %v1382, %v1865
  %v1953 = vadd.f32 %v1385, %v1868
  %v1954 = vadd.f32 %v1388, %v1871
  %v1955 = vadd.f32 %v1391, %v1874
  %v1956 = vadd.f32 %v1394, %v1877
  %v1957 = vadd.f32 %v1397, %v1880
  %v1958 = vadd.f32 %v1400, %v1883
  %v1959 = vadd.f32 %v1403, %v1886
  %v1960 = vadd.f32 %v1406, %v1889
  %v1961 = vadd.f32 %v1409, %v1892
  %v1962 = vadd.f32 %v1412, %v1895
  %v1963 = vadd.f32 %v1415, %v1898
  %v1964 = vadd.f32 %v1418, %v1901
  %v1965 = vadd.f32 %v1421, %v1904
  %v1966 = vadd.f32 %v1424, %v1907
  %v1967 = vadd.f32 %v1427, %v1910
  %v1968 = vadd.f32 %v1430, %v1913
  %v1969 = vadd.f32 %v1433, %v1916
  %v1970 = vadd.f32 %v1436, %v1919
  %v1971 = vadd.f32 %v1439, %v1922
  %v1972 = vadd.f32 %v1442, %v1925
  %v1973 = vadd.f32 %v1445, %v1928
  %v1974 = vadd.f32 %v1448, %v1931
  %1975 = vset.pattern.permute.xlu0 3
  %1976 = vperm.xlu0 %1975, %v399
  %v1977 = vpop.permute.xlu0 %1976
  %1979 = vset.pattern.permute.xlu0 3
  %1980 = vperm.xlu0 %1979, %v400
  %v1981 = vpop.permute.xlu0 %1980
  %1983 = vset.pattern.permute.xlu0 3
  %1984 = vperm.xlu0 %1983, %v401
  %v1985 = vpop.permute.xlu0 %1984
  %1987 = vset.pattern.permute.xlu0 3
  %1988 = vperm.xlu0 %1987, %v402
  %v1989 = vpop.permute.xlu0 %1988
  %1991 = vset.pattern.permute.xlu0 3
  %1992 = vperm.xlu0 %1991, %v403
  %v1993 = vpop.permute.xlu0 %1992
  %1995 = vset.pattern.permute.xlu0 3
  %1996 = vperm.xlu0 %1995, %v404
  %v1997 = vpop.permute.xlu0 %1996
  %1999 = vset.pattern.permute.xlu0 3
  %2000 = vperm.xlu0 %1999, %v405
  %v2001 = vpop.permute.xlu0 %2000
  %2003 = vset.pattern.permute.xlu0 3
  %2004 = vperm.xlu0 %2003, %v406
  %v2005 = vpop.permute.xlu0 %2004
  %2007 = vset.pattern.permute.xlu0 3
  %2008 = vperm.xlu0 %2007, %v407
  %v2009 = vpop.permute.xlu0 %2008
  %2011 = vset.pattern.permute.xlu0 3
  %2012 = vperm.xlu0 %2011, %v408
  %v2013 = vpop.permute.xlu0 %2012
  %2015 = vset.pattern.permute.xlu0 3
  %2016 = vperm.xlu0 %2015, %v409
  %v2017 = vpop.permute.xlu0 %2016
  %2019 = vset.pattern.permute.xlu0 3
  %2020 = vperm.xlu0 %2019, %v410
  %v2021 = vpop.permute.xlu0 %2020
  %2023 = vset.pattern.permute.xlu0 3
  %2024 = vperm.xlu0 %2023, %v411
  %v2025 = vpop.permute.xlu0 %2024
  %2027 = vset.pattern.permute.xlu0 3
  %2028 = vperm.xlu0 %2027, %v412
  %v2029 = vpop.permute.xlu0 %2028
  %2031 = vset.pattern.permute.xlu0 3
  %2032 = vperm.xlu0 %2031, %v413
  %v2033 = vpop.permute.xlu0 %2032
  %2035 = vset.pattern.permute.xlu0 3
  %2036 = vperm.xlu0 %2035, %v414
  %v2037 = vpop.permute.xlu0 %2036
  %2039 = vset.pattern.permute.xlu0 3
  %2040 = vperm.xlu0 %2039, %v415
  %v2041 = vpop.permute.xlu0 %2040
  %2043 = vset.pattern.permute.xlu0 3
  %2044 = vperm.xlu0 %2043, %v416
  %v2045 = vpop.permute.xlu0 %2044
  %2047 = vset.pattern.permute.xlu0 3
  %2048 = vperm.xlu0 %2047, %v417
  %v2049 = vpop.permute.xlu0 %2048
  %2051 = vset.pattern.permute.xlu0 3
  %2052 = vperm.xlu0 %2051, %v418
  %v2053 = vpop.permute.xlu0 %2052
  %2055 = vset.pattern.permute.xlu0 3
  %2056 = vperm.xlu0 %2055, %v419
  %v2057 = vpop.permute.xlu0 %2056
  %2059 = vset.pattern.permute.xlu0 3
  %2060 = vperm.xlu0 %2059, %v420
  %v2061 = vpop.permute.xlu0 %2060
  %2063 = vset.pattern.permute.xlu0 3
  %2064 = vperm.xlu0 %2063, %v421
  %v2065 = vpop.permute.xlu0 %2064
  %2067 = vset.pattern.permute.xlu0 3
  %2068 = vperm.xlu0 %2067, %v422
  %v2069 = vpop.permute.xlu0 %2068
  %2071 = vset.pattern.permute.xlu0 3
  %2072 = vperm.xlu0 %2071, %v423
  %v2073 = vpop.permute.xlu0 %2072
  %2075 = vset.pattern.permute.xlu0 3
  %2076 = vperm.xlu0 %2075, %v424
  %v2077 = vpop.permute.xlu0 %2076
  %2079 = vset.pattern.permute.xlu0 3
  %2080 = vperm.xlu0 %2079, %v425
  %v2081 = vpop.permute.xlu0 %2080
  %2083 = vset.pattern.permute.xlu0 3
  %2084 = vperm.xlu0 %2083, %v426
  %v2085 = vpop.permute.xlu0 %2084
  %2087 = vset.pattern.permute.xlu0 3
  %2088 = vperm.xlu0 %2087, %v427
  %v2089 = vpop.permute.xlu0 %2088
  %2091 = vset.pattern.permute.xlu0 3
  %2092 = vperm.xlu0 %2091, %v428
  %v2093 = vpop.permute.xlu0 %2092
  %2095 = vset.pattern.permute.xlu0 3
  %2096 = vperm.xlu0 %2095, %v429
  %v2097 = vpop.permute.xlu0 %2096
  %2099 = vset.pattern.permute.xlu0 3
  %2100 = vperm.xlu0 %2099, %v430
  %v2101 = vpop.permute.xlu0 %2100
  %2103 = vset.pattern.permute.xlu0 3
  %2104 = vperm.xlu0 %2103, %v431
  %v2105 = vpop.permute.xlu0 %2104
  %2107 = vset.pattern.permute.xlu0 3
  %2108 = vperm.xlu0 %2107, %v432
  %v2109 = vpop.permute.xlu0 %2108
  %2111 = vset.pattern.permute.xlu0 3
  %2112 = vperm.xlu0 %2111, %v433
  %v2113 = vpop.permute.xlu0 %2112
  %2115 = vset.pattern.permute.xlu0 3
  %2116 = vperm.xlu0 %2115, %v434
  %v2117 = vpop.permute.xlu0 %2116
  %2119 = vset.pattern.permute.xlu0 3
  %2120 = vperm.xlu0 %2119, %v435
  %v2121 = vpop.permute.xlu0 %2120
  %2123 = vset.pattern.permute.xlu0 3
  %2124 = vperm.xlu0 %2123, %v436
  %v2125 = vpop.permute.xlu0 %2124
  %2127 = vset.pattern.permute.xlu0 3
  %2128 = vperm.xlu0 %2127, %v437
  %v2129 = vpop.permute.xlu0 %2128
  %2131 = vset.pattern.permute.xlu0 3
  %2132 = vperm.xlu0 %2131, %v438
  %v2133 = vpop.permute.xlu0 %2132
  %2135 = vset.pattern.permute.xlu0 3
  %2136 = vperm.xlu0 %2135, %v439
  %v2137 = vpop.permute.xlu0 %2136
  %2139 = vset.pattern.permute.xlu0 3
  %2140 = vperm.xlu0 %2139, %v440
  %v2141 = vpop.permute.xlu0 %2140
  %v2143 = vmul.f32 %v1977, 0.0
  %v2144 = vmul.f32 %v357, %v1981
  %v2145 = vmul.f32 %v358, %v1985
  %v2146 = vmul.f32 %v359, %v1989
  %v2147 = vmul.f32 %v360, %v1993
  %v2148 = vmul.f32 %v361, %v1997
  %v2149 = vmul.f32 %v362, %v2001
  %v2150 = vmul.f32 %v363, %v2005
  %v2151 = vmul.f32 %v364, %v2009
  %v2152 = vmul.f32 %v365, %v2013
  %v2153 = vmul.f32 %v366, %v2017
  %v2154 = vmul.f32 %v367, %v2021
  %v2155 = vmul.f32 %v368, %v2025
  %v2156 = vmul.f32 %v369, %v2029
  %v2157 = vmul.f32 %v370, %v2033
  %v2158 = vmul.f32 %v371, %v2037
  %v2159 = vmul.f32 %v372, %v2041
  %v2160 = vmul.f32 %v373, %v2045
  %v2161 = vmul.f32 %v374, %v2049
  %v2162 = vmul.f32 %v375, %v2053
  %v2163 = vmul.f32 %v376, %v2057
  %v2164 = vmul.f32 %v377, %v2061
  %v2165 = vmul.f32 %v378, %v2065
  %v2166 = vmul.f32 %v379, %v2069
  %v2167 = vmul.f32 %v380, %v2073
  %v2168 = vmul.f32 %v381, %v2077
  %v2169 = vmul.f32 %v382, %v2081
  %v2170 = vmul.f32 %v383, %v2085
  %v2171 = vmul.f32 %v384, %v2089
  %v2172 = vmul.f32 %v385, %v2093
  %v2173 = vmul.f32 %v386, %v2097
  %v2174 = vmul.f32 %v387, %v2101
  %v2175 = vmul.f32 %v388, %v2105
  %v2176 = vmul.f32 %v389, %v2109
  %v2177 = vmul.f32 %v390, %v2113
  %v2178 = vmul.f32 %v391, %v2117
  %v2179 = vmul.f32 %v392, %v2121
  %v2180 = vmul.f32 %v393, %v2125
  %v2181 = vmul.f32 %v394, %v2129
  %v2182 = vmul.f32 %v395, %v2133
  %v2183 = vmul.f32 %v396, %v2137
  %v2184 = vmul.f32 %v397, %v2141
  %v2185 = vld [vmem:[%s4 + $0x60] sm:$0xff]
  %v2186 = vld [vmem:[%s4 + $0x68] sm:$0xff]
  %v2187 = vld [vmem:[%s4 + $0x70] sm:$0xff]
  %v2188 = vld [vmem:[%s4 + $0x78] sm:$0xff]
  %v2190 = vsel %vm911, %v2143, 0
  %v2193 = vsel %vm911, %v2144, 0
  %v2196 = vsel %vm911, %v2145, 0
  %v2199 = vsel %vm911, %v2146, 0
  %v2202 = vsel %vm911, %v2147, 0
  %v2205 = vsel %vm911, %v2148, 0
  %v2208 = vsel %vm911, %v2149, 0
  %v2211 = vsel %vm911, %v2150, 0
  %v2214 = vsel %vm911, %v2151, 0
  %v2217 = vsel %vm911, %v2152, 0
  %v2220 = vsel %vm911, %v2153, 0
  %v2223 = vsel %vm911, %v2154, 0
  %v2226 = vsel %vm911, %v2155, 0
  %v2229 = vsel %vm911, %v2156, 0
  %v2232 = vsel %vm911, %v2157, 0
  %v2235 = vsel %vm911, %v2158, 0
  %v2238 = vsel %vm911, %v2159, 0
  %v2241 = vsel %vm911, %v2160, 0
  %v2244 = vsel %vm911, %v2161, 0
  %v2247 = vsel %vm911, %v2162, 0
  %v2250 = vsel %vm911, %v2163, 0
  %v2253 = vsel %vm911, %v2164, 0
  %v2256 = vsel %vm911, %v2165, 0
  %v2259 = vsel %vm911, %v2166, 0
  %v2262 = vsel %vm911, %v2167, 0
  %v2265 = vsel %vm911, %v2168, 0
  %v2268 = vsel %vm911, %v2169, 0
  %v2271 = vsel %vm911, %v2170, 0
  %v2274 = vsel %vm911, %v2171, 0
  %v2277 = vsel %vm911, %v2172, 0
  %v2280 = vsel %vm911, %v2173, 0
  %v2283 = vsel %vm911, %v2174, 0
  %v2286 = vsel %vm911, %v2175, 0
  %v2289 = vsel %vm911, %v2176, 0
  %v2292 = vsel %vm911, %v2177, 0
  %v2295 = vsel %vm911, %v2178, 0
  %v2298 = vsel %vm911, %v2179, 0
  %v2301 = vsel %vm911, %v2180, 0
  %v2304 = vsel %vm911, %v2181, 0
  %v2307 = vsel %vm911, %v2182, 0
  %v2310 = vsel %vm911, %v2183, 0
  %v2313 = vsel %vm911, %v2184, 0
  %2315 = vmatpush.msra.mxu0 0.0
  %2316 = vmatpush.msra.mxu0 0.0
  %2317 = vmatpush.msra.mxu0 0.0
  %2318 = vmatpush.msra.mxu0 0.0
  %2319 = vmatpush.msra.mxu0 0.0
  %2320 = vmatpush.msra.mxu0 0.0
  %2321 = vmatpush.msra.mxu0 0.0
  %2322 = vmatpush.msra.mxu0 0.0
  %2323 = vmatpush.msra.mxu0 0.0
  %2324 = vmatpush.msra.mxu0 0.0
  %2325 = vmatpush.msra.mxu0 0.0
  %2326 = vmatpush.msra.mxu0 0.0
  %2327 = vmatpush.msra.mxu0 %v2188
  %2328 = vmatpush.msra.mxu0 %v2187
  %2329 = vmatpush.msra.mxu0 %v2186
  %2330 = vmatpush.msra.mxu0 %v2185
  %2331 = vmatmul.f32.gmra.mxu0 %v2190
  %v2332 = vpop.f32.mrf.mxu0
  %v2333 = vadd.f32 0.0, %v2332
  %2334 = vmatmul.f32.gmra.mxu0 %v2193
  %v2335 = vpop.f32.mrf.mxu0
  %v2336 = vadd.f32 0.0, %v2335
  %2337 = vmatmul.f32.gmra.mxu0 %v2196
  %v2338 = vpop.f32.mrf.mxu0
  %v2339 = vadd.f32 0.0, %v2338
  %2340 = vmatmul.f32.gmra.mxu0 %v2199
  %v2341 = vpop.f32.mrf.mxu0
  %v2342 = vadd.f32 0.0, %v2341
  %2343 = vmatmul.f32.gmra.mxu0 %v2202
  %v2344 = vpop.f32.mrf.mxu0
  %v2345 = vadd.f32 0.0, %v2344
  %2346 = vmatmul.f32.gmra.mxu0 %v2205
  %v2347 = vpop.f32.mrf.mxu0
  %v2348 = vadd.f32 0.0, %v2347
  %2349 = vmatmul.f32.gmra.mxu0 %v2208
  %v2350 = vpop.f32.mrf.mxu0
  %v2351 = vadd.f32 0.0, %v2350
  %2352 = vmatmul.f32.gmra.mxu0 %v2211
  %v2353 = vpop.f32.mrf.mxu0
  %v2354 = vadd.f32 0.0, %v2353
  %2355 = vmatmul.f32.gmra.mxu0 %v2214
  %v2356 = vpop.f32.mrf.mxu0
  %v2357 = vadd.f32 0.0, %v2356
  %2358 = vmatmul.f32.gmra.mxu0 %v2217
  %v2359 = vpop.f32.mrf.mxu0
  %v2360 = vadd.f32 0.0, %v2359
  %2361 = vmatmul.f32.gmra.mxu0 %v2220
  %v2362 = vpop.f32.mrf.mxu0
  %v2363 = vadd.f32 0.0, %v2362
  %2364 = vmatmul.f32.gmra.mxu0 %v2223
  %v2365 = vpop.f32.mrf.mxu0
  %v2366 = vadd.f32 0.0, %v2365
  %2367 = vmatmul.f32.gmra.mxu0 %v2226
  %v2368 = vpop.f32.mrf.mxu0
  %v2369 = vadd.f32 0.0, %v2368
  %2370 = vmatmul.f32.gmra.mxu0 %v2229
  %v2371 = vpop.f32.mrf.mxu0
  %v2372 = vadd.f32 0.0, %v2371
  %2373 = vmatmul.f32.gmra.mxu0 %v2232
  %v2374 = vpop.f32.mrf.mxu0
  %v2375 = vadd.f32 0.0, %v2374
  %2376 = vmatmul.f32.gmra.mxu0 %v2235
  %v2377 = vpop.f32.mrf.mxu0
  %v2378 = vadd.f32 0.0, %v2377
  %2379 = vmatmul.f32.gmra.mxu0 %v2238
  %v2380 = vpop.f32.mrf.mxu0
  %v2381 = vadd.f32 0.0, %v2380
  %2382 = vmatmul.f32.gmra.mxu0 %v2241
  %v2383 = vpop.f32.mrf.mxu0
  %v2384 = vadd.f32 0.0, %v2383
  %2385 = vmatmul.f32.gmra.mxu0 %v2244
  %v2386 = vpop.f32.mrf.mxu0
  %v2387 = vadd.f32 0.0, %v2386
  %2388 = vmatmul.f32.gmra.mxu0 %v2247
  %v2389 = vpop.f32.mrf.mxu0
  %v2390 = vadd.f32 0.0, %v2389
  %2391 = vmatmul.f32.gmra.mxu0 %v2250
  %v2392 = vpop.f32.mrf.mxu0
  %v2393 = vadd.f32 0.0, %v2392
  %2394 = vmatmul.f32.gmra.mxu0 %v2253
  %v2395 = vpop.f32.mrf.mxu0
  %v2396 = vadd.f32 0.0, %v2395
  %2397 = vmatmul.f32.gmra.mxu0 %v2256
  %v2398 = vpop.f32.mrf.mxu0
  %v2399 = vadd.f32 0.0, %v2398
  %2400 = vmatmul.f32.gmra.mxu0 %v2259
  %v2401 = vpop.f32.mrf.mxu0
  %v2402 = vadd.f32 0.0, %v2401
  %2403 = vmatmul.f32.gmra.mxu0 %v2262
  %v2404 = vpop.f32.mrf.mxu0
  %v2405 = vadd.f32 0.0, %v2404
  %2406 = vmatmul.f32.gmra.mxu0 %v2265
  %v2407 = vpop.f32.mrf.mxu0
  %v2408 = vadd.f32 0.0, %v2407
  %2409 = vmatmul.f32.gmra.mxu0 %v2268
  %v2410 = vpop.f32.mrf.mxu0
  %v2411 = vadd.f32 0.0, %v2410
  %2412 = vmatmul.f32.gmra.mxu0 %v2271
  %v2413 = vpop.f32.mrf.mxu0
  %v2414 = vadd.f32 0.0, %v2413
  %2415 = vmatmul.f32.gmra.mxu0 %v2274
  %v2416 = vpop.f32.mrf.mxu0
  %v2417 = vadd.f32 0.0, %v2416
  %2418 = vmatmul.f32.gmra.mxu0 %v2277
  %v2419 = vpop.f32.mrf.mxu0
  %v2420 = vadd.f32 0.0, %v2419
  %2421 = vmatmul.f32.gmra.mxu0 %v2280
  %v2422 = vpop.f32.mrf.mxu0
  %v2423 = vadd.f32 0.0, %v2422
  %2424 = vmatmul.f32.gmra.mxu0 %v2283
  %v2425 = vpop.f32.mrf.mxu0
  %v2426 = vadd.f32 0.0, %v2425
  %2427 = vmatmul.f32.gmra.mxu0 %v2286
  %v2428 = vpop.f32.mrf.mxu0
  %v2429 = vadd.f32 0.0, %v2428
  %2430 = vmatmul.f32.gmra.mxu0 %v2289
  %v2431 = vpop.f32.mrf.mxu0
  %v2432 = vadd.f32 0.0, %v2431
  %2433 = vmatmul.f32.gmra.mxu0 %v2292
  %v2434 = vpop.f32.mrf.mxu0
  %v2435 = vadd.f32 0.0, %v2434
  %2436 = vmatmul.f32.gmra.mxu0 %v2295
  %v2437 = vpop.f32.mrf.mxu0
  %v2438 = vadd.f32 0.0, %v2437
  %2439 = vmatmul.f32.gmra.mxu0 %v2298
  %v2440 = vpop.f32.mrf.mxu0
  %v2441 = vadd.f32 0.0, %v2440
  %2442 = vmatmul.f32.gmra.mxu0 %v2301
  %v2443 = vpop.f32.mrf.mxu0
  %v2444 = vadd.f32 0.0, %v2443
  %2445 = vmatmul.f32.gmra.mxu0 %v2304
  %v2446 = vpop.f32.mrf.mxu0
  %v2447 = vadd.f32 0.0, %v2446
  %2448 = vmatmul.f32.gmra.mxu0 %v2307
  %v2449 = vpop.f32.mrf.mxu0
  %v2450 = vadd.f32 0.0, %v2449
  %2451 = vmatmul.f32.gmra.mxu0 %v2310
  %v2452 = vpop.f32.mrf.mxu0
  %v2453 = vadd.f32 0.0, %v2452
  %2454 = vmatmul.f32.gmra.mxu0 %v2313
  %v2455 = vpop.f32.mrf.mxu0
  %v2456 = vadd.f32 0.0, %v2455
  %2457 = vdwg.mxu0
  %v2458 = vadd.f32 %v1933, %v2333
  %v2459 = vadd.f32 %v1934, %v2336
  %v2460 = vadd.f32 %v1935, %v2339
  %v2461 = vadd.f32 %v1936, %v2342
  %v2462 = vadd.f32 %v1937, %v2345
  %v2463 = vadd.f32 %v1938, %v2348
  %v2464 = vadd.f32 %v1939, %v2351
  %v2465 = vadd.f32 %v1940, %v2354
  %v2466 = vadd.f32 %v1941, %v2357
  %v2467 = vadd.f32 %v1942, %v2360
  %v2468 = vadd.f32 %v1943, %v2363
  %v2469 = vadd.f32 %v1944, %v2366
  %v2470 = vadd.f32 %v1945, %v2369
  %v2471 = vadd.f32 %v1946, %v2372
  %v2472 = vadd.f32 %v1947, %v2375
  %v2473 = vadd.f32 %v1948, %v2378
  %v2474 = vadd.f32 %v1949, %v2381
  %v2475 = vadd.f32 %v1950, %v2384
  %v2476 = vadd.f32 %v1951, %v2387
  %v2477 = vadd.f32 %v1952, %v2390
  %v2478 = vadd.f32 %v1953, %v2393
  %v2479 = vadd.f32 %v1954, %v2396
  %v2480 = vadd.f32 %v1955, %v2399
  %v2481 = vadd.f32 %v1956, %v2402
  %v2482 = vadd.f32 %v1957, %v2405
  %v2483 = vadd.f32 %v1958, %v2408
  %v2484 = vadd.f32 %v1959, %v2411
  %v2485 = vadd.f32 %v1960, %v2414
  %v2486 = vadd.f32 %v1961, %v2417
  %v2487 = vadd.f32 %v1962, %v2420
  %v2488 = vadd.f32 %v1963, %v2423
  %v2489 = vadd.f32 %v1964, %v2426
  %v2490 = vadd.f32 %v1965, %v2429
  %v2491 = vadd.f32 %v1966, %v2432
  %v2492 = vadd.f32 %v1967, %v2435
  %v2493 = vadd.f32 %v1968, %v2438
  %v2494 = vadd.f32 %v1969, %v2441
  %v2495 = vadd.f32 %v1970, %v2444
  %v2496 = vadd.f32 %v1971, %v2447
  %v2497 = vadd.f32 %v1972, %v2450
  %v2498 = vadd.f32 %v1973, %v2453
  %v2499 = vadd.f32 %v1974, %v2456
  %2500 = vset.pattern.permute.xlu0 4
  %2501 = vperm.xlu0 %2500, %v399
  %v2502 = vpop.permute.xlu0 %2501
  %2504 = vset.pattern.permute.xlu0 4
  %2505 = vperm.xlu0 %2504, %v400
  %v2506 = vpop.permute.xlu0 %2505
  %2508 = vset.pattern.permute.xlu0 4
  %2509 = vperm.xlu0 %2508, %v401
  %v2510 = vpop.permute.xlu0 %2509
  %2512 = vset.pattern.permute.xlu0 4
  %2513 = vperm.xlu0 %2512, %v402
  %v2514 = vpop.permute.xlu0 %2513
  %2516 = vset.pattern.permute.xlu0 4
  %2517 = vperm.xlu0 %2516, %v403
  %v2518 = vpop.permute.xlu0 %2517
  %2520 = vset.pattern.permute.xlu0 4
  %2521 = vperm.xlu0 %2520, %v404
  %v2522 = vpop.permute.xlu0 %2521
  %2524 = vset.pattern.permute.xlu0 4
  %2525 = vperm.xlu0 %2524, %v405
  %v2526 = vpop.permute.xlu0 %2525
  %2528 = vset.pattern.permute.xlu0 4
  %2529 = vperm.xlu0 %2528, %v406
  %v2530 = vpop.permute.xlu0 %2529
  %2532 = vset.pattern.permute.xlu0 4
  %2533 = vperm.xlu0 %2532, %v407
  %v2534 = vpop.permute.xlu0 %2533
  %2536 = vset.pattern.permute.xlu0 4
  %2537 = vperm.xlu0 %2536, %v408
  %v2538 = vpop.permute.xlu0 %2537
  %2540 = vset.pattern.permute.xlu0 4
  %2541 = vperm.xlu0 %2540, %v409
  %v2542 = vpop.permute.xlu0 %2541
  %2544 = vset.pattern.permute.xlu0 4
  %2545 = vperm.xlu0 %2544, %v410
  %v2546 = vpop.permute.xlu0 %2545
  %2548 = vset.pattern.permute.xlu0 4
  %2549 = vperm.xlu0 %2548, %v411
  %v2550 = vpop.permute.xlu0 %2549
  %2552 = vset.pattern.permute.xlu0 4
  %2553 = vperm.xlu0 %2552, %v412
  %v2554 = vpop.permute.xlu0 %2553
  %2556 = vset.pattern.permute.xlu0 4
  %2557 = vperm.xlu0 %2556, %v413
  %v2558 = vpop.permute.xlu0 %2557
  %2560 = vset.pattern.permute.xlu0 4
  %2561 = vperm.xlu0 %2560, %v414
  %v2562 = vpop.permute.xlu0 %2561
  %2564 = vset.pattern.permute.xlu0 4
  %2565 = vperm.xlu0 %2564, %v415
  %v2566 = vpop.permute.xlu0 %2565
  %2568 = vset.pattern.permute.xlu0 4
  %2569 = vperm.xlu0 %2568, %v416
  %v2570 = vpop.permute.xlu0 %2569
  %2572 = vset.pattern.permute.xlu0 4
  %2573 = vperm.xlu0 %2572, %v417
  %v2574 = vpop.permute.xlu0 %2573
  %2576 = vset.pattern.permute.xlu0 4
  %2577 = vperm.xlu0 %2576, %v418
  %v2578 = vpop.permute.xlu0 %2577
  %2580 = vset.pattern.permute.xlu0 4
  %2581 = vperm.xlu0 %2580, %v419
  %v2582 = vpop.permute.xlu0 %2581
  %2584 = vset.pattern.permute.xlu0 4
  %2585 = vperm.xlu0 %2584, %v420
  %v2586 = vpop.permute.xlu0 %2585
  %2588 = vset.pattern.permute.xlu0 4
  %2589 = vperm.xlu0 %2588, %v421
  %v2590 = vpop.permute.xlu0 %2589
  %2592 = vset.pattern.permute.xlu0 4
  %2593 = vperm.xlu0 %2592, %v422
  %v2594 = vpop.permute.xlu0 %2593
  %2596 = vset.pattern.permute.xlu0 4
  %2597 = vperm.xlu0 %2596, %v423
  %v2598 = vpop.permute.xlu0 %2597
  %2600 = vset.pattern.permute.xlu0 4
  %2601 = vperm.xlu0 %2600, %v424
  %v2602 = vpop.permute.xlu0 %2601
  %2604 = vset.pattern.permute.xlu0 4
  %2605 = vperm.xlu0 %2604, %v425
  %v2606 = vpop.permute.xlu0 %2605
  %2608 = vset.pattern.permute.xlu0 4
  %2609 = vperm.xlu0 %2608, %v426
  %v2610 = vpop.permute.xlu0 %2609
  %2612 = vset.pattern.permute.xlu0 4
  %2613 = vperm.xlu0 %2612, %v427
  %v2614 = vpop.permute.xlu0 %2613
  %2616 = vset.pattern.permute.xlu0 4
  %2617 = vperm.xlu0 %2616, %v428
  %v2618 = vpop.permute.xlu0 %2617
  %2620 = vset.pattern.permute.xlu0 4
  %2621 = vperm.xlu0 %2620, %v429
  %v2622 = vpop.permute.xlu0 %2621
  %2624 = vset.pattern.permute.xlu0 4
  %2625 = vperm.xlu0 %2624, %v430
  %v2626 = vpop.permute.xlu0 %2625
  %2628 = vset.pattern.permute.xlu0 4
  %2629 = vperm.xlu0 %2628, %v431
  %v2630 = vpop.permute.xlu0 %2629
  %2632 = vset.pattern.permute.xlu0 4
  %2633 = vperm.xlu0 %2632, %v432
  %v2634 = vpop.permute.xlu0 %2633
  %2636 = vset.pattern.permute.xlu0 4
  %2637 = vperm.xlu0 %2636, %v433
  %v2638 = vpop.permute.xlu0 %2637
  %2640 = vset.pattern.permute.xlu0 4
  %2641 = vperm.xlu0 %2640, %v434
  %v2642 = vpop.permute.xlu0 %2641
  %2644 = vset.pattern.permute.xlu0 4
  %2645 = vperm.xlu0 %2644, %v435
  %v2646 = vpop.permute.xlu0 %2645
  %2648 = vset.pattern.permute.xlu0 4
  %2649 = vperm.xlu0 %2648, %v436
  %v2650 = vpop.permute.xlu0 %2649
  %2652 = vset.pattern.permute.xlu0 4
  %2653 = vperm.xlu0 %2652, %v437
  %v2654 = vpop.permute.xlu0 %2653
  %2656 = vset.pattern.permute.xlu0 4
  %2657 = vperm.xlu0 %2656, %v438
  %v2658 = vpop.permute.xlu0 %2657
  %2660 = vset.pattern.permute.xlu0 4
  %2661 = vperm.xlu0 %2660, %v439
  %v2662 = vpop.permute.xlu0 %2661
  %2664 = vset.pattern.permute.xlu0 4
  %2665 = vperm.xlu0 %2664, %v440
  %v2666 = vpop.permute.xlu0 %2665
  %v2668 = vmul.f32 %v357, %v2502
  %v2669 = vmul.f32 %v358, %v2506
  %v2670 = vmul.f32 %v359, %v2510
  %v2671 = vmul.f32 %v360, %v2514
  %v2672 = vmul.f32 %v361, %v2518
  %v2673 = vmul.f32 %v362, %v2522
  %v2674 = vmul.f32 %v363, %v2526
  %v2675 = vmul.f32 %v364, %v2530
  %v2676 = vmul.f32 %v365, %v2534
  %v2677 = vmul.f32 %v366, %v2538
  %v2678 = vmul.f32 %v367, %v2542
  %v2679 = vmul.f32 %v368, %v2546
  %v2680 = vmul.f32 %v369, %v2550
  %v2681 = vmul.f32 %v370, %v2554
  %v2682 = vmul.f32 %v371, %v2558
  %v2683 = vmul.f32 %v372, %v2562
  %v2684 = vmul.f32 %v373, %v2566
  %v2685 = vmul.f32 %v374, %v2570
  %v2686 = vmul.f32 %v375, %v2574
  %v2687 = vmul.f32 %v376, %v2578
  %v2688 = vmul.f32 %v377, %v2582
  %v2689 = vmul.f32 %v378, %v2586
  %v2690 = vmul.f32 %v379, %v2590
  %v2691 = vmul.f32 %v380, %v2594
  %v2692 = vmul.f32 %v381, %v2598
  %v2693 = vmul.f32 %v382, %v2602
  %v2694 = vmul.f32 %v383, %v2606
  %v2695 = vmul.f32 %v384, %v2610
  %v2696 = vmul.f32 %v385, %v2614
  %v2697 = vmul.f32 %v386, %v2618
  %v2698 = vmul.f32 %v387, %v2622
  %v2699 = vmul.f32 %v388, %v2626
  %v2700 = vmul.f32 %v389, %v2630
  %v2701 = vmul.f32 %v390, %v2634
  %v2702 = vmul.f32 %v391, %v2638
  %v2703 = vmul.f32 %v392, %v2642
  %v2704 = vmul.f32 %v393, %v2646
  %v2705 = vmul.f32 %v394, %v2650
  %v2706 = vmul.f32 %v395, %v2654
  %v2707 = vmul.f32 %v396, %v2658
  %v2708 = vmul.f32 %v397, %v2662
  %v2709 = vmul.f32 %v398, %v2666
  %v2710 = vld [vmem:[%s4 + $0x80] sm:$0xff]
  %v2711 = vld [vmem:[%s4 + $0x88] sm:$0xff]
  %v2712 = vld [vmem:[%s4 + $0x90] sm:$0xff]
  %v2713 = vld [vmem:[%s4 + $0x98] sm:$0xff]
  %v2715 = vsel %vm911, %v2668, 0
  %v2718 = vsel %vm911, %v2669, 0
  %v2721 = vsel %vm911, %v2670, 0
  %v2724 = vsel %vm911, %v2671, 0
  %v2727 = vsel %vm911, %v2672, 0
  %v2730 = vsel %vm911, %v2673, 0
  %v2733 = vsel %vm911, %v2674, 0
  %v2736 = vsel %vm911, %v2675, 0
  %v2739 = vsel %vm911, %v2676, 0
  %v2742 = vsel %vm911, %v2677, 0
  %v2745 = vsel %vm911, %v2678, 0
  %v2748 = vsel %vm911, %v2679, 0
  %v2751 = vsel %vm911, %v2680, 0
  %v2754 = vsel %vm911, %v2681, 0
  %v2757 = vsel %vm911, %v2682, 0
  %v2760 = vsel %vm911, %v2683, 0
  %v2763 = vsel %vm911, %v2684, 0
  %v2766 = vsel %vm911, %v2685, 0
  %v2769 = vsel %vm911, %v2686, 0
  %v2772 = vsel %vm911, %v2687, 0
  %v2775 = vsel %vm911, %v2688, 0
  %v2778 = vsel %vm911, %v2689, 0
  %v2781 = vsel %vm911, %v2690, 0
  %v2784 = vsel %vm911, %v2691, 0
  %v2787 = vsel %vm911, %v2692, 0
  %v2790 = vsel %vm911, %v2693, 0
  %v2793 = vsel %vm911, %v2694, 0
  %v2796 = vsel %vm911, %v2695, 0
  %v2799 = vsel %vm911, %v2696, 0
  %v2802 = vsel %vm911, %v2697, 0
  %v2805 = vsel %vm911, %v2698, 0
  %v2808 = vsel %vm911, %v2699, 0
  %v2811 = vsel %vm911, %v2700, 0
  %v2814 = vsel %vm911, %v2701, 0
  %v2817 = vsel %vm911, %v2702, 0
  %v2820 = vsel %vm911, %v2703, 0
  %v2823 = vsel %vm911, %v2704, 0
  %v2826 = vsel %vm911, %v2705, 0
  %v2829 = vsel %vm911, %v2706, 0
  %v2832 = vsel %vm911, %v2707, 0
  %v2835 = vsel %vm911, %v2708, 0
  %v2838 = vsel %vm911, %v2709, 0
  %2840 = vmatpush.msra.mxu0 0.0
  %2841 = vmatpush.msra.mxu0 0.0
  %2842 = vmatpush.msra.mxu0 0.0
  %2843 = vmatpush.msra.mxu0 0.0
  %2844 = vmatpush.msra.mxu0 0.0
  %2845 = vmatpush.msra.mxu0 0.0
  %2846 = vmatpush.msra.mxu0 0.0
  %2847 = vmatpush.msra.mxu0 0.0
  %2848 = vmatpush.msra.mxu0 0.0
  %2849 = vmatpush.msra.mxu0 0.0
  %2850 = vmatpush.msra.mxu0 0.0
  %2851 = vmatpush.msra.mxu0 0.0
  %2852 = vmatpush.msra.mxu0 %v2713
  %2853 = vmatpush.msra.mxu0 %v2712
  %2854 = vmatpush.msra.mxu0 %v2711
  %2855 = vmatpush.msra.mxu0 %v2710
  %2856 = vmatmul.f32.gmra.mxu0 %v2715
  %v2857 = vpop.f32.mrf.mxu0
  %v2858 = vadd.f32 0.0, %v2857
  %2859 = vmatmul.f32.gmra.mxu0 %v2718
  %v2860 = vpop.f32.mrf.mxu0
  %v2861 = vadd.f32 0.0, %v2860
  %2862 = vmatmul.f32.gmra.mxu0 %v2721
  %v2863 = vpop.f32.mrf.mxu0
  %v2864 = vadd.f32 0.0, %v2863
  %2865 = vmatmul.f32.gmra.mxu0 %v2724
  %v2866 = vpop.f32.mrf.mxu0
  %v2867 = vadd.f32 0.0, %v2866
  %2868 = vmatmul.f32.gmra.mxu0 %v2727
  %v2869 = vpop.f32.mrf.mxu0
  %v2870 = vadd.f32 0.0, %v2869
  %2871 = vmatmul.f32.gmra.mxu0 %v2730
  %v2872 = vpop.f32.mrf.mxu0
  %v2873 = vadd.f32 0.0, %v2872
  %2874 = vmatmul.f32.gmra.mxu0 %v2733
  %v2875 = vpop.f32.mrf.mxu0
  %v2876 = vadd.f32 0.0, %v2875
  %2877 = vmatmul.f32.gmra.mxu0 %v2736
  %v2878 = vpop.f32.mrf.mxu0
  %v2879 = vadd.f32 0.0, %v2878
  %2880 = vmatmul.f32.gmra.mxu0 %v2739
  %v2881 = vpop.f32.mrf.mxu0
  %v2882 = vadd.f32 0.0, %v2881
  %2883 = vmatmul.f32.gmra.mxu0 %v2742
  %v2884 = vpop.f32.mrf.mxu0
  %v2885 = vadd.f32 0.0, %v2884
  %2886 = vmatmul.f32.gmra.mxu0 %v2745
  %v2887 = vpop.f32.mrf.mxu0
  %v2888 = vadd.f32 0.0, %v2887
  %2889 = vmatmul.f32.gmra.mxu0 %v2748
  %v2890 = vpop.f32.mrf.mxu0
  %v2891 = vadd.f32 0.0, %v2890
  %2892 = vmatmul.f32.gmra.mxu0 %v2751
  %v2893 = vpop.f32.mrf.mxu0
  %v2894 = vadd.f32 0.0, %v2893
  %2895 = vmatmul.f32.gmra.mxu0 %v2754
  %v2896 = vpop.f32.mrf.mxu0
  %v2897 = vadd.f32 0.0, %v2896
  %2898 = vmatmul.f32.gmra.mxu0 %v2757
  %v2899 = vpop.f32.mrf.mxu0
  %v2900 = vadd.f32 0.0, %v2899
  %2901 = vmatmul.f32.gmra.mxu0 %v2760
  %v2902 = vpop.f32.mrf.mxu0
  %v2903 = vadd.f32 0.0, %v2902
  %2904 = vmatmul.f32.gmra.mxu0 %v2763
  %v2905 = vpop.f32.mrf.mxu0
  %v2906 = vadd.f32 0.0, %v2905
  %2907 = vmatmul.f32.gmra.mxu0 %v2766
  %v2908 = vpop.f32.mrf.mxu0
  %v2909 = vadd.f32 0.0, %v2908
  %2910 = vmatmul.f32.gmra.mxu0 %v2769
  %v2911 = vpop.f32.mrf.mxu0
  %v2912 = vadd.f32 0.0, %v2911
  %2913 = vmatmul.f32.gmra.mxu0 %v2772
  %v2914 = vpop.f32.mrf.mxu0
  %v2915 = vadd.f32 0.0, %v2914
  %2916 = vmatmul.f32.gmra.mxu0 %v2775
  %v2917 = vpop.f32.mrf.mxu0
  %v2918 = vadd.f32 0.0, %v2917
  %2919 = vmatmul.f32.gmra.mxu0 %v2778
  %v2920 = vpop.f32.mrf.mxu0
  %v2921 = vadd.f32 0.0, %v2920
  %2922 = vmatmul.f32.gmra.mxu0 %v2781
  %v2923 = vpop.f32.mrf.mxu0
  %v2924 = vadd.f32 0.0, %v2923
  %2925 = vmatmul.f32.gmra.mxu0 %v2784
  %v2926 = vpop.f32.mrf.mxu0
  %v2927 = vadd.f32 0.0, %v2926
  %2928 = vmatmul.f32.gmra.mxu0 %v2787
  %v2929 = vpop.f32.mrf.mxu0
  %v2930 = vadd.f32 0.0, %v2929
  %2931 = vmatmul.f32.gmra.mxu0 %v2790
  %v2932 = vpop.f32.mrf.mxu0
  %v2933 = vadd.f32 0.0, %v2932
  %2934 = vmatmul.f32.gmra.mxu0 %v2793
  %v2935 = vpop.f32.mrf.mxu0
  %v2936 = vadd.f32 0.0, %v2935
  %2937 = vmatmul.f32.gmra.mxu0 %v2796
  %v2938 = vpop.f32.mrf.mxu0
  %v2939 = vadd.f32 0.0, %v2938
  %2940 = vmatmul.f32.gmra.mxu0 %v2799
  %v2941 = vpop.f32.mrf.mxu0
  %v2942 = vadd.f32 0.0, %v2941
  %2943 = vmatmul.f32.gmra.mxu0 %v2802
  %v2944 = vpop.f32.mrf.mxu0
  %v2945 = vadd.f32 0.0, %v2944
  %2946 = vmatmul.f32.gmra.mxu0 %v2805
  %v2947 = vpop.f32.mrf.mxu0
  %v2948 = vadd.f32 0.0, %v2947
  %2949 = vmatmul.f32.gmra.mxu0 %v2808
  %v2950 = vpop.f32.mrf.mxu0
  %v2951 = vadd.f32 0.0, %v2950
  %2952 = vmatmul.f32.gmra.mxu0 %v2811
  %v2953 = vpop.f32.mrf.mxu0
  %v2954 = vadd.f32 0.0, %v2953
  %2955 = vmatmul.f32.gmra.mxu0 %v2814
  %v2956 = vpop.f32.mrf.mxu0
  %v2957 = vadd.f32 0.0, %v2956
  %2958 = vmatmul.f32.gmra.mxu0 %v2817
  %v2959 = vpop.f32.mrf.mxu0
  %v2960 = vadd.f32 0.0, %v2959
  %2961 = vmatmul.f32.gmra.mxu0 %v2820
  %v2962 = vpop.f32.mrf.mxu0
  %v2963 = vadd.f32 0.0, %v2962
  %2964 = vmatmul.f32.gmra.mxu0 %v2823
  %v2965 = vpop.f32.mrf.mxu0
  %v2966 = vadd.f32 0.0, %v2965
  %2967 = vmatmul.f32.gmra.mxu0 %v2826
  %v2968 = vpop.f32.mrf.mxu0
  %v2969 = vadd.f32 0.0, %v2968
  %2970 = vmatmul.f32.gmra.mxu0 %v2829
  %v2971 = vpop.f32.mrf.mxu0
  %v2972 = vadd.f32 0.0, %v2971
  %2973 = vmatmul.f32.gmra.mxu0 %v2832
  %v2974 = vpop.f32.mrf.mxu0
  %v2975 = vadd.f32 0.0, %v2974
  %2976 = vmatmul.f32.gmra.mxu0 %v2835
  %v2977 = vpop.f32.mrf.mxu0
  %v2978 = vadd.f32 0.0, %v2977
  %2979 = vmatmul.f32.gmra.mxu0 %v2838
  %v2980 = vpop.f32.mrf.mxu0
  %v2981 = vadd.f32 0.0, %v2980
  %2982 = vdwg.mxu0
  %v2983 = vadd.f32 %v2458, %v2858
  %v2984 = vadd.f32 %v2459, %v2861
  %v2985 = vadd.f32 %v2460, %v2864
  %v2986 = vadd.f32 %v2461, %v2867
  %v2987 = vadd.f32 %v2462, %v2870
  %v2988 = vadd.f32 %v2463, %v2873
  %v2989 = vadd.f32 %v2464, %v2876
  %v2990 = vadd.f32 %v2465, %v2879
  %v2991 = vadd.f32 %v2466, %v2882
  %v2992 = vadd.f32 %v2467, %v2885
  %v2993 = vadd.f32 %v2468, %v2888
  %v2994 = vadd.f32 %v2469, %v2891
  %v2995 = vadd.f32 %v2470, %v2894
  %v2996 = vadd.f32 %v2471, %v2897
  %v2997 = vadd.f32 %v2472, %v2900
  %v2998 = vadd.f32 %v2473, %v2903
  %v2999 = vadd.f32 %v2474, %v2906
  %v3000 = vadd.f32 %v2475, %v2909
  %v3001 = vadd.f32 %v2476, %v2912
  %v3002 = vadd.f32 %v2477, %v2915
  %v3003 = vadd.f32 %v2478, %v2918
  %v3004 = vadd.f32 %v2479, %v2921
  %v3005 = vadd.f32 %v2480, %v2924
  %v3006 = vadd.f32 %v2481, %v2927
  %v3007 = vadd.f32 %v2482, %v2930
  %v3008 = vadd.f32 %v2483, %v2933
  %v3009 = vadd.f32 %v2484, %v2936
  %v3010 = vadd.f32 %v2485, %v2939
  %v3011 = vadd.f32 %v2486, %v2942
  %v3012 = vadd.f32 %v2487, %v2945
  %v3013 = vadd.f32 %v2488, %v2948
  %v3014 = vadd.f32 %v2489, %v2951
  %v3015 = vadd.f32 %v2490, %v2954
  %v3016 = vadd.f32 %v2491, %v2957
  %v3017 = vadd.f32 %v2492, %v2960
  %v3018 = vadd.f32 %v2493, %v2963
  %v3019 = vadd.f32 %v2494, %v2966
  %v3020 = vadd.f32 %v2495, %v2969
  %v3021 = vadd.f32 %v2496, %v2972
  %v3022 = vadd.f32 %v2497, %v2975
  %v3023 = vadd.f32 %v2498, %v2978
  %v3024 = vadd.f32 %v2499, %v2981
  %3025 = vset.pattern.permute.xlu0 5
  %3026 = vperm.xlu0 %3025, %v399
  %v3027 = vpop.permute.xlu0 %3026
  %3029 = vset.pattern.permute.xlu0 5
  %3030 = vperm.xlu0 %3029, %v400
  %v3031 = vpop.permute.xlu0 %3030
  %3033 = vset.pattern.permute.xlu0 5
  %3034 = vperm.xlu0 %3033, %v401
  %v3035 = vpop.permute.xlu0 %3034
  %3037 = vset.pattern.permute.xlu0 5
  %3038 = vperm.xlu0 %3037, %v402
  %v3039 = vpop.permute.xlu0 %3038
  %3041 = vset.pattern.permute.xlu0 5
  %3042 = vperm.xlu0 %3041, %v403
  %v3043 = vpop.permute.xlu0 %3042
  %3045 = vset.pattern.permute.xlu0 5
  %3046 = vperm.xlu0 %3045, %v404
  %v3047 = vpop.permute.xlu0 %3046
  %3049 = vset.pattern.permute.xlu0 5
  %3050 = vperm.xlu0 %3049, %v405
  %v3051 = vpop.permute.xlu0 %3050
  %3053 = vset.pattern.permute.xlu0 5
  %3054 = vperm.xlu0 %3053, %v406
  %v3055 = vpop.permute.xlu0 %3054
  %3057 = vset.pattern.permute.xlu0 5
  %3058 = vperm.xlu0 %3057, %v407
  %v3059 = vpop.permute.xlu0 %3058
  %3061 = vset.pattern.permute.xlu0 5
  %3062 = vperm.xlu0 %3061, %v408
  %v3063 = vpop.permute.xlu0 %3062
  %3065 = vset.pattern.permute.xlu0 5
  %3066 = vperm.xlu0 %3065, %v409
  %v3067 = vpop.permute.xlu0 %3066
  %3069 = vset.pattern.permute.xlu0 5
  %3070 = vperm.xlu0 %3069, %v410
  %v3071 = vpop.permute.xlu0 %3070
  %3073 = vset.pattern.permute.xlu0 5
  %3074 = vperm.xlu0 %3073, %v411
  %v3075 = vpop.permute.xlu0 %3074
  %3077 = vset.pattern.permute.xlu0 5
  %3078 = vperm.xlu0 %3077, %v412
  %v3079 = vpop.permute.xlu0 %3078
  %3081 = vset.pattern.permute.xlu0 5
  %3082 = vperm.xlu0 %3081, %v413
  %v3083 = vpop.permute.xlu0 %3082
  %3085 = vset.pattern.permute.xlu0 5
  %3086 = vperm.xlu0 %3085, %v414
  %v3087 = vpop.permute.xlu0 %3086
  %3089 = vset.pattern.permute.xlu0 5
  %3090 = vperm.xlu0 %3089, %v415
  %v3091 = vpop.permute.xlu0 %3090
  %3093 = vset.pattern.permute.xlu0 5
  %3094 = vperm.xlu0 %3093, %v416
  %v3095 = vpop.permute.xlu0 %3094
  %3097 = vset.pattern.permute.xlu0 5
  %3098 = vperm.xlu0 %3097, %v417
  %v3099 = vpop.permute.xlu0 %3098
  %3101 = vset.pattern.permute.xlu0 5
  %3102 = vperm.xlu0 %3101, %v418
  %v3103 = vpop.permute.xlu0 %3102
  %3105 = vset.pattern.permute.xlu0 5
  %3106 = vperm.xlu0 %3105, %v419
  %v3107 = vpop.permute.xlu0 %3106
  %3109 = vset.pattern.permute.xlu0 5
  %3110 = vperm.xlu0 %3109, %v420
  %v3111 = vpop.permute.xlu0 %3110
  %3113 = vset.pattern.permute.xlu0 5
  %3114 = vperm.xlu0 %3113, %v421
  %v3115 = vpop.permute.xlu0 %3114
  %3117 = vset.pattern.permute.xlu0 5
  %3118 = vperm.xlu0 %3117, %v422
  %v3119 = vpop.permute.xlu0 %3118
  %3121 = vset.pattern.permute.xlu0 5
  %3122 = vperm.xlu0 %3121, %v423
  %v3123 = vpop.permute.xlu0 %3122
  %3125 = vset.pattern.permute.xlu0 5
  %3126 = vperm.xlu0 %3125, %v424
  %v3127 = vpop.permute.xlu0 %3126
  %3129 = vset.pattern.permute.xlu0 5
  %3130 = vperm.xlu0 %3129, %v425
  %v3131 = vpop.permute.xlu0 %3130
  %3133 = vset.pattern.permute.xlu0 5
  %3134 = vperm.xlu0 %3133, %v426
  %v3135 = vpop.permute.xlu0 %3134
  %3137 = vset.pattern.permute.xlu0 5
  %3138 = vperm.xlu0 %3137, %v427
  %v3139 = vpop.permute.xlu0 %3138
  %3141 = vset.pattern.permute.xlu0 5
  %3142 = vperm.xlu0 %3141, %v428
  %v3143 = vpop.permute.xlu0 %3142
  %3145 = vset.pattern.permute.xlu0 5
  %3146 = vperm.xlu0 %3145, %v429
  %v3147 = vpop.permute.xlu0 %3146
  %3149 = vset.pattern.permute.xlu0 5
  %3150 = vperm.xlu0 %3149, %v430
  %v3151 = vpop.permute.xlu0 %3150
  %3153 = vset.pattern.permute.xlu0 5
  %3154 = vperm.xlu0 %3153, %v431
  %v3155 = vpop.permute.xlu0 %3154
  %3157 = vset.pattern.permute.xlu0 5
  %3158 = vperm.xlu0 %3157, %v432
  %v3159 = vpop.permute.xlu0 %3158
  %3161 = vset.pattern.permute.xlu0 5
  %3162 = vperm.xlu0 %3161, %v433
  %v3163 = vpop.permute.xlu0 %3162
  %3165 = vset.pattern.permute.xlu0 5
  %3166 = vperm.xlu0 %3165, %v434
  %v3167 = vpop.permute.xlu0 %3166
  %3169 = vset.pattern.permute.xlu0 5
  %3170 = vperm.xlu0 %3169, %v435
  %v3171 = vpop.permute.xlu0 %3170
  %3173 = vset.pattern.permute.xlu0 5
  %3174 = vperm.xlu0 %3173, %v436
  %v3175 = vpop.permute.xlu0 %3174
  %3177 = vset.pattern.permute.xlu0 5
  %3178 = vperm.xlu0 %3177, %v437
  %v3179 = vpop.permute.xlu0 %3178
  %3181 = vset.pattern.permute.xlu0 5
  %3182 = vperm.xlu0 %3181, %v438
  %v3183 = vpop.permute.xlu0 %3182
  %3185 = vset.pattern.permute.xlu0 5
  %3186 = vperm.xlu0 %3185, %v439
  %v3187 = vpop.permute.xlu0 %3186
  %3189 = vset.pattern.permute.xlu0 5
  %3190 = vperm.xlu0 %3189, %v440
  %v3191 = vpop.permute.xlu0 %3190
  %v3193 = vmul.f32 %v358, %v3027
  %v3194 = vmul.f32 %v359, %v3031
  %v3195 = vmul.f32 %v360, %v3035
  %v3196 = vmul.f32 %v361, %v3039
  %v3197 = vmul.f32 %v362, %v3043
  %v3198 = vmul.f32 %v363, %v3047
  %v3199 = vmul.f32 %v364, %v3051
  %v3200 = vmul.f32 %v365, %v3055
  %v3201 = vmul.f32 %v366, %v3059
  %v3202 = vmul.f32 %v367, %v3063
  %v3203 = vmul.f32 %v368, %v3067
  %v3204 = vmul.f32 %v369, %v3071
  %v3205 = vmul.f32 %v370, %v3075
  %v3206 = vmul.f32 %v371, %v3079
  %v3207 = vmul.f32 %v372, %v3083
  %v3208 = vmul.f32 %v373, %v3087
  %v3209 = vmul.f32 %v374, %v3091
  %v3210 = vmul.f32 %v375, %v3095
  %v3211 = vmul.f32 %v376, %v3099
  %v3212 = vmul.f32 %v377, %v3103
  %v3213 = vmul.f32 %v378, %v3107
  %v3214 = vmul.f32 %v379, %v3111
  %v3215 = vmul.f32 %v380, %v3115
  %v3216 = vmul.f32 %v381, %v3119
  %v3217 = vmul.f32 %v382, %v3123
  %v3218 = vmul.f32 %v383, %v3127
  %v3219 = vmul.f32 %v384, %v3131
  %v3220 = vmul.f32 %v385, %v3135
  %v3221 = vmul.f32 %v386, %v3139
  %v3222 = vmul.f32 %v387, %v3143
  %v3223 = vmul.f32 %v388, %v3147
  %v3224 = vmul.f32 %v389, %v3151
  %v3225 = vmul.f32 %v390, %v3155
  %v3226 = vmul.f32 %v391, %v3159
  %v3227 = vmul.f32 %v392, %v3163
  %v3228 = vmul.f32 %v393, %v3167
  %v3229 = vmul.f32 %v394, %v3171
  %v3230 = vmul.f32 %v395, %v3175
  %v3231 = vmul.f32 %v396, %v3179
  %v3232 = vmul.f32 %v397, %v3183
  %v3233 = vmul.f32 %v398, %v3187
  %v3234 = vmul.f32 %v3191, 0.0
  %v3235 = vld [vmem:[%s4 + $0xa0] sm:$0xff]
  %v3236 = vld [vmem:[%s4 + $0xa8] sm:$0xff]
  %v3237 = vld [vmem:[%s4 + $0xb0] sm:$0xff]
  %v3238 = vld [vmem:[%s4 + $0xb8] sm:$0xff]
  %v3240 = vsel %vm911, %v3193, 0
  %v3243 = vsel %vm911, %v3194, 0
  %v3246 = vsel %vm911, %v3195, 0
  %v3249 = vsel %vm911, %v3196, 0
  %v3252 = vsel %vm911, %v3197, 0
  %v3255 = vsel %vm911, %v3198, 0
  %v3258 = vsel %vm911, %v3199, 0
  %v3261 = vsel %vm911, %v3200, 0
  %v3264 = vsel %vm911, %v3201, 0
  %v3267 = vsel %vm911, %v3202, 0
  %v3270 = vsel %vm911, %v3203, 0
  %v3273 = vsel %vm911, %v3204, 0
  %v3276 = vsel %vm911, %v3205, 0
  %v3279 = vsel %vm911, %v3206, 0
  %v3282 = vsel %vm911, %v3207, 0
  %v3285 = vsel %vm911, %v3208, 0
  %v3288 = vsel %vm911, %v3209, 0
  %v3291 = vsel %vm911, %v3210, 0
  %v3294 = vsel %vm911, %v3211, 0
  %v3297 = vsel %vm911, %v3212, 0
  %v3300 = vsel %vm911, %v3213, 0
  %v3303 = vsel %vm911, %v3214, 0
  %v3306 = vsel %vm911, %v3215, 0
  %v3309 = vsel %vm911, %v3216, 0
  %v3312 = vsel %vm911, %v3217, 0
  %v3315 = vsel %vm911, %v3218, 0
  %v3318 = vsel %vm911, %v3219, 0
  %v3321 = vsel %vm911, %v3220, 0
  %v3324 = vsel %vm911, %v3221, 0
  %v3327 = vsel %vm911, %v3222, 0
  %v3330 = vsel %vm911, %v3223, 0
  %v3333 = vsel %vm911, %v3224, 0
  %v3336 = vsel %vm911, %v3225, 0
  %v3339 = vsel %vm911, %v3226, 0
  %v3342 = vsel %vm911, %v3227, 0
  %v3345 = vsel %vm911, %v3228, 0
  %v3348 = vsel %vm911, %v3229, 0
  %v3351 = vsel %vm911, %v3230, 0
  %v3354 = vsel %vm911, %v3231, 0
  %v3357 = vsel %vm911, %v3232, 0
  %v3360 = vsel %vm911, %v3233, 0
  %v3363 = vsel %vm911, %v3234, 0
  %3365 = vmatpush.msra.mxu0 0.0
  %3366 = vmatpush.msra.mxu0 0.0
  %3367 = vmatpush.msra.mxu0 0.0
  %3368 = vmatpush.msra.mxu0 0.0
  %3369 = vmatpush.msra.mxu0 0.0
  %3370 = vmatpush.msra.mxu0 0.0
  %3371 = vmatpush.msra.mxu0 0.0
  %3372 = vmatpush.msra.mxu0 0.0
  %3373 = vmatpush.msra.mxu0 0.0
  %3374 = vmatpush.msra.mxu0 0.0
  %3375 = vmatpush.msra.mxu0 0.0
  %3376 = vmatpush.msra.mxu0 0.0
  %3377 = vmatpush.msra.mxu0 %v3238
  %3378 = vmatpush.msra.mxu0 %v3237
  %3379 = vmatpush.msra.mxu0 %v3236
  %3380 = vmatpush.msra.mxu0 %v3235
  %3381 = vmatmul.f32.gmra.mxu0 %v3240
  %v3382 = vpop.f32.mrf.mxu0
  %v3383 = vadd.f32 0.0, %v3382
  %3384 = vmatmul.f32.gmra.mxu0 %v3243
  %v3385 = vpop.f32.mrf.mxu0
  %v3386 = vadd.f32 0.0, %v3385
  %3387 = vmatmul.f32.gmra.mxu0 %v3246
  %v3388 = vpop.f32.mrf.mxu0
  %v3389 = vadd.f32 0.0, %v3388
  %3390 = vmatmul.f32.gmra.mxu0 %v3249
  %v3391 = vpop.f32.mrf.mxu0
  %v3392 = vadd.f32 0.0, %v3391
  %3393 = vmatmul.f32.gmra.mxu0 %v3252
  %v3394 = vpop.f32.mrf.mxu0
  %v3395 = vadd.f32 0.0, %v3394
  %3396 = vmatmul.f32.gmra.mxu0 %v3255
  %v3397 = vpop.f32.mrf.mxu0
  %v3398 = vadd.f32 0.0, %v3397
  %3399 = vmatmul.f32.gmra.mxu0 %v3258
  %v3400 = vpop.f32.mrf.mxu0
  %v3401 = vadd.f32 0.0, %v3400
  %3402 = vmatmul.f32.gmra.mxu0 %v3261
  %v3403 = vpop.f32.mrf.mxu0
  %v3404 = vadd.f32 0.0, %v3403
  %3405 = vmatmul.f32.gmra.mxu0 %v3264
  %v3406 = vpop.f32.mrf.mxu0
  %v3407 = vadd.f32 0.0, %v3406
  %3408 = vmatmul.f32.gmra.mxu0 %v3267
  %v3409 = vpop.f32.mrf.mxu0
  %v3410 = vadd.f32 0.0, %v3409
  %3411 = vmatmul.f32.gmra.mxu0 %v3270
  %v3412 = vpop.f32.mrf.mxu0
  %v3413 = vadd.f32 0.0, %v3412
  %3414 = vmatmul.f32.gmra.mxu0 %v3273
  %v3415 = vpop.f32.mrf.mxu0
  %v3416 = vadd.f32 0.0, %v3415
  %3417 = vmatmul.f32.gmra.mxu0 %v3276
  %v3418 = vpop.f32.mrf.mxu0
  %v3419 = vadd.f32 0.0, %v3418
  %3420 = vmatmul.f32.gmra.mxu0 %v3279
  %v3421 = vpop.f32.mrf.mxu0
  %v3422 = vadd.f32 0.0, %v3421
  %3423 = vmatmul.f32.gmra.mxu0 %v3282
  %v3424 = vpop.f32.mrf.mxu0
  %v3425 = vadd.f32 0.0, %v3424
  %3426 = vmatmul.f32.gmra.mxu0 %v3285
  %v3427 = vpop.f32.mrf.mxu0
  %v3428 = vadd.f32 0.0, %v3427
  %3429 = vmatmul.f32.gmra.mxu0 %v3288
  %v3430 = vpop.f32.mrf.mxu0
  %v3431 = vadd.f32 0.0, %v3430
  %3432 = vmatmul.f32.gmra.mxu0 %v3291
  %v3433 = vpop.f32.mrf.mxu0
  %v3434 = vadd.f32 0.0, %v3433
  %3435 = vmatmul.f32.gmra.mxu0 %v3294
  %v3436 = vpop.f32.mrf.mxu0
  %v3437 = vadd.f32 0.0, %v3436
  %3438 = vmatmul.f32.gmra.mxu0 %v3297
  %v3439 = vpop.f32.mrf.mxu0
  %v3440 = vadd.f32 0.0, %v3439
  %3441 = vmatmul.f32.gmra.mxu0 %v3300
  %v3442 = vpop.f32.mrf.mxu0
  %v3443 = vadd.f32 0.0, %v3442
  %3444 = vmatmul.f32.gmra.mxu0 %v3303
  %v3445 = vpop.f32.mrf.mxu0
  %v3446 = vadd.f32 0.0, %v3445
  %3447 = vmatmul.f32.gmra.mxu0 %v3306
  %v3448 = vpop.f32.mrf.mxu0
  %v3449 = vadd.f32 0.0, %v3448
  %3450 = vmatmul.f32.gmra.mxu0 %v3309
  %v3451 = vpop.f32.mrf.mxu0
  %v3452 = vadd.f32 0.0, %v3451
  %3453 = vmatmul.f32.gmra.mxu0 %v3312
  %v3454 = vpop.f32.mrf.mxu0
  %v3455 = vadd.f32 0.0, %v3454
  %3456 = vmatmul.f32.gmra.mxu0 %v3315
  %v3457 = vpop.f32.mrf.mxu0
  %v3458 = vadd.f32 0.0, %v3457
  %3459 = vmatmul.f32.gmra.mxu0 %v3318
  %v3460 = vpop.f32.mrf.mxu0
  %v3461 = vadd.f32 0.0, %v3460
  %3462 = vmatmul.f32.gmra.mxu0 %v3321
  %v3463 = vpop.f32.mrf.mxu0
  %v3464 = vadd.f32 0.0, %v3463
  %3465 = vmatmul.f32.gmra.mxu0 %v3324
  %v3466 = vpop.f32.mrf.mxu0
  %v3467 = vadd.f32 0.0, %v3466
  %3468 = vmatmul.f32.gmra.mxu0 %v3327
  %v3469 = vpop.f32.mrf.mxu0
  %v3470 = vadd.f32 0.0, %v3469
  %3471 = vmatmul.f32.gmra.mxu0 %v3330
  %v3472 = vpop.f32.mrf.mxu0
  %v3473 = vadd.f32 0.0, %v3472
  %3474 = vmatmul.f32.gmra.mxu0 %v3333
  %v3475 = vpop.f32.mrf.mxu0
  %v3476 = vadd.f32 0.0, %v3475
  %3477 = vmatmul.f32.gmra.mxu0 %v3336
  %v3478 = vpop.f32.mrf.mxu0
  %v3479 = vadd.f32 0.0, %v3478
  %3480 = vmatmul.f32.gmra.mxu0 %v3339
  %v3481 = vpop.f32.mrf.mxu0
  %v3482 = vadd.f32 0.0, %v3481
  %3483 = vmatmul.f32.gmra.mxu0 %v3342
  %v3484 = vpop.f32.mrf.mxu0
  %v3485 = vadd.f32 0.0, %v3484
  %3486 = vmatmul.f32.gmra.mxu0 %v3345
  %v3487 = vpop.f32.mrf.mxu0
  %v3488 = vadd.f32 0.0, %v3487
  %3489 = vmatmul.f32.gmra.mxu0 %v3348
  %v3490 = vpop.f32.mrf.mxu0
  %v3491 = vadd.f32 0.0, %v3490
  %3492 = vmatmul.f32.gmra.mxu0 %v3351
  %v3493 = vpop.f32.mrf.mxu0
  %v3494 = vadd.f32 0.0, %v3493
  %3495 = vmatmul.f32.gmra.mxu0 %v3354
  %v3496 = vpop.f32.mrf.mxu0
  %v3497 = vadd.f32 0.0, %v3496
  %3498 = vmatmul.f32.gmra.mxu0 %v3357
  %v3499 = vpop.f32.mrf.mxu0
  %v3500 = vadd.f32 0.0, %v3499
  %3501 = vmatmul.f32.gmra.mxu0 %v3360
  %v3502 = vpop.f32.mrf.mxu0
  %v3503 = vadd.f32 0.0, %v3502
  %3504 = vmatmul.f32.gmra.mxu0 %v3363
  %v3505 = vpop.f32.mrf.mxu0
  %v3506 = vadd.f32 0.0, %v3505
  %3507 = vdwg.mxu0
  %v3508 = vadd.f32 %v2983, %v3383
  %v3509 = vadd.f32 %v2984, %v3386
  %v3510 = vadd.f32 %v2985, %v3389
  %v3511 = vadd.f32 %v2986, %v3392
  %v3512 = vadd.f32 %v2987, %v3395
  %v3513 = vadd.f32 %v2988, %v3398
  %v3514 = vadd.f32 %v2989, %v3401
  %v3515 = vadd.f32 %v2990, %v3404
  %v3516 = vadd.f32 %v2991, %v3407
  %v3517 = vadd.f32 %v2992, %v3410
  %v3518 = vadd.f32 %v2993, %v3413
  %v3519 = vadd.f32 %v2994, %v3416
  %v3520 = vadd.f32 %v2995, %v3419
  %v3521 = vadd.f32 %v2996, %v3422
  %v3522 = vadd.f32 %v2997, %v3425
  %v3523 = vadd.f32 %v2998, %v3428
  %v3524 = vadd.f32 %v2999, %v3431
  %v3525 = vadd.f32 %v3000, %v3434
  %v3526 = vadd.f32 %v3001, %v3437
  %v3527 = vadd.f32 %v3002, %v3440
  %v3528 = vadd.f32 %v3003, %v3443
  %v3529 = vadd.f32 %v3004, %v3446
  %v3530 = vadd.f32 %v3005, %v3449
  %v3531 = vadd.f32 %v3006, %v3452
  %v3532 = vadd.f32 %v3007, %v3455
  %v3533 = vadd.f32 %v3008, %v3458
  %v3534 = vadd.f32 %v3009, %v3461
  %v3535 = vadd.f32 %v3010, %v3464
  %v3536 = vadd.f32 %v3011, %v3467
  %v3537 = vadd.f32 %v3012, %v3470
  %v3538 = vadd.f32 %v3013, %v3473
  %v3539 = vadd.f32 %v3014, %v3476
  %v3540 = vadd.f32 %v3015, %v3479
  %v3541 = vadd.f32 %v3016, %v3482
  %v3542 = vadd.f32 %v3017, %v3485
  %v3543 = vadd.f32 %v3018, %v3488
  %v3544 = vadd.f32 %v3019, %v3491
  %v3545 = vadd.f32 %v3020, %v3494
  %v3546 = vadd.f32 %v3021, %v3497
  %v3547 = vadd.f32 %v3022, %v3500
  %v3548 = vadd.f32 %v3023, %v3503
  %v3549 = vadd.f32 %v3024, %v3506
  %3550 = vset.pattern.permute.xlu0 6
  %3551 = vperm.xlu0 %3550, %v399
  %v3552 = vpop.permute.xlu0 %3551
  %3554 = vset.pattern.permute.xlu0 6
  %3555 = vperm.xlu0 %3554, %v400
  %v3556 = vpop.permute.xlu0 %3555
  %3558 = vset.pattern.permute.xlu0 6
  %3559 = vperm.xlu0 %3558, %v401
  %v3560 = vpop.permute.xlu0 %3559
  %3562 = vset.pattern.permute.xlu0 6
  %3563 = vperm.xlu0 %3562, %v402
  %v3564 = vpop.permute.xlu0 %3563
  %3566 = vset.pattern.permute.xlu0 6
  %3567 = vperm.xlu0 %3566, %v403
  %v3568 = vpop.permute.xlu0 %3567
  %3570 = vset.pattern.permute.xlu0 6
  %3571 = vperm.xlu0 %3570, %v404
  %v3572 = vpop.permute.xlu0 %3571
  %3574 = vset.pattern.permute.xlu0 6
  %3575 = vperm.xlu0 %3574, %v405
  %v3576 = vpop.permute.xlu0 %3575
  %3578 = vset.pattern.permute.xlu0 6
  %3579 = vperm.xlu0 %3578, %v406
  %v3580 = vpop.permute.xlu0 %3579
  %3582 = vset.pattern.permute.xlu0 6
  %3583 = vperm.xlu0 %3582, %v407
  %v3584 = vpop.permute.xlu0 %3583
  %3586 = vset.pattern.permute.xlu0 6
  %3587 = vperm.xlu0 %3586, %v408
  %v3588 = vpop.permute.xlu0 %3587
  %3590 = vset.pattern.permute.xlu0 6
  %3591 = vperm.xlu0 %3590, %v409
  %v3592 = vpop.permute.xlu0 %3591
  %3594 = vset.pattern.permute.xlu0 6
  %3595 = vperm.xlu0 %3594, %v410
  %v3596 = vpop.permute.xlu0 %3595
  %3598 = vset.pattern.permute.xlu0 6
  %3599 = vperm.xlu0 %3598, %v411
  %v3600 = vpop.permute.xlu0 %3599
  %3602 = vset.pattern.permute.xlu0 6
  %3603 = vperm.xlu0 %3602, %v412
  %v3604 = vpop.permute.xlu0 %3603
  %3606 = vset.pattern.permute.xlu0 6
  %3607 = vperm.xlu0 %3606, %v413
  %v3608 = vpop.permute.xlu0 %3607
  %3610 = vset.pattern.permute.xlu0 6
  %3611 = vperm.xlu0 %3610, %v414
  %v3612 = vpop.permute.xlu0 %3611
  %3614 = vset.pattern.permute.xlu0 6
  %3615 = vperm.xlu0 %3614, %v415
  %v3616 = vpop.permute.xlu0 %3615
  %3618 = vset.pattern.permute.xlu0 6
  %3619 = vperm.xlu0 %3618, %v416
  %v3620 = vpop.permute.xlu0 %3619
  %3622 = vset.pattern.permute.xlu0 6
  %3623 = vperm.xlu0 %3622, %v417
  %v3624 = vpop.permute.xlu0 %3623
  %3626 = vset.pattern.permute.xlu0 6
  %3627 = vperm.xlu0 %3626, %v418
  %v3628 = vpop.permute.xlu0 %3627
  %3630 = vset.pattern.permute.xlu0 6
  %3631 = vperm.xlu0 %3630, %v419
  %v3632 = vpop.permute.xlu0 %3631
  %3634 = vset.pattern.permute.xlu0 6
  %3635 = vperm.xlu0 %3634, %v420
  %v3636 = vpop.permute.xlu0 %3635
  %3638 = vset.pattern.permute.xlu0 6
  %3639 = vperm.xlu0 %3638, %v421
  %v3640 = vpop.permute.xlu0 %3639
  %3642 = vset.pattern.permute.xlu0 6
  %3643 = vperm.xlu0 %3642, %v422
  %v3644 = vpop.permute.xlu0 %3643
  %3646 = vset.pattern.permute.xlu0 6
  %3647 = vperm.xlu0 %3646, %v423
  %v3648 = vpop.permute.xlu0 %3647
  %3650 = vset.pattern.permute.xlu0 6
  %3651 = vperm.xlu0 %3650, %v424
  %v3652 = vpop.permute.xlu0 %3651
  %3654 = vset.pattern.permute.xlu0 6
  %3655 = vperm.xlu0 %3654, %v425
  %v3656 = vpop.permute.xlu0 %3655
  %3658 = vset.pattern.permute.xlu0 6
  %3659 = vperm.xlu0 %3658, %v426
  %v3660 = vpop.permute.xlu0 %3659
  %3662 = vset.pattern.permute.xlu0 6
  %3663 = vperm.xlu0 %3662, %v427
  %v3664 = vpop.permute.xlu0 %3663
  %3666 = vset.pattern.permute.xlu0 6
  %3667 = vperm.xlu0 %3666, %v428
  %v3668 = vpop.permute.xlu0 %3667
  %3670 = vset.pattern.permute.xlu0 6
  %3671 = vperm.xlu0 %3670, %v429
  %v3672 = vpop.permute.xlu0 %3671
  %3674 = vset.pattern.permute.xlu0 6
  %3675 = vperm.xlu0 %3674, %v430
  %v3676 = vpop.permute.xlu0 %3675
  %3678 = vset.pattern.permute.xlu0 6
  %3679 = vperm.xlu0 %3678, %v431
  %v3680 = vpop.permute.xlu0 %3679
  %3682 = vset.pattern.permute.xlu0 6
  %3683 = vperm.xlu0 %3682, %v432
  %v3684 = vpop.permute.xlu0 %3683
  %3686 = vset.pattern.permute.xlu0 6
  %3687 = vperm.xlu0 %3686, %v433
  %v3688 = vpop.permute.xlu0 %3687
  %3690 = vset.pattern.permute.xlu0 6
  %3691 = vperm.xlu0 %3690, %v434
  %v3692 = vpop.permute.xlu0 %3691
  %3694 = vset.pattern.permute.xlu0 6
  %3695 = vperm.xlu0 %3694, %v435
  %v3696 = vpop.permute.xlu0 %3695
  %3698 = vset.pattern.permute.xlu0 6
  %3699 = vperm.xlu0 %3698, %v436
  %v3700 = vpop.permute.xlu0 %3699
  %3702 = vset.pattern.permute.xlu0 6
  %3703 = vperm.xlu0 %3702, %v437
  %v3704 = vpop.permute.xlu0 %3703
  %3706 = vset.pattern.permute.xlu0 6
  %3707 = vperm.xlu0 %3706, %v438
  %v3708 = vpop.permute.xlu0 %3707
  %3710 = vset.pattern.permute.xlu0 6
  %3711 = vperm.xlu0 %3710, %v439
  %v3712 = vpop.permute.xlu0 %3711
  %3714 = vset.pattern.permute.xlu0 6
  %3715 = vperm.xlu0 %3714, %v440
  %v3716 = vpop.permute.xlu0 %3715
  %v3718 = vmul.f32 %v363, %v3552
  %v3719 = vmul.f32 %v364, %v3556
  %v3720 = vmul.f32 %v365, %v3560
  %v3721 = vmul.f32 %v366, %v3564
  %v3722 = vmul.f32 %v367, %v3568
  %v3723 = vmul.f32 %v368, %v3572
  %v3724 = vmul.f32 %v369, %v3576
  %v3725 = vmul.f32 %v370, %v3580
  %v3726 = vmul.f32 %v371, %v3584
  %v3727 = vmul.f32 %v372, %v3588
  %v3728 = vmul.f32 %v373, %v3592
  %v3729 = vmul.f32 %v374, %v3596
  %v3730 = vmul.f32 %v375, %v3600
  %v3731 = vmul.f32 %v376, %v3604
  %v3732 = vmul.f32 %v377, %v3608
  %v3733 = vmul.f32 %v378, %v3612
  %v3734 = vmul.f32 %v379, %v3616
  %v3735 = vmul.f32 %v380, %v3620
  %v3736 = vmul.f32 %v381, %v3624
  %v3737 = vmul.f32 %v382, %v3628
  %v3738 = vmul.f32 %v383, %v3632
  %v3739 = vmul.f32 %v384, %v3636
  %v3740 = vmul.f32 %v385, %v3640
  %v3741 = vmul.f32 %v386, %v3644
  %v3742 = vmul.f32 %v387, %v3648
  %v3743 = vmul.f32 %v388, %v3652
  %v3744 = vmul.f32 %v389, %v3656
  %v3745 = vmul.f32 %v390, %v3660
  %v3746 = vmul.f32 %v391, %v3664
  %v3747 = vmul.f32 %v392, %v3668
  %v3748 = vmul.f32 %v393, %v3672
  %v3749 = vmul.f32 %v394, %v3676
  %v3750 = vmul.f32 %v395, %v3680
  %v3751 = vmul.f32 %v396, %v3684
  %v3752 = vmul.f32 %v397, %v3688
  %v3753 = vmul.f32 %v398, %v3692
  %v3754 = vmul.f32 %v3696, 0.0
  %v3755 = vmul.f32 %v3700, 0.0
  %v3756 = vmul.f32 %v3704, 0.0
  %v3757 = vmul.f32 %v3708, 0.0
  %v3758 = vmul.f32 %v3712, 0.0
  %v3759 = vmul.f32 %v3716, 0.0
  %v3760 = vld [vmem:[%s4 + $0xc0] sm:$0xff]
  %v3761 = vld [vmem:[%s4 + $0xc8] sm:$0xff]
  %v3762 = vld [vmem:[%s4 + $0xd0] sm:$0xff]
  %v3763 = vld [vmem:[%s4 + $0xd8] sm:$0xff]
  %v3765 = vsel %vm911, %v3718, 0
  %v3768 = vsel %vm911, %v3719, 0
  %v3771 = vsel %vm911, %v3720, 0
  %v3774 = vsel %vm911, %v3721, 0
  %v3777 = vsel %vm911, %v3722, 0
  %v3780 = vsel %vm911, %v3723, 0
  %v3783 = vsel %vm911, %v3724, 0
  %v3786 = vsel %vm911, %v3725, 0
  %v3789 = vsel %vm911, %v3726, 0
  %v3792 = vsel %vm911, %v3727, 0
  %v3795 = vsel %vm911, %v3728, 0
  %v3798 = vsel %vm911, %v3729, 0
  %v3801 = vsel %vm911, %v3730, 0
  %v3804 = vsel %vm911, %v3731, 0
  %v3807 = vsel %vm911, %v3732, 0
  %v3810 = vsel %vm911, %v3733, 0
  %v3813 = vsel %vm911, %v3734, 0
  %v3816 = vsel %vm911, %v3735, 0
  %v3819 = vsel %vm911, %v3736, 0
  %v3822 = vsel %vm911, %v3737, 0
  %v3825 = vsel %vm911, %v3738, 0
  %v3828 = vsel %vm911, %v3739, 0
  %v3831 = vsel %vm911, %v3740, 0
  %v3834 = vsel %vm911, %v3741, 0
  %v3837 = vsel %vm911, %v3742, 0
  %v3840 = vsel %vm911, %v3743, 0
  %v3843 = vsel %vm911, %v3744, 0
  %v3846 = vsel %vm911, %v3745, 0
  %v3849 = vsel %vm911, %v3746, 0
  %v3852 = vsel %vm911, %v3747, 0
  %v3855 = vsel %vm911, %v3748, 0
  %v3858 = vsel %vm911, %v3749, 0
  %v3861 = vsel %vm911, %v3750, 0
  %v3864 = vsel %vm911, %v3751, 0
  %v3867 = vsel %vm911, %v3752, 0
  %v3870 = vsel %vm911, %v3753, 0
  %v3873 = vsel %vm911, %v3754, 0
  %v3876 = vsel %vm911, %v3755, 0
  %v3879 = vsel %vm911, %v3756, 0
  %v3882 = vsel %vm911, %v3757, 0
  %v3885 = vsel %vm911, %v3758, 0
  %v3888 = vsel %vm911, %v3759, 0
  %3890 = vmatpush.msra.mxu0 0.0
  %3891 = vmatpush.msra.mxu0 0.0
  %3892 = vmatpush.msra.mxu0 0.0
  %3893 = vmatpush.msra.mxu0 0.0
  %3894 = vmatpush.msra.mxu0 0.0
  %3895 = vmatpush.msra.mxu0 0.0
  %3896 = vmatpush.msra.mxu0 0.0
  %3897 = vmatpush.msra.mxu0 0.0
  %3898 = vmatpush.msra.mxu0 0.0
  %3899 = vmatpush.msra.mxu0 0.0
  %3900 = vmatpush.msra.mxu0 0.0
  %3901 = vmatpush.msra.mxu0 0.0
  %3902 = vmatpush.msra.mxu0 %v3763
  %3903 = vmatpush.msra.mxu0 %v3762
  %3904 = vmatpush.msra.mxu0 %v3761
  %3905 = vmatpush.msra.mxu0 %v3760
  %3906 = vmatmul.f32.gmra.mxu0 %v3765
  %v3907 = vpop.f32.mrf.mxu0
  %v3908 = vadd.f32 0.0, %v3907
  %3909 = vmatmul.f32.gmra.mxu0 %v3768
  %v3910 = vpop.f32.mrf.mxu0
  %v3911 = vadd.f32 0.0, %v3910
  %3912 = vmatmul.f32.gmra.mxu0 %v3771
  %v3913 = vpop.f32.mrf.mxu0
  %v3914 = vadd.f32 0.0, %v3913
  %3915 = vmatmul.f32.gmra.mxu0 %v3774
  %v3916 = vpop.f32.mrf.mxu0
  %v3917 = vadd.f32 0.0, %v3916
  %3918 = vmatmul.f32.gmra.mxu0 %v3777
  %v3919 = vpop.f32.mrf.mxu0
  %v3920 = vadd.f32 0.0, %v3919
  %3921 = vmatmul.f32.gmra.mxu0 %v3780
  %v3922 = vpop.f32.mrf.mxu0
  %v3923 = vadd.f32 0.0, %v3922
  %3924 = vmatmul.f32.gmra.mxu0 %v3783
  %v3925 = vpop.f32.mrf.mxu0
  %v3926 = vadd.f32 0.0, %v3925
  %3927 = vmatmul.f32.gmra.mxu0 %v3786
  %v3928 = vpop.f32.mrf.mxu0
  %v3929 = vadd.f32 0.0, %v3928
  %3930 = vmatmul.f32.gmra.mxu0 %v3789
  %v3931 = vpop.f32.mrf.mxu0
  %v3932 = vadd.f32 0.0, %v3931
  %3933 = vmatmul.f32.gmra.mxu0 %v3792
  %v3934 = vpop.f32.mrf.mxu0
  %v3935 = vadd.f32 0.0, %v3934
  %3936 = vmatmul.f32.gmra.mxu0 %v3795
  %v3937 = vpop.f32.mrf.mxu0
  %v3938 = vadd.f32 0.0, %v3937
  %3939 = vmatmul.f32.gmra.mxu0 %v3798
  %v3940 = vpop.f32.mrf.mxu0
  %v3941 = vadd.f32 0.0, %v3940
  %3942 = vmatmul.f32.gmra.mxu0 %v3801
  %v3943 = vpop.f32.mrf.mxu0
  %v3944 = vadd.f32 0.0, %v3943
  %3945 = vmatmul.f32.gmra.mxu0 %v3804
  %v3946 = vpop.f32.mrf.mxu0
  %v3947 = vadd.f32 0.0, %v3946
  %3948 = vmatmul.f32.gmra.mxu0 %v3807
  %v3949 = vpop.f32.mrf.mxu0
  %v3950 = vadd.f32 0.0, %v3949
  %3951 = vmatmul.f32.gmra.mxu0 %v3810
  %v3952 = vpop.f32.mrf.mxu0
  %v3953 = vadd.f32 0.0, %v3952
  %3954 = vmatmul.f32.gmra.mxu0 %v3813
  %v3955 = vpop.f32.mrf.mxu0
  %v3956 = vadd.f32 0.0, %v3955
  %3957 = vmatmul.f32.gmra.mxu0 %v3816
  %v3958 = vpop.f32.mrf.mxu0
  %v3959 = vadd.f32 0.0, %v3958
  %3960 = vmatmul.f32.gmra.mxu0 %v3819
  %v3961 = vpop.f32.mrf.mxu0
  %v3962 = vadd.f32 0.0, %v3961
  %3963 = vmatmul.f32.gmra.mxu0 %v3822
  %v3964 = vpop.f32.mrf.mxu0
  %v3965 = vadd.f32 0.0, %v3964
  %3966 = vmatmul.f32.gmra.mxu0 %v3825
  %v3967 = vpop.f32.mrf.mxu0
  %v3968 = vadd.f32 0.0, %v3967
  %3969 = vmatmul.f32.gmra.mxu0 %v3828
  %v3970 = vpop.f32.mrf.mxu0
  %v3971 = vadd.f32 0.0, %v3970
  %3972 = vmatmul.f32.gmra.mxu0 %v3831
  %v3973 = vpop.f32.mrf.mxu0
  %v3974 = vadd.f32 0.0, %v3973
  %3975 = vmatmul.f32.gmra.mxu0 %v3834
  %v3976 = vpop.f32.mrf.mxu0
  %v3977 = vadd.f32 0.0, %v3976
  %3978 = vmatmul.f32.gmra.mxu0 %v3837
  %v3979 = vpop.f32.mrf.mxu0
  %v3980 = vadd.f32 0.0, %v3979
  %3981 = vmatmul.f32.gmra.mxu0 %v3840
  %v3982 = vpop.f32.mrf.mxu0
  %v3983 = vadd.f32 0.0, %v3982
  %3984 = vmatmul.f32.gmra.mxu0 %v3843
  %v3985 = vpop.f32.mrf.mxu0
  %v3986 = vadd.f32 0.0, %v3985
  %3987 = vmatmul.f32.gmra.mxu0 %v3846
  %v3988 = vpop.f32.mrf.mxu0
  %v3989 = vadd.f32 0.0, %v3988
  %3990 = vmatmul.f32.gmra.mxu0 %v3849
  %v3991 = vpop.f32.mrf.mxu0
  %v3992 = vadd.f32 0.0, %v3991
  %3993 = vmatmul.f32.gmra.mxu0 %v3852
  %v3994 = vpop.f32.mrf.mxu0
  %v3995 = vadd.f32 0.0, %v3994
  %3996 = vmatmul.f32.gmra.mxu0 %v3855
  %v3997 = vpop.f32.mrf.mxu0
  %v3998 = vadd.f32 0.0, %v3997
  %3999 = vmatmul.f32.gmra.mxu0 %v3858
  %v4000 = vpop.f32.mrf.mxu0
  %v4001 = vadd.f32 0.0, %v4000
  %4002 = vmatmul.f32.gmra.mxu0 %v3861
  %v4003 = vpop.f32.mrf.mxu0
  %v4004 = vadd.f32 0.0, %v4003
  %4005 = vmatmul.f32.gmra.mxu0 %v3864
  %v4006 = vpop.f32.mrf.mxu0
  %v4007 = vadd.f32 0.0, %v4006
  %4008 = vmatmul.f32.gmra.mxu0 %v3867
  %v4009 = vpop.f32.mrf.mxu0
  %v4010 = vadd.f32 0.0, %v4009
  %4011 = vmatmul.f32.gmra.mxu0 %v3870
  %v4012 = vpop.f32.mrf.mxu0
  %v4013 = vadd.f32 0.0, %v4012
  %4014 = vmatmul.f32.gmra.mxu0 %v3873
  %v4015 = vpop.f32.mrf.mxu0
  %v4016 = vadd.f32 0.0, %v4015
  %4017 = vmatmul.f32.gmra.mxu0 %v3876
  %v4018 = vpop.f32.mrf.mxu0
  %v4019 = vadd.f32 0.0, %v4018
  %4020 = vmatmul.f32.gmra.mxu0 %v3879
  %v4021 = vpop.f32.mrf.mxu0
  %v4022 = vadd.f32 0.0, %v4021
  %4023 = vmatmul.f32.gmra.mxu0 %v3882
  %v4024 = vpop.f32.mrf.mxu0
  %v4025 = vadd.f32 0.0, %v4024
  %4026 = vmatmul.f32.gmra.mxu0 %v3885
  %v4027 = vpop.f32.mrf.mxu0
  %v4028 = vadd.f32 0.0, %v4027
  %4029 = vmatmul.f32.gmra.mxu0 %v3888
  %v4030 = vpop.f32.mrf.mxu0
  %v4031 = vadd.f32 0.0, %v4030
  %4032 = vdwg.mxu0
  %v4033 = vadd.f32 %v3508, %v3908
  %v4034 = vadd.f32 %v3509, %v3911
  %v4035 = vadd.f32 %v3510, %v3914
  %v4036 = vadd.f32 %v3511, %v3917
  %v4037 = vadd.f32 %v3512, %v3920
  %v4038 = vadd.f32 %v3513, %v3923
  %v4039 = vadd.f32 %v3514, %v3926
  %v4040 = vadd.f32 %v3515, %v3929
  %v4041 = vadd.f32 %v3516, %v3932
  %v4042 = vadd.f32 %v3517, %v3935
  %v4043 = vadd.f32 %v3518, %v3938
  %v4044 = vadd.f32 %v3519, %v3941
  %v4045 = vadd.f32 %v3520, %v3944
  %v4046 = vadd.f32 %v3521, %v3947
  %v4047 = vadd.f32 %v3522, %v3950
  %v4048 = vadd.f32 %v3523, %v3953
  %v4049 = vadd.f32 %v3524, %v3956
  %v4050 = vadd.f32 %v3525, %v3959
  %v4051 = vadd.f32 %v3526, %v3962
  %v4052 = vadd.f32 %v3527, %v3965
  %v4053 = vadd.f32 %v3528, %v3968
  %v4054 = vadd.f32 %v3529, %v3971
  %v4055 = vadd.f32 %v3530, %v3974
  %v4056 = vadd.f32 %v3531, %v3977
  %v4057 = vadd.f32 %v3532, %v3980
  %v4058 = vadd.f32 %v3533, %v3983
  %v4059 = vadd.f32 %v3534, %v3986
  %v4060 = vadd.f32 %v3535, %v3989
  %v4061 = vadd.f32 %v3536, %v3992
  %v4062 = vadd.f32 %v3537, %v3995
  %v4063 = vadd.f32 %v3538, %v3998
  %v4064 = vadd.f32 %v3539, %v4001
  %v4065 = vadd.f32 %v3540, %v4004
  %v4066 = vadd.f32 %v3541, %v4007
  %v4067 = vadd.f32 %v3542, %v4010
  %v4068 = vadd.f32 %v3543, %v4013
  %v4069 = vadd.f32 %v3544, %v4016
  %v4070 = vadd.f32 %v3545, %v4019
  %v4071 = vadd.f32 %v3546, %v4022
  %v4072 = vadd.f32 %v3547, %v4025
  %v4073 = vadd.f32 %v3548, %v4028
  %v4074 = vadd.f32 %v3549, %v4031
  %4075 = vset.pattern.permute.xlu0 7
  %4076 = vperm.xlu0 %4075, %v399
  %v4077 = vpop.permute.xlu0 %4076
  %4079 = vset.pattern.permute.xlu0 7
  %4080 = vperm.xlu0 %4079, %v400
  %v4081 = vpop.permute.xlu0 %4080
  %4083 = vset.pattern.permute.xlu0 7
  %4084 = vperm.xlu0 %4083, %v401
  %v4085 = vpop.permute.xlu0 %4084
  %4087 = vset.pattern.permute.xlu0 7
  %4088 = vperm.xlu0 %4087, %v402
  %v4089 = vpop.permute.xlu0 %4088
  %4091 = vset.pattern.permute.xlu0 7
  %4092 = vperm.xlu0 %4091, %v403
  %v4093 = vpop.permute.xlu0 %4092
  %4095 = vset.pattern.permute.xlu0 7
  %4096 = vperm.xlu0 %4095, %v404
  %v4097 = vpop.permute.xlu0 %4096
  %4099 = vset.pattern.permute.xlu0 7
  %4100 = vperm.xlu0 %4099, %v405
  %v4101 = vpop.permute.xlu0 %4100
  %4103 = vset.pattern.permute.xlu0 7
  %4104 = vperm.xlu0 %4103, %v406
  %v4105 = vpop.permute.xlu0 %4104
  %4107 = vset.pattern.permute.xlu0 7
  %4108 = vperm.xlu0 %4107, %v407
  %v4109 = vpop.permute.xlu0 %4108
  %4111 = vset.pattern.permute.xlu0 7
  %4112 = vperm.xlu0 %4111, %v408
  %v4113 = vpop.permute.xlu0 %4112
  %4115 = vset.pattern.permute.xlu0 7
  %4116 = vperm.xlu0 %4115, %v409
  %v4117 = vpop.permute.xlu0 %4116
  %4119 = vset.pattern.permute.xlu0 7
  %4120 = vperm.xlu0 %4119, %v410
  %v4121 = vpop.permute.xlu0 %4120
  %4123 = vset.pattern.permute.xlu0 7
  %4124 = vperm.xlu0 %4123, %v411
  %v4125 = vpop.permute.xlu0 %4124
  %4127 = vset.pattern.permute.xlu0 7
  %4128 = vperm.xlu0 %4127, %v412
  %v4129 = vpop.permute.xlu0 %4128
  %4131 = vset.pattern.permute.xlu0 7
  %4132 = vperm.xlu0 %4131, %v413
  %v4133 = vpop.permute.xlu0 %4132
  %4135 = vset.pattern.permute.xlu0 7
  %4136 = vperm.xlu0 %4135, %v414
  %v4137 = vpop.permute.xlu0 %4136
  %4139 = vset.pattern.permute.xlu0 7
  %4140 = vperm.xlu0 %4139, %v415
  %v4141 = vpop.permute.xlu0 %4140
  %4143 = vset.pattern.permute.xlu0 7
  %4144 = vperm.xlu0 %4143, %v416
  %v4145 = vpop.permute.xlu0 %4144
  %4147 = vset.pattern.permute.xlu0 7
  %4148 = vperm.xlu0 %4147, %v417
  %v4149 = vpop.permute.xlu0 %4148
  %4151 = vset.pattern.permute.xlu0 7
  %4152 = vperm.xlu0 %4151, %v418
  %v4153 = vpop.permute.xlu0 %4152
  %4155 = vset.pattern.permute.xlu0 7
  %4156 = vperm.xlu0 %4155, %v419
  %v4157 = vpop.permute.xlu0 %4156
  %4159 = vset.pattern.permute.xlu0 7
  %4160 = vperm.xlu0 %4159, %v420
  %v4161 = vpop.permute.xlu0 %4160
  %4163 = vset.pattern.permute.xlu0 7
  %4164 = vperm.xlu0 %4163, %v421
  %v4165 = vpop.permute.xlu0 %4164
  %4167 = vset.pattern.permute.xlu0 7
  %4168 = vperm.xlu0 %4167, %v422
  %v4169 = vpop.permute.xlu0 %4168
  %4171 = vset.pattern.permute.xlu0 7
  %4172 = vperm.xlu0 %4171, %v423
  %v4173 = vpop.permute.xlu0 %4172
  %4175 = vset.pattern.permute.xlu0 7
  %4176 = vperm.xlu0 %4175, %v424
  %v4177 = vpop.permute.xlu0 %4176
  %4179 = vset.pattern.permute.xlu0 7
  %4180 = vperm.xlu0 %4179, %v425
  %v4181 = vpop.permute.xlu0 %4180
  %4183 = vset.pattern.permute.xlu0 7
  %4184 = vperm.xlu0 %4183, %v426
  %v4185 = vpop.permute.xlu0 %4184
  %4187 = vset.pattern.permute.xlu0 7
  %4188 = vperm.xlu0 %4187, %v427
  %v4189 = vpop.permute.xlu0 %4188
  %4191 = vset.pattern.permute.xlu0 7
  %4192 = vperm.xlu0 %4191, %v428
  %v4193 = vpop.permute.xlu0 %4192
  %4195 = vset.pattern.permute.xlu0 7
  %4196 = vperm.xlu0 %4195, %v429
  %v4197 = vpop.permute.xlu0 %4196
  %4199 = vset.pattern.permute.xlu0 7
  %4200 = vperm.xlu0 %4199, %v430
  %v4201 = vpop.permute.xlu0 %4200
  %4203 = vset.pattern.permute.xlu0 7
  %4204 = vperm.xlu0 %4203, %v431
  %v4205 = vpop.permute.xlu0 %4204
  %4207 = vset.pattern.permute.xlu0 7
  %4208 = vperm.xlu0 %4207, %v432
  %v4209 = vpop.permute.xlu0 %4208
  %4211 = vset.pattern.permute.xlu0 7
  %4212 = vperm.xlu0 %4211, %v433
  %v4213 = vpop.permute.xlu0 %4212
  %4215 = vset.pattern.permute.xlu0 7
  %4216 = vperm.xlu0 %4215, %v434
  %v4217 = vpop.permute.xlu0 %4216
  %4219 = vset.pattern.permute.xlu0 7
  %4220 = vperm.xlu0 %4219, %v435
  %v4221 = vpop.permute.xlu0 %4220
  %4223 = vset.pattern.permute.xlu0 7
  %4224 = vperm.xlu0 %4223, %v436
  %v4225 = vpop.permute.xlu0 %4224
  %4227 = vset.pattern.permute.xlu0 7
  %4228 = vperm.xlu0 %4227, %v437
  %v4229 = vpop.permute.xlu0 %4228
  %4231 = vset.pattern.permute.xlu0 7
  %4232 = vperm.xlu0 %4231, %v438
  %v4233 = vpop.permute.xlu0 %4232
  %4235 = vset.pattern.permute.xlu0 7
  %4236 = vperm.xlu0 %4235, %v439
  %v4237 = vpop.permute.xlu0 %4236
  %4239 = vset.pattern.permute.xlu0 7
  %4240 = vperm.xlu0 %4239, %v440
  %v4241 = vpop.permute.xlu0 %4240
  %v4243 = vmul.f32 %v364, %v4077
  %v4244 = vmul.f32 %v365, %v4081
  %v4245 = vmul.f32 %v366, %v4085
  %v4246 = vmul.f32 %v367, %v4089
  %v4247 = vmul.f32 %v368, %v4093
  %v4248 = vmul.f32 %v369, %v4097
  %v4249 = vmul.f32 %v370, %v4101
  %v4250 = vmul.f32 %v371, %v4105
  %v4251 = vmul.f32 %v372, %v4109
  %v4252 = vmul.f32 %v373, %v4113
  %v4253 = vmul.f32 %v374, %v4117
  %v4254 = vmul.f32 %v375, %v4121
  %v4255 = vmul.f32 %v376, %v4125
  %v4256 = vmul.f32 %v377, %v4129
  %v4257 = vmul.f32 %v378, %v4133
  %v4258 = vmul.f32 %v379, %v4137
  %v4259 = vmul.f32 %v380, %v4141
  %v4260 = vmul.f32 %v381, %v4145
  %v4261 = vmul.f32 %v382, %v4149
  %v4262 = vmul.f32 %v383, %v4153
  %v4263 = vmul.f32 %v384, %v4157
  %v4264 = vmul.f32 %v385, %v4161
  %v4265 = vmul.f32 %v386, %v4165
  %v4266 = vmul.f32 %v387, %v4169
  %v4267 = vmul.f32 %v388, %v4173
  %v4268 = vmul.f32 %v389, %v4177
  %v4269 = vmul.f32 %v390, %v4181
  %v4270 = vmul.f32 %v391, %v4185
  %v4271 = vmul.f32 %v392, %v4189
  %v4272 = vmul.f32 %v393, %v4193
  %v4273 = vmul.f32 %v394, %v4197
  %v4274 = vmul.f32 %v395, %v4201
  %v4275 = vmul.f32 %v396, %v4205
  %v4276 = vmul.f32 %v397, %v4209
  %v4277 = vmul.f32 %v398, %v4213
  %v4278 = vmul.f32 %v4217, 0.0
  %v4279 = vmul.f32 %v4221, 0.0
  %v4280 = vmul.f32 %v4225, 0.0
  %v4281 = vmul.f32 %v4229, 0.0
  %v4282 = vmul.f32 %v4233, 0.0
  %v4283 = vmul.f32 %v4237, 0.0
  %v4284 = vmul.f32 %v4241, 0.0
  %v4285 = vld [vmem:[%s4 + $0xe0] sm:$0xff]
  %v4286 = vld [vmem:[%s4 + $0xe8] sm:$0xff]
  %v4287 = vld [vmem:[%s4 + $0xf0] sm:$0xff]
  %v4288 = vld [vmem:[%s4 + $0xf8] sm:$0xff]
  %v4290 = vsel %vm911, %v4243, 0
  %v4293 = vsel %vm911, %v4244, 0
  %v4296 = vsel %vm911, %v4245, 0
  %v4299 = vsel %vm911, %v4246, 0
  %v4302 = vsel %vm911, %v4247, 0
  %v4305 = vsel %vm911, %v4248, 0
  %v4308 = vsel %vm911, %v4249, 0
  %v4311 = vsel %vm911, %v4250, 0
  %v4314 = vsel %vm911, %v4251, 0
  %v4317 = vsel %vm911, %v4252, 0
  %v4320 = vsel %vm911, %v4253, 0
  %v4323 = vsel %vm911, %v4254, 0
  %v4326 = vsel %vm911, %v4255, 0
  %v4329 = vsel %vm911, %v4256, 0
  %v4332 = vsel %vm911, %v4257, 0
  %v4335 = vsel %vm911, %v4258, 0
  %v4338 = vsel %vm911, %v4259, 0
  %v4341 = vsel %vm911, %v4260, 0
  %v4344 = vsel %vm911, %v4261, 0
  %v4347 = vsel %vm911, %v4262, 0
  %v4350 = vsel %vm911, %v4263, 0
  %v4353 = vsel %vm911, %v4264, 0
  %v4356 = vsel %vm911, %v4265, 0
  %v4359 = vsel %vm911, %v4266, 0
  %v4362 = vsel %vm911, %v4267, 0
  %v4365 = vsel %vm911, %v4268, 0
  %v4368 = vsel %vm911, %v4269, 0
  %v4371 = vsel %vm911, %v4270, 0
  %v4374 = vsel %vm911, %v4271, 0
  %v4377 = vsel %vm911, %v4272, 0
  %v4380 = vsel %vm911, %v4273, 0
  %v4383 = vsel %vm911, %v4274, 0
  %v4386 = vsel %vm911, %v4275, 0
  %v4389 = vsel %vm911, %v4276, 0
  %v4392 = vsel %vm911, %v4277, 0
  %v4395 = vsel %vm911, %v4278, 0
  %v4398 = vsel %vm911, %v4279, 0
  %v4401 = vsel %vm911, %v4280, 0
  %v4404 = vsel %vm911, %v4281, 0
  %v4407 = vsel %vm911, %v4282, 0
  %v4410 = vsel %vm911, %v4283, 0
  %v4413 = vsel %vm911, %v4284, 0
  %4415 = vmatpush.msra.mxu0 0.0
  %4416 = vmatpush.msra.mxu0 0.0
  %4417 = vmatpush.msra.mxu0 0.0
  %4418 = vmatpush.msra.mxu0 0.0
  %4419 = vmatpush.msra.mxu0 0.0
  %4420 = vmatpush.msra.mxu0 0.0
  %4421 = vmatpush.msra.mxu0 0.0
  %4422 = vmatpush.msra.mxu0 0.0
  %4423 = vmatpush.msra.mxu0 0.0
  %4424 = vmatpush.msra.mxu0 0.0
  %4425 = vmatpush.msra.mxu0 0.0
  %4426 = vmatpush.msra.mxu0 0.0
  %4427 = vmatpush.msra.mxu0 %v4288
  %4428 = vmatpush.msra.mxu0 %v4287
  %4429 = vmatpush.msra.mxu0 %v4286
  %4430 = vmatpush.msra.mxu0 %v4285
  %4431 = vmatmul.f32.gmra.mxu0 %v4290
  %v4432 = vpop.f32.mrf.mxu0
  %v4433 = vadd.f32 0.0, %v4432
  %4434 = vmatmul.f32.gmra.mxu0 %v4293
  %v4435 = vpop.f32.mrf.mxu0
  %v4436 = vadd.f32 0.0, %v4435
  %4437 = vmatmul.f32.gmra.mxu0 %v4296
  %v4438 = vpop.f32.mrf.mxu0
  %v4439 = vadd.f32 0.0, %v4438
  %4440 = vmatmul.f32.gmra.mxu0 %v4299
  %v4441 = vpop.f32.mrf.mxu0
  %v4442 = vadd.f32 0.0, %v4441
  %4443 = vmatmul.f32.gmra.mxu0 %v4302
  %v4444 = vpop.f32.mrf.mxu0
  %v4445 = vadd.f32 0.0, %v4444
  %4446 = vmatmul.f32.gmra.mxu0 %v4305
  %v4447 = vpop.f32.mrf.mxu0
  %v4448 = vadd.f32 0.0, %v4447
  %4449 = vmatmul.f32.gmra.mxu0 %v4308
  %v4450 = vpop.f32.mrf.mxu0
  %v4451 = vadd.f32 0.0, %v4450
  %4452 = vmatmul.f32.gmra.mxu0 %v4311
  %v4453 = vpop.f32.mrf.mxu0
  %v4454 = vadd.f32 0.0, %v4453
  %4455 = vmatmul.f32.gmra.mxu0 %v4314
  %v4456 = vpop.f32.mrf.mxu0
  %v4457 = vadd.f32 0.0, %v4456
  %4458 = vmatmul.f32.gmra.mxu0 %v4317
  %v4459 = vpop.f32.mrf.mxu0
  %v4460 = vadd.f32 0.0, %v4459
  %4461 = vmatmul.f32.gmra.mxu0 %v4320
  %v4462 = vpop.f32.mrf.mxu0
  %v4463 = vadd.f32 0.0, %v4462
  %4464 = vmatmul.f32.gmra.mxu0 %v4323
  %v4465 = vpop.f32.mrf.mxu0
  %v4466 = vadd.f32 0.0, %v4465
  %4467 = vmatmul.f32.gmra.mxu0 %v4326
  %v4468 = vpop.f32.mrf.mxu0
  %v4469 = vadd.f32 0.0, %v4468
  %4470 = vmatmul.f32.gmra.mxu0 %v4329
  %v4471 = vpop.f32.mrf.mxu0
  %v4472 = vadd.f32 0.0, %v4471
  %4473 = vmatmul.f32.gmra.mxu0 %v4332
  %v4474 = vpop.f32.mrf.mxu0
  %v4475 = vadd.f32 0.0, %v4474
  %4476 = vmatmul.f32.gmra.mxu0 %v4335
  %v4477 = vpop.f32.mrf.mxu0
  %v4478 = vadd.f32 0.0, %v4477
  %4479 = vmatmul.f32.gmra.mxu0 %v4338
  %v4480 = vpop.f32.mrf.mxu0
  %v4481 = vadd.f32 0.0, %v4480
  %4482 = vmatmul.f32.gmra.mxu0 %v4341
  %v4483 = vpop.f32.mrf.mxu0
  %v4484 = vadd.f32 0.0, %v4483
  %4485 = vmatmul.f32.gmra.mxu0 %v4344
  %v4486 = vpop.f32.mrf.mxu0
  %v4487 = vadd.f32 0.0, %v4486
  %4488 = vmatmul.f32.gmra.mxu0 %v4347
  %v4489 = vpop.f32.mrf.mxu0
  %v4490 = vadd.f32 0.0, %v4489
  %4491 = vmatmul.f32.gmra.mxu0 %v4350
  %v4492 = vpop.f32.mrf.mxu0
  %v4493 = vadd.f32 0.0, %v4492
  %4494 = vmatmul.f32.gmra.mxu0 %v4353
  %v4495 = vpop.f32.mrf.mxu0
  %v4496 = vadd.f32 0.0, %v4495
  %4497 = vmatmul.f32.gmra.mxu0 %v4356
  %v4498 = vpop.f32.mrf.mxu0
  %v4499 = vadd.f32 0.0, %v4498
  %4500 = vmatmul.f32.gmra.mxu0 %v4359
  %v4501 = vpop.f32.mrf.mxu0
  %v4502 = vadd.f32 0.0, %v4501
  %4503 = vmatmul.f32.gmra.mxu0 %v4362
  %v4504 = vpop.f32.mrf.mxu0
  %v4505 = vadd.f32 0.0, %v4504
  %4506 = vmatmul.f32.gmra.mxu0 %v4365
  %v4507 = vpop.f32.mrf.mxu0
  %v4508 = vadd.f32 0.0, %v4507
  %4509 = vmatmul.f32.gmra.mxu0 %v4368
  %v4510 = vpop.f32.mrf.mxu0
  %v4511 = vadd.f32 0.0, %v4510
  %4512 = vmatmul.f32.gmra.mxu0 %v4371
  %v4513 = vpop.f32.mrf.mxu0
  %v4514 = vadd.f32 0.0, %v4513
  %4515 = vmatmul.f32.gmra.mxu0 %v4374
  %v4516 = vpop.f32.mrf.mxu0
  %v4517 = vadd.f32 0.0, %v4516
  %4518 = vmatmul.f32.gmra.mxu0 %v4377
  %v4519 = vpop.f32.mrf.mxu0
  %v4520 = vadd.f32 0.0, %v4519
  %4521 = vmatmul.f32.gmra.mxu0 %v4380
  %v4522 = vpop.f32.mrf.mxu0
  %v4523 = vadd.f32 0.0, %v4522
  %4524 = vmatmul.f32.gmra.mxu0 %v4383
  %v4525 = vpop.f32.mrf.mxu0
  %v4526 = vadd.f32 0.0, %v4525
  %4527 = vmatmul.f32.gmra.mxu0 %v4386
  %v4528 = vpop.f32.mrf.mxu0
  %v4529 = vadd.f32 0.0, %v4528
  %4530 = vmatmul.f32.gmra.mxu0 %v4389
  %v4531 = vpop.f32.mrf.mxu0
  %v4532 = vadd.f32 0.0, %v4531
  %4533 = vmatmul.f32.gmra.mxu0 %v4392
  %v4534 = vpop.f32.mrf.mxu0
  %v4535 = vadd.f32 0.0, %v4534
  %4536 = vmatmul.f32.gmra.mxu0 %v4395
  %v4537 = vpop.f32.mrf.mxu0
  %v4538 = vadd.f32 0.0, %v4537
  %4539 = vmatmul.f32.gmra.mxu0 %v4398
  %v4540 = vpop.f32.mrf.mxu0
  %v4541 = vadd.f32 0.0, %v4540
  %4542 = vmatmul.f32.gmra.mxu0 %v4401
  %v4543 = vpop.f32.mrf.mxu0
  %v4544 = vadd.f32 0.0, %v4543
  %4545 = vmatmul.f32.gmra.mxu0 %v4404
  %v4546 = vpop.f32.mrf.mxu0
  %v4547 = vadd.f32 0.0, %v4546
  %4548 = vmatmul.f32.gmra.mxu0 %v4407
  %v4549 = vpop.f32.mrf.mxu0
  %v4550 = vadd.f32 0.0, %v4549
  %4551 = vmatmul.f32.gmra.mxu0 %v4410
  %v4552 = vpop.f32.mrf.mxu0
  %v4553 = vadd.f32 0.0, %v4552
  %4554 = vmatmul.f32.gmra.mxu0 %v4413
  %v4555 = vpop.f32.mrf.mxu0
  %v4556 = vadd.f32 0.0, %v4555
  %4557 = vdwg.mxu0
  %v4558 = vadd.f32 %v4033, %v4433
  %v4559 = vadd.f32 %v4034, %v4436
  %v4560 = vadd.f32 %v4035, %v4439
  %v4561 = vadd.f32 %v4036, %v4442
  %v4562 = vadd.f32 %v4037, %v4445
  %v4563 = vadd.f32 %v4038, %v4448
  %v4564 = vadd.f32 %v4039, %v4451
  %v4565 = vadd.f32 %v4040, %v4454
  %v4566 = vadd.f32 %v4041, %v4457
  %v4567 = vadd.f32 %v4042, %v4460
  %v4568 = vadd.f32 %v4043, %v4463
  %v4569 = vadd.f32 %v4044, %v4466
  %v4570 = vadd.f32 %v4045, %v4469
  %v4571 = vadd.f32 %v4046, %v4472
  %v4572 = vadd.f32 %v4047, %v4475
  %v4573 = vadd.f32 %v4048, %v4478
  %v4574 = vadd.f32 %v4049, %v4481
  %v4575 = vadd.f32 %v4050, %v4484
  %v4576 = vadd.f32 %v4051, %v4487
  %v4577 = vadd.f32 %v4052, %v4490
  %v4578 = vadd.f32 %v4053, %v4493
  %v4579 = vadd.f32 %v4054, %v4496
  %v4580 = vadd.f32 %v4055, %v4499
  %v4581 = vadd.f32 %v4056, %v4502
  %v4582 = vadd.f32 %v4057, %v4505
  %v4583 = vadd.f32 %v4058, %v4508
  %v4584 = vadd.f32 %v4059, %v4511
  %v4585 = vadd.f32 %v4060, %v4514
  %v4586 = vadd.f32 %v4061, %v4517
  %v4587 = vadd.f32 %v4062, %v4520
  %v4588 = vadd.f32 %v4063, %v4523
  %v4589 = vadd.f32 %v4064, %v4526
  %v4590 = vadd.f32 %v4065, %v4529
  %v4591 = vadd.f32 %v4066, %v4532
  %v4592 = vadd.f32 %v4067, %v4535
  %v4593 = vadd.f32 %v4068, %v4538
  %v4594 = vadd.f32 %v4069, %v4541
  %v4595 = vadd.f32 %v4070, %v4544
  %v4596 = vadd.f32 %v4071, %v4547
  %v4597 = vadd.f32 %v4072, %v4550
  %v4598 = vadd.f32 %v4073, %v4553
  %v4599 = vadd.f32 %v4074, %v4556
  %4600 = vset.pattern.permute.xlu0 8
  %4601 = vperm.xlu0 %4600, %v399
  %v4602 = vpop.permute.xlu0 %4601
  %4604 = vset.pattern.permute.xlu0 8
  %4605 = vperm.xlu0 %4604, %v400
  %v4606 = vpop.permute.xlu0 %4605
  %4608 = vset.pattern.permute.xlu0 8
  %4609 = vperm.xlu0 %4608, %v401
  %v4610 = vpop.permute.xlu0 %4609
  %4612 = vset.pattern.permute.xlu0 8
  %4613 = vperm.xlu0 %4612, %v402
  %v4614 = vpop.permute.xlu0 %4613
  %4616 = vset.pattern.permute.xlu0 8
  %4617 = vperm.xlu0 %4616, %v403
  %v4618 = vpop.permute.xlu0 %4617
  %4620 = vset.pattern.permute.xlu0 8
  %4621 = vperm.xlu0 %4620, %v404
  %v4622 = vpop.permute.xlu0 %4621
  %4624 = vset.pattern.permute.xlu0 8
  %4625 = vperm.xlu0 %4624, %v405
  %v4626 = vpop.permute.xlu0 %4625
  %4628 = vset.pattern.permute.xlu0 8
  %4629 = vperm.xlu0 %4628, %v406
  %v4630 = vpop.permute.xlu0 %4629
  %4632 = vset.pattern.permute.xlu0 8
  %4633 = vperm.xlu0 %4632, %v407
  %v4634 = vpop.permute.xlu0 %4633
  %4636 = vset.pattern.permute.xlu0 8
  %4637 = vperm.xlu0 %4636, %v408
  %v4638 = vpop.permute.xlu0 %4637
  %4640 = vset.pattern.permute.xlu0 8
  %4641 = vperm.xlu0 %4640, %v409
  %v4642 = vpop.permute.xlu0 %4641
  %4644 = vset.pattern.permute.xlu0 8
  %4645 = vperm.xlu0 %4644, %v410
  %v4646 = vpop.permute.xlu0 %4645
  %4648 = vset.pattern.permute.xlu0 8
  %4649 = vperm.xlu0 %4648, %v411
  %v4650 = vpop.permute.xlu0 %4649
  %4652 = vset.pattern.permute.xlu0 8
  %4653 = vperm.xlu0 %4652, %v412
  %v4654 = vpop.permute.xlu0 %4653
  %4656 = vset.pattern.permute.xlu0 8
  %4657 = vperm.xlu0 %4656, %v413
  %v4658 = vpop.permute.xlu0 %4657
  %4660 = vset.pattern.permute.xlu0 8
  %4661 = vperm.xlu0 %4660, %v414
  %v4662 = vpop.permute.xlu0 %4661
  %4664 = vset.pattern.permute.xlu0 8
  %4665 = vperm.xlu0 %4664, %v415
  %v4666 = vpop.permute.xlu0 %4665
  %4668 = vset.pattern.permute.xlu0 8
  %4669 = vperm.xlu0 %4668, %v416
  %v4670 = vpop.permute.xlu0 %4669
  %4672 = vset.pattern.permute.xlu0 8
  %4673 = vperm.xlu0 %4672, %v417
  %v4674 = vpop.permute.xlu0 %4673
  %4676 = vset.pattern.permute.xlu0 8
  %4677 = vperm.xlu0 %4676, %v418
  %v4678 = vpop.permute.xlu0 %4677
  %4680 = vset.pattern.permute.xlu0 8
  %4681 = vperm.xlu0 %4680, %v419
  %v4682 = vpop.permute.xlu0 %4681
  %4684 = vset.pattern.permute.xlu0 8
  %4685 = vperm.xlu0 %4684, %v420
  %v4686 = vpop.permute.xlu0 %4685
  %4688 = vset.pattern.permute.xlu0 8
  %4689 = vperm.xlu0 %4688, %v421
  %v4690 = vpop.permute.xlu0 %4689
  %4692 = vset.pattern.permute.xlu0 8
  %4693 = vperm.xlu0 %4692, %v422
  %v4694 = vpop.permute.xlu0 %4693
  %4696 = vset.pattern.permute.xlu0 8
  %4697 = vperm.xlu0 %4696, %v423
  %v4698 = vpop.permute.xlu0 %4697
  %4700 = vset.pattern.permute.xlu0 8
  %4701 = vperm.xlu0 %4700, %v424
  %v4702 = vpop.permute.xlu0 %4701
  %4704 = vset.pattern.permute.xlu0 8
  %4705 = vperm.xlu0 %4704, %v425
  %v4706 = vpop.permute.xlu0 %4705
  %4708 = vset.pattern.permute.xlu0 8
  %4709 = vperm.xlu0 %4708, %v426
  %v4710 = vpop.permute.xlu0 %4709
  %4712 = vset.pattern.permute.xlu0 8
  %4713 = vperm.xlu0 %4712, %v427
  %v4714 = vpop.permute.xlu0 %4713
  %4716 = vset.pattern.permute.xlu0 8
  %4717 = vperm.xlu0 %4716, %v428
  %v4718 = vpop.permute.xlu0 %4717
  %4720 = vset.pattern.permute.xlu0 8
  %4721 = vperm.xlu0 %4720, %v429
  %v4722 = vpop.permute.xlu0 %4721
  %4724 = vset.pattern.permute.xlu0 8
  %4725 = vperm.xlu0 %4724, %v430
  %v4726 = vpop.permute.xlu0 %4725
  %4728 = vset.pattern.permute.xlu0 8
  %4729 = vperm.xlu0 %4728, %v431
  %v4730 = vpop.permute.xlu0 %4729
  %4732 = vset.pattern.permute.xlu0 8
  %4733 = vperm.xlu0 %4732, %v432
  %v4734 = vpop.permute.xlu0 %4733
  %4736 = vset.pattern.permute.xlu0 8
  %4737 = vperm.xlu0 %4736, %v433
  %v4738 = vpop.permute.xlu0 %4737
  %4740 = vset.pattern.permute.xlu0 8
  %4741 = vperm.xlu0 %4740, %v434
  %v4742 = vpop.permute.xlu0 %4741
  %4744 = vset.pattern.permute.xlu0 8
  %4745 = vperm.xlu0 %4744, %v435
  %v4746 = vpop.permute.xlu0 %4745
  %4748 = vset.pattern.permute.xlu0 8
  %4749 = vperm.xlu0 %4748, %v436
  %v4750 = vpop.permute.xlu0 %4749
  %4752 = vset.pattern.permute.xlu0 8
  %4753 = vperm.xlu0 %4752, %v437
  %v4754 = vpop.permute.xlu0 %4753
  %4756 = vset.pattern.permute.xlu0 8
  %4757 = vperm.xlu0 %4756, %v438
  %v4758 = vpop.permute.xlu0 %4757
  %4760 = vset.pattern.permute.xlu0 8
  %4761 = vperm.xlu0 %4760, %v439
  %v4762 = vpop.permute.xlu0 %4761
  %4764 = vset.pattern.permute.xlu0 8
  %4765 = vperm.xlu0 %4764, %v440
  %v4766 = vpop.permute.xlu0 %4765
  %v4768 = vmul.f32 %v365, %v4602
  %v4769 = vmul.f32 %v366, %v4606
  %v4770 = vmul.f32 %v367, %v4610
  %v4771 = vmul.f32 %v368, %v4614
  %v4772 = vmul.f32 %v369, %v4618
  %v4773 = vmul.f32 %v370, %v4622
  %v4774 = vmul.f32 %v371, %v4626
  %v4775 = vmul.f32 %v372, %v4630
  %v4776 = vmul.f32 %v373, %v4634
  %v4777 = vmul.f32 %v374, %v4638
  %v4778 = vmul.f32 %v375, %v4642
  %v4779 = vmul.f32 %v376, %v4646
  %v4780 = vmul.f32 %v377, %v4650
  %v4781 = vmul.f32 %v378, %v4654
  %v4782 = vmul.f32 %v379, %v4658
  %v4783 = vmul.f32 %v380, %v4662
  %v4784 = vmul.f32 %v381, %v4666
  %v4785 = vmul.f32 %v382, %v4670
  %v4786 = vmul.f32 %v383, %v4674
  %v4787 = vmul.f32 %v384, %v4678
  %v4788 = vmul.f32 %v385, %v4682
  %v4789 = vmul.f32 %v386, %v4686
  %v4790 = vmul.f32 %v387, %v4690
  %v4791 = vmul.f32 %v388, %v4694
  %v4792 = vmul.f32 %v389, %v4698
  %v4793 = vmul.f32 %v390, %v4702
  %v4794 = vmul.f32 %v391, %v4706
  %v4795 = vmul.f32 %v392, %v4710
  %v4796 = vmul.f32 %v393, %v4714
  %v4797 = vmul.f32 %v394, %v4718
  %v4798 = vmul.f32 %v395, %v4722
  %v4799 = vmul.f32 %v396, %v4726
  %v4800 = vmul.f32 %v397, %v4730
  %v4801 = vmul.f32 %v398, %v4734
  %v4802 = vmul.f32 %v4738, 0.0
  %v4803 = vmul.f32 %v4742, 0.0
  %v4804 = vmul.f32 %v4746, 0.0
  %v4805 = vmul.f32 %v4750, 0.0
  %v4806 = vmul.f32 %v4754, 0.0
  %v4807 = vmul.f32 %v4758, 0.0
  %v4808 = vmul.f32 %v4762, 0.0
  %v4809 = vmul.f32 %v4766, 0.0
  %v4810 = vld [vmem:[%s4 + $0x100] sm:$0xff]
  %v4811 = vld [vmem:[%s4 + $0x108] sm:$0xff]
  %v4812 = vld [vmem:[%s4 + $0x110] sm:$0xff]
  %v4813 = vld [vmem:[%s4 + $0x118] sm:$0xff]
  %v4815 = vsel %vm911, %v4768, 0
  %v4818 = vsel %vm911, %v4769, 0
  %v4821 = vsel %vm911, %v4770, 0
  %v4824 = vsel %vm911, %v4771, 0
  %v4827 = vsel %vm911, %v4772, 0
  %v4830 = vsel %vm911, %v4773, 0
  %v4833 = vsel %vm911, %v4774, 0
  %v4836 = vsel %vm911, %v4775, 0
  %v4839 = vsel %vm911, %v4776, 0
  %v4842 = vsel %vm911, %v4777, 0
  %v4845 = vsel %vm911, %v4778, 0
  %v4848 = vsel %vm911, %v4779, 0
  %v4851 = vsel %vm911, %v4780, 0
  %v4854 = vsel %vm911, %v4781, 0
  %v4857 = vsel %vm911, %v4782, 0
  %v4860 = vsel %vm911, %v4783, 0
  %v4863 = vsel %vm911, %v4784, 0
  %v4866 = vsel %vm911, %v4785, 0
  %v4869 = vsel %vm911, %v4786, 0
  %v4872 = vsel %vm911, %v4787, 0
  %v4875 = vsel %vm911, %v4788, 0
  %v4878 = vsel %vm911, %v4789, 0
  %v4881 = vsel %vm911, %v4790, 0
  %v4884 = vsel %vm911, %v4791, 0
  %v4887 = vsel %vm911, %v4792, 0
  %v4890 = vsel %vm911, %v4793, 0
  %v4893 = vsel %vm911, %v4794, 0
  %v4896 = vsel %vm911, %v4795, 0
  %v4899 = vsel %vm911, %v4796, 0
  %v4902 = vsel %vm911, %v4797, 0
  %v4905 = vsel %vm911, %v4798, 0
  %v4908 = vsel %vm911, %v4799, 0
  %v4911 = vsel %vm911, %v4800, 0
  %v4914 = vsel %vm911, %v4801, 0
  %v4917 = vsel %vm911, %v4802, 0
  %v4920 = vsel %vm911, %v4803, 0
  %v4923 = vsel %vm911, %v4804, 0
  %v4926 = vsel %vm911, %v4805, 0
  %v4929 = vsel %vm911, %v4806, 0
  %v4932 = vsel %vm911, %v4807, 0
  %v4935 = vsel %vm911, %v4808, 0
  %v4938 = vsel %vm911, %v4809, 0
  %4940 = vmatpush.msra.mxu0 0.0
  %4941 = vmatpush.msra.mxu0 0.0
  %4942 = vmatpush.msra.mxu0 0.0
  %4943 = vmatpush.msra.mxu0 0.0
  %4944 = vmatpush.msra.mxu0 0.0
  %4945 = vmatpush.msra.mxu0 0.0
  %4946 = vmatpush.msra.mxu0 0.0
  %4947 = vmatpush.msra.mxu0 0.0
  %4948 = vmatpush.msra.mxu0 0.0
  %4949 = vmatpush.msra.mxu0 0.0
  %4950 = vmatpush.msra.mxu0 0.0
  %4951 = vmatpush.msra.mxu0 0.0
  %4952 = vmatpush.msra.mxu0 %v4813
  %4953 = vmatpush.msra.mxu0 %v4812
  %4954 = vmatpush.msra.mxu0 %v4811
  %4955 = vmatpush.msra.mxu0 %v4810
  %4956 = vmatmul.f32.gmra.mxu0 %v4815
  %v4957 = vpop.f32.mrf.mxu0
  %v4958 = vadd.f32 0.0, %v4957
  %4959 = vmatmul.f32.gmra.mxu0 %v4818
  %v4960 = vpop.f32.mrf.mxu0
  %v4961 = vadd.f32 0.0, %v4960
  %4962 = vmatmul.f32.gmra.mxu0 %v4821
  %v4963 = vpop.f32.mrf.mxu0
  %v4964 = vadd.f32 0.0, %v4963
  %4965 = vmatmul.f32.gmra.mxu0 %v4824
  %v4966 = vpop.f32.mrf.mxu0
  %v4967 = vadd.f32 0.0, %v4966
  %4968 = vmatmul.f32.gmra.mxu0 %v4827
  %v4969 = vpop.f32.mrf.mxu0
  %v4970 = vadd.f32 0.0, %v4969
  %4971 = vmatmul.f32.gmra.mxu0 %v4830
  %v4972 = vpop.f32.mrf.mxu0
  %v4973 = vadd.f32 0.0, %v4972
  %4974 = vmatmul.f32.gmra.mxu0 %v4833
  %v4975 = vpop.f32.mrf.mxu0
  %v4976 = vadd.f32 0.0, %v4975
  %4977 = vmatmul.f32.gmra.mxu0 %v4836
  %v4978 = vpop.f32.mrf.mxu0
  %v4979 = vadd.f32 0.0, %v4978
  %4980 = vmatmul.f32.gmra.mxu0 %v4839
  %v4981 = vpop.f32.mrf.mxu0
  %v4982 = vadd.f32 0.0, %v4981
  %4983 = vmatmul.f32.gmra.mxu0 %v4842
  %v4984 = vpop.f32.mrf.mxu0
  %v4985 = vadd.f32 0.0, %v4984
  %4986 = vmatmul.f32.gmra.mxu0 %v4845
  %v4987 = vpop.f32.mrf.mxu0
  %v4988 = vadd.f32 0.0, %v4987
  %4989 = vmatmul.f32.gmra.mxu0 %v4848
  %v4990 = vpop.f32.mrf.mxu0
  %v4991 = vadd.f32 0.0, %v4990
  %4992 = vmatmul.f32.gmra.mxu0 %v4851
  %v4993 = vpop.f32.mrf.mxu0
  %v4994 = vadd.f32 0.0, %v4993
  %4995 = vmatmul.f32.gmra.mxu0 %v4854
  %v4996 = vpop.f32.mrf.mxu0
  %v4997 = vadd.f32 0.0, %v4996
  %4998 = vmatmul.f32.gmra.mxu0 %v4857
  %v4999 = vpop.f32.mrf.mxu0
  %v5000 = vadd.f32 0.0, %v4999
  %5001 = vmatmul.f32.gmra.mxu0 %v4860
  %v5002 = vpop.f32.mrf.mxu0
  %v5003 = vadd.f32 0.0, %v5002
  %5004 = vmatmul.f32.gmra.mxu0 %v4863
  %v5005 = vpop.f32.mrf.mxu0
  %v5006 = vadd.f32 0.0, %v5005
  %5007 = vmatmul.f32.gmra.mxu0 %v4866
  %v5008 = vpop.f32.mrf.mxu0
  %v5009 = vadd.f32 0.0, %v5008
  %5010 = vmatmul.f32.gmra.mxu0 %v4869
  %v5011 = vpop.f32.mrf.mxu0
  %v5012 = vadd.f32 0.0, %v5011
  %5013 = vmatmul.f32.gmra.mxu0 %v4872
  %v5014 = vpop.f32.mrf.mxu0
  %v5015 = vadd.f32 0.0, %v5014
  %5016 = vmatmul.f32.gmra.mxu0 %v4875
  %v5017 = vpop.f32.mrf.mxu0
  %v5018 = vadd.f32 0.0, %v5017
  %5019 = vmatmul.f32.gmra.mxu0 %v4878
  %v5020 = vpop.f32.mrf.mxu0
  %v5021 = vadd.f32 0.0, %v5020
  %5022 = vmatmul.f32.gmra.mxu0 %v4881
  %v5023 = vpop.f32.mrf.mxu0
  %v5024 = vadd.f32 0.0, %v5023
  %5025 = vmatmul.f32.gmra.mxu0 %v4884
  %v5026 = vpop.f32.mrf.mxu0
  %v5027 = vadd.f32 0.0, %v5026
  %5028 = vmatmul.f32.gmra.mxu0 %v4887
  %v5029 = vpop.f32.mrf.mxu0
  %v5030 = vadd.f32 0.0, %v5029
  %5031 = vmatmul.f32.gmra.mxu0 %v4890
  %v5032 = vpop.f32.mrf.mxu0
  %v5033 = vadd.f32 0.0, %v5032
  %5034 = vmatmul.f32.gmra.mxu0 %v4893
  %v5035 = vpop.f32.mrf.mxu0
  %v5036 = vadd.f32 0.0, %v5035
  %5037 = vmatmul.f32.gmra.mxu0 %v4896
  %v5038 = vpop.f32.mrf.mxu0
  %v5039 = vadd.f32 0.0, %v5038
  %5040 = vmatmul.f32.gmra.mxu0 %v4899
  %v5041 = vpop.f32.mrf.mxu0
  %v5042 = vadd.f32 0.0, %v5041
  %5043 = vmatmul.f32.gmra.mxu0 %v4902
  %v5044 = vpop.f32.mrf.mxu0
  %v5045 = vadd.f32 0.0, %v5044
  %5046 = vmatmul.f32.gmra.mxu0 %v4905
  %v5047 = vpop.f32.mrf.mxu0
  %v5048 = vadd.f32 0.0, %v5047
  %5049 = vmatmul.f32.gmra.mxu0 %v4908
  %v5050 = vpop.f32.mrf.mxu0
  %v5051 = vadd.f32 0.0, %v5050
  %5052 = vmatmul.f32.gmra.mxu0 %v4911
  %v5053 = vpop.f32.mrf.mxu0
  %v5054 = vadd.f32 0.0, %v5053
  %5055 = vmatmul.f32.gmra.mxu0 %v4914
  %v5056 = vpop.f32.mrf.mxu0
  %v5057 = vadd.f32 0.0, %v5056
  %5058 = vmatmul.f32.gmra.mxu0 %v4917
  %v5059 = vpop.f32.mrf.mxu0
  %v5060 = vadd.f32 0.0, %v5059
  %5061 = vmatmul.f32.gmra.mxu0 %v4920
  %v5062 = vpop.f32.mrf.mxu0
  %v5063 = vadd.f32 0.0, %v5062
  %5064 = vmatmul.f32.gmra.mxu0 %v4923
  %v5065 = vpop.f32.mrf.mxu0
  %v5066 = vadd.f32 0.0, %v5065
  %5067 = vmatmul.f32.gmra.mxu0 %v4926
  %v5068 = vpop.f32.mrf.mxu0
  %v5069 = vadd.f32 0.0, %v5068
  %5070 = vmatmul.f32.gmra.mxu0 %v4929
  %v5071 = vpop.f32.mrf.mxu0
  %v5072 = vadd.f32 0.0, %v5071
  %5073 = vmatmul.f32.gmra.mxu0 %v4932
  %v5074 = vpop.f32.mrf.mxu0
  %v5075 = vadd.f32 0.0, %v5074
  %5076 = vmatmul.f32.gmra.mxu0 %v4935
  %v5077 = vpop.f32.mrf.mxu0
  %v5078 = vadd.f32 0.0, %v5077
  %5079 = vmatmul.f32.gmra.mxu0 %v4938
  %v5080 = vpop.f32.mrf.mxu0
  %v5081 = vadd.f32 0.0, %v5080
  %5082 = vdwg.mxu0
  %v5083 = vadd.f32 %v4558, %v4958
  %v5084 = vadd.f32 %v4559, %v4961
  %v5085 = vadd.f32 %v4560, %v4964
  %v5086 = vadd.f32 %v4561, %v4967
  %v5087 = vadd.f32 %v4562, %v4970
  %v5088 = vadd.f32 %v4563, %v4973
  %v5089 = vadd.f32 %v4564, %v4976
  %v5090 = vadd.f32 %v4565, %v4979
  %v5091 = vadd.f32 %v4566, %v4982
  %v5092 = vadd.f32 %v4567, %v4985
  %v5093 = vadd.f32 %v4568, %v4988
  %v5094 = vadd.f32 %v4569, %v4991
  %v5095 = vadd.f32 %v4570, %v4994
  %v5096 = vadd.f32 %v4571, %v4997
  %v5097 = vadd.f32 %v4572, %v5000
  %v5098 = vadd.f32 %v4573, %v5003
  %v5099 = vadd.f32 %v4574, %v5006
  %v5100 = vadd.f32 %v4575, %v5009
  %v5101 = vadd.f32 %v4576, %v5012
  %v5102 = vadd.f32 %v4577, %v5015
  %v5103 = vadd.f32 %v4578, %v5018
  %v5104 = vadd.f32 %v4579, %v5021
  %v5105 = vadd.f32 %v4580, %v5024
  %v5106 = vadd.f32 %v4581, %v5027
  %v5107 = vadd.f32 %v4582, %v5030
  %v5108 = vadd.f32 %v4583, %v5033
  %v5109 = vadd.f32 %v4584, %v5036
  %v5110 = vadd.f32 %v4585, %v5039
  %v5111 = vadd.f32 %v4586, %v5042
  %v5112 = vadd.f32 %v4587, %v5045
  %v5113 = vadd.f32 %v4588, %v5048
  %v5114 = vadd.f32 %v4589, %v5051
  %v5115 = vadd.f32 %v4590, %v5054
  %v5116 = vadd.f32 %v4591, %v5057
  %v5117 = vadd.f32 %v4592, %v5060
  %v5118 = vadd.f32 %v4593, %v5063
  %v5119 = vadd.f32 %v4594, %v5066
  %v5120 = vadd.f32 %v4595, %v5069
  %v5121 = vadd.f32 %v4596, %v5072
  %v5122 = vadd.f32 %v4597, %v5075
  %v5123 = vadd.f32 %v4598, %v5078
  %v5124 = vadd.f32 %v4599, %v5081
  %v5125 = vld [vmem:[%s5] sm:$0x1]
  %v5127 = vperm.slane %v5125, 0
  %v5129 = vadd.f32 %v5083, %v5127
  %v5130 = vadd.f32 %v5084, %v5127
  %v5131 = vadd.f32 %v5085, %v5127
  %v5132 = vadd.f32 %v5086, %v5127
  %v5133 = vadd.f32 %v5087, %v5127
  %v5134 = vadd.f32 %v5088, %v5127
  %v5135 = vadd.f32 %v5089, %v5127
  %v5136 = vadd.f32 %v5090, %v5127
  %v5137 = vadd.f32 %v5091, %v5127
  %v5138 = vadd.f32 %v5092, %v5127
  %v5139 = vadd.f32 %v5093, %v5127
  %v5140 = vadd.f32 %v5094, %v5127
  %v5141 = vadd.f32 %v5095, %v5127
  %v5142 = vadd.f32 %v5096, %v5127
  %v5143 = vadd.f32 %v5097, %v5127
  %v5144 = vadd.f32 %v5098, %v5127
  %v5145 = vadd.f32 %v5099, %v5127
  %v5146 = vadd.f32 %v5100, %v5127
  %v5147 = vadd.f32 %v5101, %v5127
  %v5148 = vadd.f32 %v5102, %v5127
  %v5149 = vadd.f32 %v5103, %v5127
  %v5150 = vadd.f32 %v5104, %v5127
  %v5151 = vadd.f32 %v5105, %v5127
  %v5152 = vadd.f32 %v5106, %v5127
  %v5153 = vadd.f32 %v5107, %v5127
  %v5154 = vadd.f32 %v5108, %v5127
  %v5155 = vadd.f32 %v5109, %v5127
  %v5156 = vadd.f32 %v5110, %v5127
  %v5157 = vadd.f32 %v5111, %v5127
  %v5158 = vadd.f32 %v5112, %v5127
  %v5159 = vadd.f32 %v5113, %v5127
  %v5160 = vadd.f32 %v5114, %v5127
  %v5161 = vadd.f32 %v5115, %v5127
  %v5162 = vadd.f32 %v5116, %v5127
  %v5163 = vadd.f32 %v5117, %v5127
  %v5164 = vadd.f32 %v5118, %v5127
  %v5165 = vadd.f32 %v5119, %v5127
  %v5166 = vadd.f32 %v5120, %v5127
  %v5167 = vadd.f32 %v5121, %v5127
  %v5168 = vadd.f32 %v5122, %v5127
  %v5169 = vadd.f32 %v5123, %v5127
  %v5170 = vadd.f32 %v5124, %v5127
  %v5171 = vmax.f32 %v5129, 0.0
  %v5172 = vmax.f32 %v5130, 0.0
  %v5173 = vmax.f32 %v5131, 0.0
  %v5174 = vmax.f32 %v5132, 0.0
  %v5175 = vmax.f32 %v5133, 0.0
  %v5176 = vmax.f32 %v5134, 0.0
  %v5177 = vmax.f32 %v5135, 0.0
  %v5178 = vmax.f32 %v5136, 0.0
  %v5179 = vmax.f32 %v5137, 0.0
  %v5180 = vmax.f32 %v5138, 0.0
  %v5181 = vmax.f32 %v5139, 0.0
  %v5182 = vmax.f32 %v5140, 0.0
  %v5183 = vmax.f32 %v5141, 0.0
  %v5184 = vmax.f32 %v5142, 0.0
  %v5185 = vmax.f32 %v5143, 0.0
  %v5186 = vmax.f32 %v5144, 0.0
  %v5187 = vmax.f32 %v5145, 0.0
  %v5188 = vmax.f32 %v5146, 0.0
  %v5189 = vmax.f32 %v5147, 0.0
  %v5190 = vmax.f32 %v5148, 0.0
  %v5191 = vmax.f32 %v5149, 0.0
  %v5192 = vmax.f32 %v5150, 0.0
  %v5193 = vmax.f32 %v5151, 0.0
  %v5194 = vmax.f32 %v5152, 0.0
  %v5195 = vmax.f32 %v5153, 0.0
  %v5196 = vmax.f32 %v5154, 0.0
  %v5197 = vmax.f32 %v5155, 0.0
  %v5198 = vmax.f32 %v5156, 0.0
  %v5199 = vmax.f32 %v5157, 0.0
  %v5200 = vmax.f32 %v5158, 0.0
  %v5201 = vmax.f32 %v5159, 0.0
  %v5202 = vmax.f32 %v5160, 0.0
  %v5203 = vmax.f32 %v5161, 0.0
  %v5204 = vmax.f32 %v5162, 0.0
  %v5205 = vmax.f32 %v5163, 0.0
  %v5206 = vmax.f32 %v5164, 0.0
  %v5207 = vmax.f32 %v5165, 0.0
  %v5208 = vmax.f32 %v5166, 0.0
  %v5209 = vmax.f32 %v5167, 0.0
  %v5210 = vmax.f32 %v5168, 0.0
  %v5211 = vmax.f32 %v5169, 0.0
  %v5212 = vmax.f32 %v5170, 0.0
  %v5213 = vld [vmem:[%s6] sm:$0xff]
  %v5214 = vld [vmem:[%s6 + $0x8] sm:$0xff]
  %v5215 = vld [vmem:[%s6 + $0x10] sm:$0xff]
  %v5216 = vld [vmem:[%s6 + $0x18] sm:$0xff]
  %v5217 = vld [vmem:[%s6 + $0x20] sm:$0xff]
  %v5218 = vld [vmem:[%s6 + $0x28] sm:$0xff]
  %v5219 = vld [vmem:[%s6 + $0x30] sm:$0xff]
  %v5220 = vld [vmem:[%s6 + $0x38] sm:$0xff]
  %v5221 = vld [vmem:[%s6 + $0x40] sm:$0xff]
  %v5222 = vld [vmem:[%s6 + $0x48] sm:$0xff]
  %v5223 = vld [vmem:[%s6 + $0x50] sm:$0xff]
  %v5224 = vld [vmem:[%s6 + $0x58] sm:$0xff]
  %v5225 = vld [vmem:[%s6 + $0x60] sm:$0xff]
  %v5226 = vld [vmem:[%s6 + $0x68] sm:$0xff]
  %v5227 = vld [vmem:[%s6 + $0x70] sm:$0xff]
  %v5228 = vld [vmem:[%s6 + $0x78] sm:$0xff]
  %vm5229 = vcmask 523264
  %v5231 = vsel %vm5229, %v5172, 0
  %5233 = vmatpush.msra.mxu0 0.0
  %5234 = vmatpush.msra.mxu0 0.0
  %5235 = vmatpush.msra.mxu0 0.0
  %5236 = vmatpush.msra.mxu0 0.0
  %5237 = vmatpush.msra.mxu0 0.0
  %5238 = vmatpush.msra.mxu0 0.0
  %5239 = vmatpush.msra.mxu0 0.0
  %5240 = vmatpush.msra.mxu0 0.0
  %5241 = vmatpush.msra.mxu0 %v5228
  %5242 = vmatpush.msra.mxu0 %v5227
  %5243 = vmatpush.msra.mxu0 %v5226
  %5244 = vmatpush.msra.mxu0 %v5225
  %5245 = vmatpush.msra.mxu0 %v5224
  %5246 = vmatpush.msra.mxu0 %v5223
  %5247 = vmatpush.msra.mxu0 %v5222
  %5248 = vmatpush.msra.mxu0 %v5221
  %5249 = vmatmul.f32.gmra.mxu0 %v5231
  %v5250 = vpop.f32.mrf.mxu0
  %v5251 = vadd.f32 0.0, %v5250
  %5252 = vdwg.mxu0
  %v5254 = vsel %vm5229, %v5171, 0
  %5256 = vmatpush.msra.mxu0 0.0
  %5257 = vmatpush.msra.mxu0 0.0
  %5258 = vmatpush.msra.mxu0 0.0
  %5259 = vmatpush.msra.mxu0 0.0
  %5260 = vmatpush.msra.mxu0 0.0
  %5261 = vmatpush.msra.mxu0 0.0
  %5262 = vmatpush.msra.mxu0 0.0
  %5263 = vmatpush.msra.mxu0 0.0
  %5264 = vmatpush.msra.mxu0 %v5220
  %5265 = vmatpush.msra.mxu0 %v5219
  %5266 = vmatpush.msra.mxu0 %v5218
  %5267 = vmatpush.msra.mxu0 %v5217
  %5268 = vmatpush.msra.mxu0 %v5216
  %5269 = vmatpush.msra.mxu0 %v5215
  %5270 = vmatpush.msra.mxu0 %v5214
  %5271 = vmatpush.msra.mxu0 %v5213
  %5272 = vmatmul.f32.gmra.mxu0 %v5254
  %v5273 = vpop.f32.mrf.mxu0
  %v5274 = vadd.f32 %v5251, %v5273
  %5275 = vdwg.mxu0
  %v5276 = vld [vmem:[%s6 + $0x80] sm:$0xff]
  %v5277 = vld [vmem:[%s6 + $0x88] sm:$0xff]
  %v5278 = vld [vmem:[%s6 + $0x90] sm:$0xff]
  %v5279 = vld [vmem:[%s6 + $0x98] sm:$0xff]
  %v5280 = vld [vmem:[%s6 + $0xa0] sm:$0xff]
  %v5281 = vld [vmem:[%s6 + $0xa8] sm:$0xff]
  %v5282 = vld [vmem:[%s6 + $0xb0] sm:$0xff]
  %v5283 = vld [vmem:[%s6 + $0xb8] sm:$0xff]
  %v5285 = vsel %vm5229, %v5173, 0
  %5287 = vmatpush.msra.mxu0 0.0
  %5288 = vmatpush.msra.mxu0 0.0
  %5289 = vmatpush.msra.mxu0 0.0
  %5290 = vmatpush.msra.mxu0 0.0
  %5291 = vmatpush.msra.mxu0 0.0
  %5292 = vmatpush.msra.mxu0 0.0
  %5293 = vmatpush.msra.mxu0 0.0
  %5294 = vmatpush.msra.mxu0 0.0
  %5295 = vmatpush.msra.mxu0 %v5283
  %5296 = vmatpush.msra.mxu0 %v5282
  %5297 = vmatpush.msra.mxu0 %v5281
  %5298 = vmatpush.msra.mxu0 %v5280
  %5299 = vmatpush.msra.mxu0 %v5279
  %5300 = vmatpush.msra.mxu0 %v5278
  %5301 = vmatpush.msra.mxu0 %v5277
  %5302 = vmatpush.msra.mxu0 %v5276
  %5303 = vmatmul.f32.gmra.mxu0 %v5285
  %v5304 = vpop.f32.mrf.mxu0
  %v5305 = vadd.f32 0.0, %v5304
  %5306 = vdwg.mxu0
  %v5307 = vadd.f32 %v5274, %v5305
  %v5308 = vld [vmem:[%s6 + $0xc0] sm:$0xff]
  %v5309 = vld [vmem:[%s6 + $0xc8] sm:$0xff]
  %v5310 = vld [vmem:[%s6 + $0xd0] sm:$0xff]
  %v5311 = vld [vmem:[%s6 + $0xd8] sm:$0xff]
  %v5312 = vld [vmem:[%s6 + $0xe0] sm:$0xff]
  %v5313 = vld [vmem:[%s6 + $0xe8] sm:$0xff]
  %v5314 = vld [vmem:[%s6 + $0xf0] sm:$0xff]
  %v5315 = vld [vmem:[%s6 + $0xf8] sm:$0xff]
  %v5317 = vsel %vm5229, %v5174, 0
  %5319 = vmatpush.msra.mxu0 0.0
  %5320 = vmatpush.msra.mxu0 0.0
  %5321 = vmatpush.msra.mxu0 0.0
  %5322 = vmatpush.msra.mxu0 0.0
  %5323 = vmatpush.msra.mxu0 0.0
  %5324 = vmatpush.msra.mxu0 0.0
  %5325 = vmatpush.msra.mxu0 0.0
  %5326 = vmatpush.msra.mxu0 0.0
  %5327 = vmatpush.msra.mxu0 %v5315
  %5328 = vmatpush.msra.mxu0 %v5314
  %5329 = vmatpush.msra.mxu0 %v5313
  %5330 = vmatpush.msra.mxu0 %v5312
  %5331 = vmatpush.msra.mxu0 %v5311
  %5332 = vmatpush.msra.mxu0 %v5310
  %5333 = vmatpush.msra.mxu0 %v5309
  %5334 = vmatpush.msra.mxu0 %v5308
  %5335 = vmatmul.f32.gmra.mxu0 %v5317
  %v5336 = vpop.f32.mrf.mxu0
  %v5337 = vadd.f32 0.0, %v5336
  %5338 = vdwg.mxu0
  %v5339 = vadd.f32 %v5307, %v5337
  %v5340 = vld [vmem:[%s6 + $0x100] sm:$0xff]
  %v5341 = vld [vmem:[%s6 + $0x108] sm:$0xff]
  %v5342 = vld [vmem:[%s6 + $0x110] sm:$0xff]
  %v5343 = vld [vmem:[%s6 + $0x118] sm:$0xff]
  %v5344 = vld [vmem:[%s6 + $0x120] sm:$0xff]
  %v5345 = vld [vmem:[%s6 + $0x128] sm:$0xff]
  %v5346 = vld [vmem:[%s6 + $0x130] sm:$0xff]
  %v5347 = vld [vmem:[%s6 + $0x138] sm:$0xff]
  %v5349 = vsel %vm5229, %v5175, 0
  %5351 = vmatpush.msra.mxu0 0.0
  %5352 = vmatpush.msra.mxu0 0.0
  %5353 = vmatpush.msra.mxu0 0.0
  %5354 = vmatpush.msra.mxu0 0.0
  %5355 = vmatpush.msra.mxu0 0.0
  %5356 = vmatpush.msra.mxu0 0.0
  %5357 = vmatpush.msra.mxu0 0.0
  %5358 = vmatpush.msra.mxu0 0.0
  %5359 = vmatpush.msra.mxu0 %v5347
  %5360 = vmatpush.msra.mxu0 %v5346
  %5361 = vmatpush.msra.mxu0 %v5345
  %5362 = vmatpush.msra.mxu0 %v5344
  %5363 = vmatpush.msra.mxu0 %v5343
  %5364 = vmatpush.msra.mxu0 %v5342
  %5365 = vmatpush.msra.mxu0 %v5341
  %5366 = vmatpush.msra.mxu0 %v5340
  %5367 = vmatmul.f32.gmra.mxu0 %v5349
  %v5368 = vpop.f32.mrf.mxu0
  %v5369 = vadd.f32 0.0, %v5368
  %5370 = vdwg.mxu0
  %v5371 = vadd.f32 %v5339, %v5369
  %v5372 = vld [vmem:[%s6 + $0x140] sm:$0xff]
  %v5373 = vld [vmem:[%s6 + $0x148] sm:$0xff]
  %v5374 = vld [vmem:[%s6 + $0x150] sm:$0xff]
  %v5375 = vld [vmem:[%s6 + $0x158] sm:$0xff]
  %v5376 = vld [vmem:[%s6 + $0x160] sm:$0xff]
  %v5377 = vld [vmem:[%s6 + $0x168] sm:$0xff]
  %v5378 = vld [vmem:[%s6 + $0x170] sm:$0xff]
  %v5379 = vld [vmem:[%s6 + $0x178] sm:$0xff]
  %v5381 = vsel %vm5229, %v5176, 0
  %5383 = vmatpush.msra.mxu0 0.0
  %5384 = vmatpush.msra.mxu0 0.0
  %5385 = vmatpush.msra.mxu0 0.0
  %5386 = vmatpush.msra.mxu0 0.0
  %5387 = vmatpush.msra.mxu0 0.0
  %5388 = vmatpush.msra.mxu0 0.0
  %5389 = vmatpush.msra.mxu0 0.0
  %5390 = vmatpush.msra.mxu0 0.0
  %5391 = vmatpush.msra.mxu0 %v5379
  %5392 = vmatpush.msra.mxu0 %v5378
  %5393 = vmatpush.msra.mxu0 %v5377
  %5394 = vmatpush.msra.mxu0 %v5376
  %5395 = vmatpush.msra.mxu0 %v5375
  %5396 = vmatpush.msra.mxu0 %v5374
  %5397 = vmatpush.msra.mxu0 %v5373
  %5398 = vmatpush.msra.mxu0 %v5372
  %5399 = vmatmul.f32.gmra.mxu0 %v5381
  %v5400 = vpop.f32.mrf.mxu0
  %v5401 = vadd.f32 0.0, %v5400
  %5402 = vdwg.mxu0
  %v5403 = vadd.f32 %v5371, %v5401
  %v5404 = vld [vmem:[%s6 + $0x180] sm:$0xff]
  %v5405 = vld [vmem:[%s6 + $0x188] sm:$0xff]
  %v5406 = vld [vmem:[%s6 + $0x190] sm:$0xff]
  %v5407 = vld [vmem:[%s6 + $0x198] sm:$0xff]
  %v5408 = vld [vmem:[%s6 + $0x1a0] sm:$0xff]
  %v5409 = vld [vmem:[%s6 + $0x1a8] sm:$0xff]
  %v5410 = vld [vmem:[%s6 + $0x1b0] sm:$0xff]
  %v5411 = vld [vmem:[%s6 + $0x1b8] sm:$0xff]
  %v5413 = vsel %vm5229, %v5177, 0
  %5415 = vmatpush.msra.mxu0 0.0
  %5416 = vmatpush.msra.mxu0 0.0
  %5417 = vmatpush.msra.mxu0 0.0
  %5418 = vmatpush.msra.mxu0 0.0
  %5419 = vmatpush.msra.mxu0 0.0
  %5420 = vmatpush.msra.mxu0 0.0
  %5421 = vmatpush.msra.mxu0 0.0
  %5422 = vmatpush.msra.mxu0 0.0
  %5423 = vmatpush.msra.mxu0 %v5411
  %5424 = vmatpush.msra.mxu0 %v5410
  %5425 = vmatpush.msra.mxu0 %v5409
  %5426 = vmatpush.msra.mxu0 %v5408
  %5427 = vmatpush.msra.mxu0 %v5407
  %5428 = vmatpush.msra.mxu0 %v5406
  %5429 = vmatpush.msra.mxu0 %v5405
  %5430 = vmatpush.msra.mxu0 %v5404
  %5431 = vmatmul.f32.gmra.mxu0 %v5413
  %v5432 = vpop.f32.mrf.mxu0
  %v5433 = vadd.f32 0.0, %v5432
  %5434 = vdwg.mxu0
  %v5435 = vadd.f32 %v5403, %v5433
  %v5436 = vld [vmem:[%s6 + $0x1c0] sm:$0xff]
  %v5437 = vld [vmem:[%s6 + $0x1c8] sm:$0xff]
  %v5438 = vld [vmem:[%s6 + $0x1d0] sm:$0xff]
  %v5439 = vld [vmem:[%s6 + $0x1d8] sm:$0xff]
  %v5440 = vld [vmem:[%s6 + $0x1e0] sm:$0xff]
  %v5441 = vld [vmem:[%s6 + $0x1e8] sm:$0xff]
  %v5442 = vld [vmem:[%s6 + $0x1f0] sm:$0xff]
  %v5443 = vld [vmem:[%s6 + $0x1f8] sm:$0xff]
  %v5445 = vsel %vm5229, %v5178, 0
  %5447 = vmatpush.msra.mxu0 0.0
  %5448 = vmatpush.msra.mxu0 0.0
  %5449 = vmatpush.msra.mxu0 0.0
  %5450 = vmatpush.msra.mxu0 0.0
  %5451 = vmatpush.msra.mxu0 0.0
  %5452 = vmatpush.msra.mxu0 0.0
  %5453 = vmatpush.msra.mxu0 0.0
  %5454 = vmatpush.msra.mxu0 0.0
  %5455 = vmatpush.msra.mxu0 %v5443
  %5456 = vmatpush.msra.mxu0 %v5442
  %5457 = vmatpush.msra.mxu0 %v5441
  %5458 = vmatpush.msra.mxu0 %v5440
  %5459 = vmatpush.msra.mxu0 %v5439
  %5460 = vmatpush.msra.mxu0 %v5438
  %5461 = vmatpush.msra.mxu0 %v5437
  %5462 = vmatpush.msra.mxu0 %v5436
  %5463 = vmatmul.f32.gmra.mxu0 %v5445
  %v5464 = vpop.f32.mrf.mxu0
  %v5465 = vadd.f32 0.0, %v5464
  %5466 = vdwg.mxu0
  %v5467 = vadd.f32 %v5435, %v5465
  %v5468 = vld [vmem:[%s6 + $0x200] sm:$0xff]
  %v5469 = vld [vmem:[%s6 + $0x208] sm:$0xff]
  %v5470 = vld [vmem:[%s6 + $0x210] sm:$0xff]
  %v5471 = vld [vmem:[%s6 + $0x218] sm:$0xff]
  %v5472 = vld [vmem:[%s6 + $0x220] sm:$0xff]
  %v5473 = vld [vmem:[%s6 + $0x228] sm:$0xff]
  %v5474 = vld [vmem:[%s6 + $0x230] sm:$0xff]
  %v5475 = vld [vmem:[%s6 + $0x238] sm:$0xff]
  %v5477 = vsel %vm5229, %v5179, 0
  %5479 = vmatpush.msra.mxu0 0.0
  %5480 = vmatpush.msra.mxu0 0.0
  %5481 = vmatpush.msra.mxu0 0.0
  %5482 = vmatpush.msra.mxu0 0.0
  %5483 = vmatpush.msra.mxu0 0.0
  %5484 = vmatpush.msra.mxu0 0.0
  %5485 = vmatpush.msra.mxu0 0.0
  %5486 = vmatpush.msra.mxu0 0.0
  %5487 = vmatpush.msra.mxu0 %v5475
  %5488 = vmatpush.msra.mxu0 %v5474
  %5489 = vmatpush.msra.mxu0 %v5473
  %5490 = vmatpush.msra.mxu0 %v5472
  %5491 = vmatpush.msra.mxu0 %v5471
  %5492 = vmatpush.msra.mxu0 %v5470
  %5493 = vmatpush.msra.mxu0 %v5469
  %5494 = vmatpush.msra.mxu0 %v5468
  %5495 = vmatmul.f32.gmra.mxu0 %v5477
  %v5496 = vpop.f32.mrf.mxu0
  %v5497 = vadd.f32 0.0, %v5496
  %5498 = vdwg.mxu0
  %v5499 = vadd.f32 %v5467, %v5497
  %v5500 = vld [vmem:[%s6 + $0x240] sm:$0xff]
  %v5501 = vld [vmem:[%s6 + $0x248] sm:$0xff]
  %v5502 = vld [vmem:[%s6 + $0x250] sm:$0xff]
  %v5503 = vld [vmem:[%s6 + $0x258] sm:$0xff]
  %v5504 = vld [vmem:[%s6 + $0x260] sm:$0xff]
  %v5505 = vld [vmem:[%s6 + $0x268] sm:$0xff]
  %v5506 = vld [vmem:[%s6 + $0x270] sm:$0xff]
  %v5507 = vld [vmem:[%s6 + $0x278] sm:$0xff]
  %v5509 = vsel %vm5229, %v5180, 0
  %5511 = vmatpush.msra.mxu0 0.0
  %5512 = vmatpush.msra.mxu0 0.0
  %5513 = vmatpush.msra.mxu0 0.0
  %5514 = vmatpush.msra.mxu0 0.0
  %5515 = vmatpush.msra.mxu0 0.0
  %5516 = vmatpush.msra.mxu0 0.0
  %5517 = vmatpush.msra.mxu0 0.0
  %5518 = vmatpush.msra.mxu0 0.0
  %5519 = vmatpush.msra.mxu0 %v5507
  %5520 = vmatpush.msra.mxu0 %v5506
  %5521 = vmatpush.msra.mxu0 %v5505
  %5522 = vmatpush.msra.mxu0 %v5504
  %5523 = vmatpush.msra.mxu0 %v5503
  %5524 = vmatpush.msra.mxu0 %v5502
  %5525 = vmatpush.msra.mxu0 %v5501
  %5526 = vmatpush.msra.mxu0 %v5500
  %5527 = vmatmul.f32.gmra.mxu0 %v5509
  %v5528 = vpop.f32.mrf.mxu0
  %v5529 = vadd.f32 0.0, %v5528
  %5530 = vdwg.mxu0
  %v5531 = vadd.f32 %v5499, %v5529
  %v5532 = vld [vmem:[%s6 + $0x280] sm:$0xff]
  %v5533 = vld [vmem:[%s6 + $0x288] sm:$0xff]
  %v5534 = vld [vmem:[%s6 + $0x290] sm:$0xff]
  %v5535 = vld [vmem:[%s6 + $0x298] sm:$0xff]
  %v5536 = vld [vmem:[%s6 + $0x2a0] sm:$0xff]
  %v5537 = vld [vmem:[%s6 + $0x2a8] sm:$0xff]
  %v5538 = vld [vmem:[%s6 + $0x2b0] sm:$0xff]
  %v5539 = vld [vmem:[%s6 + $0x2b8] sm:$0xff]
  %v5541 = vsel %vm5229, %v5181, 0
  %5543 = vmatpush.msra.mxu0 0.0
  %5544 = vmatpush.msra.mxu0 0.0
  %5545 = vmatpush.msra.mxu0 0.0
  %5546 = vmatpush.msra.mxu0 0.0
  %5547 = vmatpush.msra.mxu0 0.0
  %5548 = vmatpush.msra.mxu0 0.0
  %5549 = vmatpush.msra.mxu0 0.0
  %5550 = vmatpush.msra.mxu0 0.0
  %5551 = vmatpush.msra.mxu0 %v5539
  %5552 = vmatpush.msra.mxu0 %v5538
  %5553 = vmatpush.msra.mxu0 %v5537
  %5554 = vmatpush.msra.mxu0 %v5536
  %5555 = vmatpush.msra.mxu0 %v5535
  %5556 = vmatpush.msra.mxu0 %v5534
  %5557 = vmatpush.msra.mxu0 %v5533
  %5558 = vmatpush.msra.mxu0 %v5532
  %5559 = vmatmul.f32.gmra.mxu0 %v5541
  %v5560 = vpop.f32.mrf.mxu0
  %v5561 = vadd.f32 0.0, %v5560
  %5562 = vdwg.mxu0
  %v5563 = vadd.f32 %v5531, %v5561
  %v5564 = vld [vmem:[%s6 + $0x2c0] sm:$0xff]
  %v5565 = vld [vmem:[%s6 + $0x2c8] sm:$0xff]
  %v5566 = vld [vmem:[%s6 + $0x2d0] sm:$0xff]
  %v5567 = vld [vmem:[%s6 + $0x2d8] sm:$0xff]
  %v5568 = vld [vmem:[%s6 + $0x2e0] sm:$0xff]
  %v5569 = vld [vmem:[%s6 + $0x2e8] sm:$0xff]
  %v5570 = vld [vmem:[%s6 + $0x2f0] sm:$0xff]
  %v5571 = vld [vmem:[%s6 + $0x2f8] sm:$0xff]
  %v5573 = vsel %vm5229, %v5182, 0
  %5575 = vmatpush.msra.mxu0 0.0
  %5576 = vmatpush.msra.mxu0 0.0
  %5577 = vmatpush.msra.mxu0 0.0
  %5578 = vmatpush.msra.mxu0 0.0
  %5579 = vmatpush.msra.mxu0 0.0
  %5580 = vmatpush.msra.mxu0 0.0
  %5581 = vmatpush.msra.mxu0 0.0
  %5582 = vmatpush.msra.mxu0 0.0
  %5583 = vmatpush.msra.mxu0 %v5571
  %5584 = vmatpush.msra.mxu0 %v5570
  %5585 = vmatpush.msra.mxu0 %v5569
  %5586 = vmatpush.msra.mxu0 %v5568
  %5587 = vmatpush.msra.mxu0 %v5567
  %5588 = vmatpush.msra.mxu0 %v5566
  %5589 = vmatpush.msra.mxu0 %v5565
  %5590 = vmatpush.msra.mxu0 %v5564
  %5591 = vmatmul.f32.gmra.mxu0 %v5573
  %v5592 = vpop.f32.mrf.mxu0
  %v5593 = vadd.f32 0.0, %v5592
  %5594 = vdwg.mxu0
  %v5595 = vadd.f32 %v5563, %v5593
  %v5596 = vld [vmem:[%s6 + $0x300] sm:$0xff]
  %v5597 = vld [vmem:[%s6 + $0x308] sm:$0xff]
  %v5598 = vld [vmem:[%s6 + $0x310] sm:$0xff]
  %v5599 = vld [vmem:[%s6 + $0x318] sm:$0xff]
  %v5600 = vld [vmem:[%s6 + $0x320] sm:$0xff]
  %v5601 = vld [vmem:[%s6 + $0x328] sm:$0xff]
  %v5602 = vld [vmem:[%s6 + $0x330] sm:$0xff]
  %v5603 = vld [vmem:[%s6 + $0x338] sm:$0xff]
  %v5605 = vsel %vm5229, %v5183, 0
  %5607 = vmatpush.msra.mxu0 0.0
  %5608 = vmatpush.msra.mxu0 0.0
  %5609 = vmatpush.msra.mxu0 0.0
  %5610 = vmatpush.msra.mxu0 0.0
  %5611 = vmatpush.msra.mxu0 0.0
  %5612 = vmatpush.msra.mxu0 0.0
  %5613 = vmatpush.msra.mxu0 0.0
  %5614 = vmatpush.msra.mxu0 0.0
  %5615 = vmatpush.msra.mxu0 %v5603
  %5616 = vmatpush.msra.mxu0 %v5602
  %5617 = vmatpush.msra.mxu0 %v5601
  %5618 = vmatpush.msra.mxu0 %v5600
  %5619 = vmatpush.msra.mxu0 %v5599
  %5620 = vmatpush.msra.mxu0 %v5598
  %5621 = vmatpush.msra.mxu0 %v5597
  %5622 = vmatpush.msra.mxu0 %v5596
  %5623 = vmatmul.f32.gmra.mxu0 %v5605
  %v5624 = vpop.f32.mrf.mxu0
  %v5625 = vadd.f32 0.0, %v5624
  %5626 = vdwg.mxu0
  %v5627 = vadd.f32 %v5595, %v5625
  %v5628 = vld [vmem:[%s6 + $0x340] sm:$0xff]
  %v5629 = vld [vmem:[%s6 + $0x348] sm:$0xff]
  %v5630 = vld [vmem:[%s6 + $0x350] sm:$0xff]
  %v5631 = vld [vmem:[%s6 + $0x358] sm:$0xff]
  %v5632 = vld [vmem:[%s6 + $0x360] sm:$0xff]
  %v5633 = vld [vmem:[%s6 + $0x368] sm:$0xff]
  %v5634 = vld [vmem:[%s6 + $0x370] sm:$0xff]
  %v5635 = vld [vmem:[%s6 + $0x378] sm:$0xff]
  %v5637 = vsel %vm5229, %v5184, 0
  %5639 = vmatpush.msra.mxu0 0.0
  %5640 = vmatpush.msra.mxu0 0.0
  %5641 = vmatpush.msra.mxu0 0.0
  %5642 = vmatpush.msra.mxu0 0.0
  %5643 = vmatpush.msra.mxu0 0.0
  %5644 = vmatpush.msra.mxu0 0.0
  %5645 = vmatpush.msra.mxu0 0.0
  %5646 = vmatpush.msra.mxu0 0.0
  %5647 = vmatpush.msra.mxu0 %v5635
  %5648 = vmatpush.msra.mxu0 %v5634
  %5649 = vmatpush.msra.mxu0 %v5633
  %5650 = vmatpush.msra.mxu0 %v5632
  %5651 = vmatpush.msra.mxu0 %v5631
  %5652 = vmatpush.msra.mxu0 %v5630
  %5653 = vmatpush.msra.mxu0 %v5629
  %5654 = vmatpush.msra.mxu0 %v5628
  %5655 = vmatmul.f32.gmra.mxu0 %v5637
  %v5656 = vpop.f32.mrf.mxu0
  %v5657 = vadd.f32 0.0, %v5656
  %5658 = vdwg.mxu0
  %v5659 = vadd.f32 %v5627, %v5657
  %v5660 = vld [vmem:[%s6 + $0x380] sm:$0xff]
  %v5661 = vld [vmem:[%s6 + $0x388] sm:$0xff]
  %v5662 = vld [vmem:[%s6 + $0x390] sm:$0xff]
  %v5663 = vld [vmem:[%s6 + $0x398] sm:$0xff]
  %v5664 = vld [vmem:[%s6 + $0x3a0] sm:$0xff]
  %v5665 = vld [vmem:[%s6 + $0x3a8] sm:$0xff]
  %v5666 = vld [vmem:[%s6 + $0x3b0] sm:$0xff]
  %v5667 = vld [vmem:[%s6 + $0x3b8] sm:$0xff]
  %v5669 = vsel %vm5229, %v5185, 0
  %5671 = vmatpush.msra.mxu0 0.0
  %5672 = vmatpush.msra.mxu0 0.0
  %5673 = vmatpush.msra.mxu0 0.0
  %5674 = vmatpush.msra.mxu0 0.0
  %5675 = vmatpush.msra.mxu0 0.0
  %5676 = vmatpush.msra.mxu0 0.0
  %5677 = vmatpush.msra.mxu0 0.0
  %5678 = vmatpush.msra.mxu0 0.0
  %5679 = vmatpush.msra.mxu0 %v5667
  %5680 = vmatpush.msra.mxu0 %v5666
  %5681 = vmatpush.msra.mxu0 %v5665
  %5682 = vmatpush.msra.mxu0 %v5664
  %5683 = vmatpush.msra.mxu0 %v5663
  %5684 = vmatpush.msra.mxu0 %v5662
  %5685 = vmatpush.msra.mxu0 %v5661
  %5686 = vmatpush.msra.mxu0 %v5660
  %5687 = vmatmul.f32.gmra.mxu0 %v5669
  %v5688 = vpop.f32.mrf.mxu0
  %v5689 = vadd.f32 0.0, %v5688
  %5690 = vdwg.mxu0
  %v5691 = vadd.f32 %v5659, %v5689
  %v5692 = vld [vmem:[%s6 + $0x3c0] sm:$0xff]
  %v5693 = vld [vmem:[%s6 + $0x3c8] sm:$0xff]
  %v5694 = vld [vmem:[%s6 + $0x3d0] sm:$0xff]
  %v5695 = vld [vmem:[%s6 + $0x3d8] sm:$0xff]
  %v5696 = vld [vmem:[%s6 + $0x3e0] sm:$0xff]
  %v5697 = vld [vmem:[%s6 + $0x3e8] sm:$0xff]
  %v5698 = vld [vmem:[%s6 + $0x3f0] sm:$0xff]
  %v5699 = vld [vmem:[%s6 + $0x3f8] sm:$0xff]
  %v5701 = vsel %vm5229, %v5186, 0
  %5703 = vmatpush.msra.mxu0 0.0
  %5704 = vmatpush.msra.mxu0 0.0
  %5705 = vmatpush.msra.mxu0 0.0
  %5706 = vmatpush.msra.mxu0 0.0
  %5707 = vmatpush.msra.mxu0 0.0
  %5708 = vmatpush.msra.mxu0 0.0
  %5709 = vmatpush.msra.mxu0 0.0
  %5710 = vmatpush.msra.mxu0 0.0
  %5711 = vmatpush.msra.mxu0 %v5699
  %5712 = vmatpush.msra.mxu0 %v5698
  %5713 = vmatpush.msra.mxu0 %v5697
  %5714 = vmatpush.msra.mxu0 %v5696
  %5715 = vmatpush.msra.mxu0 %v5695
  %5716 = vmatpush.msra.mxu0 %v5694
  %5717 = vmatpush.msra.mxu0 %v5693
  %5718 = vmatpush.msra.mxu0 %v5692
  %5719 = vmatmul.f32.gmra.mxu0 %v5701
  %v5720 = vpop.f32.mrf.mxu0
  %v5721 = vadd.f32 0.0, %v5720
  %5722 = vdwg.mxu0
  %v5723 = vadd.f32 %v5691, %v5721
  %v5724 = vld [vmem:[%s6 + $0x400] sm:$0xff]
  %v5725 = vld [vmem:[%s6 + $0x408] sm:$0xff]
  %v5726 = vld [vmem:[%s6 + $0x410] sm:$0xff]
  %v5727 = vld [vmem:[%s6 + $0x418] sm:$0xff]
  %v5728 = vld [vmem:[%s6 + $0x420] sm:$0xff]
  %v5729 = vld [vmem:[%s6 + $0x428] sm:$0xff]
  %v5730 = vld [vmem:[%s6 + $0x430] sm:$0xff]
  %v5731 = vld [vmem:[%s6 + $0x438] sm:$0xff]
  %v5733 = vsel %vm5229, %v5187, 0
  %5735 = vmatpush.msra.mxu0 0.0
  %5736 = vmatpush.msra.mxu0 0.0
  %5737 = vmatpush.msra.mxu0 0.0
  %5738 = vmatpush.msra.mxu0 0.0
  %5739 = vmatpush.msra.mxu0 0.0
  %5740 = vmatpush.msra.mxu0 0.0
  %5741 = vmatpush.msra.mxu0 0.0
  %5742 = vmatpush.msra.mxu0 0.0
  %5743 = vmatpush.msra.mxu0 %v5731
  %5744 = vmatpush.msra.mxu0 %v5730
  %5745 = vmatpush.msra.mxu0 %v5729
  %5746 = vmatpush.msra.mxu0 %v5728
  %5747 = vmatpush.msra.mxu0 %v5727
  %5748 = vmatpush.msra.mxu0 %v5726
  %5749 = vmatpush.msra.mxu0 %v5725
  %5750 = vmatpush.msra.mxu0 %v5724
  %5751 = vmatmul.f32.gmra.mxu0 %v5733
  %v5752 = vpop.f32.mrf.mxu0
  %v5753 = vadd.f32 0.0, %v5752
  %5754 = vdwg.mxu0
  %v5755 = vadd.f32 %v5723, %v5753
  %v5756 = vld [vmem:[%s6 + $0x440] sm:$0xff]
  %v5757 = vld [vmem:[%s6 + $0x448] sm:$0xff]
  %v5758 = vld [vmem:[%s6 + $0x450] sm:$0xff]
  %v5759 = vld [vmem:[%s6 + $0x458] sm:$0xff]
  %v5760 = vld [vmem:[%s6 + $0x460] sm:$0xff]
  %v5761 = vld [vmem:[%s6 + $0x468] sm:$0xff]
  %v5762 = vld [vmem:[%s6 + $0x470] sm:$0xff]
  %v5763 = vld [vmem:[%s6 + $0x478] sm:$0xff]
  %v5765 = vsel %vm5229, %v5188, 0
  %5767 = vmatpush.msra.mxu0 0.0
  %5768 = vmatpush.msra.mxu0 0.0
  %5769 = vmatpush.msra.mxu0 0.0
  %5770 = vmatpush.msra.mxu0 0.0
  %5771 = vmatpush.msra.mxu0 0.0
  %5772 = vmatpush.msra.mxu0 0.0
  %5773 = vmatpush.msra.mxu0 0.0
  %5774 = vmatpush.msra.mxu0 0.0
  %5775 = vmatpush.msra.mxu0 %v5763
  %5776 = vmatpush.msra.mxu0 %v5762
  %5777 = vmatpush.msra.mxu0 %v5761
  %5778 = vmatpush.msra.mxu0 %v5760
  %5779 = vmatpush.msra.mxu0 %v5759
  %5780 = vmatpush.msra.mxu0 %v5758
  %5781 = vmatpush.msra.mxu0 %v5757
  %5782 = vmatpush.msra.mxu0 %v5756
  %5783 = vmatmul.f32.gmra.mxu0 %v5765
  %v5784 = vpop.f32.mrf.mxu0
  %v5785 = vadd.f32 0.0, %v5784
  %5786 = vdwg.mxu0
  %v5787 = vadd.f32 %v5755, %v5785
  %v5788 = vld [vmem:[%s6 + $0x480] sm:$0xff]
  %v5789 = vld [vmem:[%s6 + $0x488] sm:$0xff]
  %v5790 = vld [vmem:[%s6 + $0x490] sm:$0xff]
  %v5791 = vld [vmem:[%s6 + $0x498] sm:$0xff]
  %v5792 = vld [vmem:[%s6 + $0x4a0] sm:$0xff]
  %v5793 = vld [vmem:[%s6 + $0x4a8] sm:$0xff]
  %v5794 = vld [vmem:[%s6 + $0x4b0] sm:$0xff]
  %v5795 = vld [vmem:[%s6 + $0x4b8] sm:$0xff]
  %v5797 = vsel %vm5229, %v5189, 0
  %5799 = vmatpush.msra.mxu0 0.0
  %5800 = vmatpush.msra.mxu0 0.0
  %5801 = vmatpush.msra.mxu0 0.0
  %5802 = vmatpush.msra.mxu0 0.0
  %5803 = vmatpush.msra.mxu0 0.0
  %5804 = vmatpush.msra.mxu0 0.0
  %5805 = vmatpush.msra.mxu0 0.0
  %5806 = vmatpush.msra.mxu0 0.0
  %5807 = vmatpush.msra.mxu0 %v5795
  %5808 = vmatpush.msra.mxu0 %v5794
  %5809 = vmatpush.msra.mxu0 %v5793
  %5810 = vmatpush.msra.mxu0 %v5792
  %5811 = vmatpush.msra.mxu0 %v5791
  %5812 = vmatpush.msra.mxu0 %v5790
  %5813 = vmatpush.msra.mxu0 %v5789
  %5814 = vmatpush.msra.mxu0 %v5788
  %5815 = vmatmul.f32.gmra.mxu0 %v5797
  %v5816 = vpop.f32.mrf.mxu0
  %v5817 = vadd.f32 0.0, %v5816
  %5818 = vdwg.mxu0
  %v5819 = vadd.f32 %v5787, %v5817
  %v5820 = vld [vmem:[%s6 + $0x4c0] sm:$0xff]
  %v5821 = vld [vmem:[%s6 + $0x4c8] sm:$0xff]
  %v5822 = vld [vmem:[%s6 + $0x4d0] sm:$0xff]
  %v5823 = vld [vmem:[%s6 + $0x4d8] sm:$0xff]
  %v5824 = vld [vmem:[%s6 + $0x4e0] sm:$0xff]
  %v5825 = vld [vmem:[%s6 + $0x4e8] sm:$0xff]
  %v5826 = vld [vmem:[%s6 + $0x4f0] sm:$0xff]
  %v5827 = vld [vmem:[%s6 + $0x4f8] sm:$0xff]
  %v5829 = vsel %vm5229, %v5190, 0
  %5831 = vmatpush.msra.mxu0 0.0
  %5832 = vmatpush.msra.mxu0 0.0
  %5833 = vmatpush.msra.mxu0 0.0
  %5834 = vmatpush.msra.mxu0 0.0
  %5835 = vmatpush.msra.mxu0 0.0
  %5836 = vmatpush.msra.mxu0 0.0
  %5837 = vmatpush.msra.mxu0 0.0
  %5838 = vmatpush.msra.mxu0 0.0
  %5839 = vmatpush.msra.mxu0 %v5827
  %5840 = vmatpush.msra.mxu0 %v5826
  %5841 = vmatpush.msra.mxu0 %v5825
  %5842 = vmatpush.msra.mxu0 %v5824
  %5843 = vmatpush.msra.mxu0 %v5823
  %5844 = vmatpush.msra.mxu0 %v5822
  %5845 = vmatpush.msra.mxu0 %v5821
  %5846 = vmatpush.msra.mxu0 %v5820
  %5847 = vmatmul.f32.gmra.mxu0 %v5829
  %v5848 = vpop.f32.mrf.mxu0
  %v5849 = vadd.f32 0.0, %v5848
  %5850 = vdwg.mxu0
  %v5851 = vadd.f32 %v5819, %v5849
  %v5852 = vld [vmem:[%s6 + $0x500] sm:$0xff]
  %v5853 = vld [vmem:[%s6 + $0x508] sm:$0xff]
  %v5854 = vld [vmem:[%s6 + $0x510] sm:$0xff]
  %v5855 = vld [vmem:[%s6 + $0x518] sm:$0xff]
  %v5856 = vld [vmem:[%s6 + $0x520] sm:$0xff]
  %v5857 = vld [vmem:[%s6 + $0x528] sm:$0xff]
  %v5858 = vld [vmem:[%s6 + $0x530] sm:$0xff]
  %v5859 = vld [vmem:[%s6 + $0x538] sm:$0xff]
  %v5861 = vsel %vm5229, %v5191, 0
  %5863 = vmatpush.msra.mxu0 0.0
  %5864 = vmatpush.msra.mxu0 0.0
  %5865 = vmatpush.msra.mxu0 0.0
  %5866 = vmatpush.msra.mxu0 0.0
  %5867 = vmatpush.msra.mxu0 0.0
  %5868 = vmatpush.msra.mxu0 0.0
  %5869 = vmatpush.msra.mxu0 0.0
  %5870 = vmatpush.msra.mxu0 0.0
  %5871 = vmatpush.msra.mxu0 %v5859
  %5872 = vmatpush.msra.mxu0 %v5858
  %5873 = vmatpush.msra.mxu0 %v5857
  %5874 = vmatpush.msra.mxu0 %v5856
  %5875 = vmatpush.msra.mxu0 %v5855
  %5876 = vmatpush.msra.mxu0 %v5854
  %5877 = vmatpush.msra.mxu0 %v5853
  %5878 = vmatpush.msra.mxu0 %v5852
  %5879 = vmatmul.f32.gmra.mxu0 %v5861
  %v5880 = vpop.f32.mrf.mxu0
  %v5881 = vadd.f32 0.0, %v5880
  %5882 = vdwg.mxu0
  %v5883 = vadd.f32 %v5851, %v5881
  %v5884 = vld [vmem:[%s6 + $0x540] sm:$0xff]
  %v5885 = vld [vmem:[%s6 + $0x548] sm:$0xff]
  %v5886 = vld [vmem:[%s6 + $0x550] sm:$0xff]
  %v5887 = vld [vmem:[%s6 + $0x558] sm:$0xff]
  %v5888 = vld [vmem:[%s6 + $0x560] sm:$0xff]
  %v5889 = vld [vmem:[%s6 + $0x568] sm:$0xff]
  %v5890 = vld [vmem:[%s6 + $0x570] sm:$0xff]
  %v5891 = vld [vmem:[%s6 + $0x578] sm:$0xff]
  %v5893 = vsel %vm5229, %v5192, 0
  %5895 = vmatpush.msra.mxu0 0.0
  %5896 = vmatpush.msra.mxu0 0.0
  %5897 = vmatpush.msra.mxu0 0.0
  %5898 = vmatpush.msra.mxu0 0.0
  %5899 = vmatpush.msra.mxu0 0.0
  %5900 = vmatpush.msra.mxu0 0.0
  %5901 = vmatpush.msra.mxu0 0.0
  %5902 = vmatpush.msra.mxu0 0.0
  %5903 = vmatpush.msra.mxu0 %v5891
  %5904 = vmatpush.msra.mxu0 %v5890
  %5905 = vmatpush.msra.mxu0 %v5889
  %5906 = vmatpush.msra.mxu0 %v5888
  %5907 = vmatpush.msra.mxu0 %v5887
  %5908 = vmatpush.msra.mxu0 %v5886
  %5909 = vmatpush.msra.mxu0 %v5885
  %5910 = vmatpush.msra.mxu0 %v5884
  %5911 = vmatmul.f32.gmra.mxu0 %v5893
  %v5912 = vpop.f32.mrf.mxu0
  %v5913 = vadd.f32 0.0, %v5912
  %5914 = vdwg.mxu0
  %v5915 = vadd.f32 %v5883, %v5913
  %v5916 = vld [vmem:[%s6 + $0x580] sm:$0xff]
  %v5917 = vld [vmem:[%s6 + $0x588] sm:$0xff]
  %v5918 = vld [vmem:[%s6 + $0x590] sm:$0xff]
  %v5919 = vld [vmem:[%s6 + $0x598] sm:$0xff]
  %v5920 = vld [vmem:[%s6 + $0x5a0] sm:$0xff]
  %v5921 = vld [vmem:[%s6 + $0x5a8] sm:$0xff]
  %v5922 = vld [vmem:[%s6 + $0x5b0] sm:$0xff]
  %v5923 = vld [vmem:[%s6 + $0x5b8] sm:$0xff]
  %v5925 = vsel %vm5229, %v5193, 0
  %5927 = vmatpush.msra.mxu0 0.0
  %5928 = vmatpush.msra.mxu0 0.0
  %5929 = vmatpush.msra.mxu0 0.0
  %5930 = vmatpush.msra.mxu0 0.0
  %5931 = vmatpush.msra.mxu0 0.0
  %5932 = vmatpush.msra.mxu0 0.0
  %5933 = vmatpush.msra.mxu0 0.0
  %5934 = vmatpush.msra.mxu0 0.0
  %5935 = vmatpush.msra.mxu0 %v5923
  %5936 = vmatpush.msra.mxu0 %v5922
  %5937 = vmatpush.msra.mxu0 %v5921
  %5938 = vmatpush.msra.mxu0 %v5920
  %5939 = vmatpush.msra.mxu0 %v5919
  %5940 = vmatpush.msra.mxu0 %v5918
  %5941 = vmatpush.msra.mxu0 %v5917
  %5942 = vmatpush.msra.mxu0 %v5916
  %5943 = vmatmul.f32.gmra.mxu0 %v5925
  %v5944 = vpop.f32.mrf.mxu0
  %v5945 = vadd.f32 0.0, %v5944
  %5946 = vdwg.mxu0
  %v5947 = vadd.f32 %v5915, %v5945
  %v5948 = vld [vmem:[%s6 + $0x5c0] sm:$0xff]
  %v5949 = vld [vmem:[%s6 + $0x5c8] sm:$0xff]
  %v5950 = vld [vmem:[%s6 + $0x5d0] sm:$0xff]
  %v5951 = vld [vmem:[%s6 + $0x5d8] sm:$0xff]
  %v5952 = vld [vmem:[%s6 + $0x5e0] sm:$0xff]
  %v5953 = vld [vmem:[%s6 + $0x5e8] sm:$0xff]
  %v5954 = vld [vmem:[%s6 + $0x5f0] sm:$0xff]
  %v5955 = vld [vmem:[%s6 + $0x5f8] sm:$0xff]
  %v5957 = vsel %vm5229, %v5194, 0
  %5959 = vmatpush.msra.mxu0 0.0
  %5960 = vmatpush.msra.mxu0 0.0
  %5961 = vmatpush.msra.mxu0 0.0
  %5962 = vmatpush.msra.mxu0 0.0
  %5963 = vmatpush.msra.mxu0 0.0
  %5964 = vmatpush.msra.mxu0 0.0
  %5965 = vmatpush.msra.mxu0 0.0
  %5966 = vmatpush.msra.mxu0 0.0
  %5967 = vmatpush.msra.mxu0 %v5955
  %5968 = vmatpush.msra.mxu0 %v5954
  %5969 = vmatpush.msra.mxu0 %v5953
  %5970 = vmatpush.msra.mxu0 %v5952
  %5971 = vmatpush.msra.mxu0 %v5951
  %5972 = vmatpush.msra.mxu0 %v5950
  %5973 = vmatpush.msra.mxu0 %v5949
  %5974 = vmatpush.msra.mxu0 %v5948
  %5975 = vmatmul.f32.gmra.mxu0 %v5957
  %v5976 = vpop.f32.mrf.mxu0
  %v5977 = vadd.f32 0.0, %v5976
  %5978 = vdwg.mxu0
  %v5979 = vadd.f32 %v5947, %v5977
  %v5980 = vld [vmem:[%s6 + $0x600] sm:$0xff]
  %v5981 = vld [vmem:[%s6 + $0x608] sm:$0xff]
  %v5982 = vld [vmem:[%s6 + $0x610] sm:$0xff]
  %v5983 = vld [vmem:[%s6 + $0x618] sm:$0xff]
  %v5984 = vld [vmem:[%s6 + $0x620] sm:$0xff]
  %v5985 = vld [vmem:[%s6 + $0x628] sm:$0xff]
  %v5986 = vld [vmem:[%s6 + $0x630] sm:$0xff]
  %v5987 = vld [vmem:[%s6 + $0x638] sm:$0xff]
  %v5989 = vsel %vm5229, %v5195, 0
  %5991 = vmatpush.msra.mxu0 0.0
  %5992 = vmatpush.msra.mxu0 0.0
  %5993 = vmatpush.msra.mxu0 0.0
  %5994 = vmatpush.msra.mxu0 0.0
  %5995 = vmatpush.msra.mxu0 0.0
  %5996 = vmatpush.msra.mxu0 0.0
  %5997 = vmatpush.msra.mxu0 0.0
  %5998 = vmatpush.msra.mxu0 0.0
  %5999 = vmatpush.msra.mxu0 %v5987
  %6000 = vmatpush.msra.mxu0 %v5986
  %6001 = vmatpush.msra.mxu0 %v5985
  %6002 = vmatpush.msra.mxu0 %v5984
  %6003 = vmatpush.msra.mxu0 %v5983
  %6004 = vmatpush.msra.mxu0 %v5982
  %6005 = vmatpush.msra.mxu0 %v5981
  %6006 = vmatpush.msra.mxu0 %v5980
  %6007 = vmatmul.f32.gmra.mxu0 %v5989
  %v6008 = vpop.f32.mrf.mxu0
  %v6009 = vadd.f32 0.0, %v6008
  %6010 = vdwg.mxu0
  %v6011 = vadd.f32 %v5979, %v6009
  %v6012 = vld [vmem:[%s6 + $0x640] sm:$0xff]
  %v6013 = vld [vmem:[%s6 + $0x648] sm:$0xff]
  %v6014 = vld [vmem:[%s6 + $0x650] sm:$0xff]
  %v6015 = vld [vmem:[%s6 + $0x658] sm:$0xff]
  %v6016 = vld [vmem:[%s6 + $0x660] sm:$0xff]
  %v6017 = vld [vmem:[%s6 + $0x668] sm:$0xff]
  %v6018 = vld [vmem:[%s6 + $0x670] sm:$0xff]
  %v6019 = vld [vmem:[%s6 + $0x678] sm:$0xff]
  %v6021 = vsel %vm5229, %v5196, 0
  %6023 = vmatpush.msra.mxu0 0.0
  %6024 = vmatpush.msra.mxu0 0.0
  %6025 = vmatpush.msra.mxu0 0.0
  %6026 = vmatpush.msra.mxu0 0.0
  %6027 = vmatpush.msra.mxu0 0.0
  %6028 = vmatpush.msra.mxu0 0.0
  %6029 = vmatpush.msra.mxu0 0.0
  %6030 = vmatpush.msra.mxu0 0.0
  %6031 = vmatpush.msra.mxu0 %v6019
  %6032 = vmatpush.msra.mxu0 %v6018
  %6033 = vmatpush.msra.mxu0 %v6017
  %6034 = vmatpush.msra.mxu0 %v6016
  %6035 = vmatpush.msra.mxu0 %v6015
  %6036 = vmatpush.msra.mxu0 %v6014
  %6037 = vmatpush.msra.mxu0 %v6013
  %6038 = vmatpush.msra.mxu0 %v6012
  %6039 = vmatmul.f32.gmra.mxu0 %v6021
  %v6040 = vpop.f32.mrf.mxu0
  %v6041 = vadd.f32 0.0, %v6040
  %6042 = vdwg.mxu0
  %v6043 = vadd.f32 %v6011, %v6041
  %v6044 = vld [vmem:[%s6 + $0x680] sm:$0xff]
  %v6045 = vld [vmem:[%s6 + $0x688] sm:$0xff]
  %v6046 = vld [vmem:[%s6 + $0x690] sm:$0xff]
  %v6047 = vld [vmem:[%s6 + $0x698] sm:$0xff]
  %v6048 = vld [vmem:[%s6 + $0x6a0] sm:$0xff]
  %v6049 = vld [vmem:[%s6 + $0x6a8] sm:$0xff]
  %v6050 = vld [vmem:[%s6 + $0x6b0] sm:$0xff]
  %v6051 = vld [vmem:[%s6 + $0x6b8] sm:$0xff]
  %v6053 = vsel %vm5229, %v5197, 0
  %6055 = vmatpush.msra.mxu0 0.0
  %6056 = vmatpush.msra.mxu0 0.0
  %6057 = vmatpush.msra.mxu0 0.0
  %6058 = vmatpush.msra.mxu0 0.0
  %6059 = vmatpush.msra.mxu0 0.0
  %6060 = vmatpush.msra.mxu0 0.0
  %6061 = vmatpush.msra.mxu0 0.0
  %6062 = vmatpush.msra.mxu0 0.0
  %6063 = vmatpush.msra.mxu0 %v6051
  %6064 = vmatpush.msra.mxu0 %v6050
  %6065 = vmatpush.msra.mxu0 %v6049
  %6066 = vmatpush.msra.mxu0 %v6048
  %6067 = vmatpush.msra.mxu0 %v6047
  %6068 = vmatpush.msra.mxu0 %v6046
  %6069 = vmatpush.msra.mxu0 %v6045
  %6070 = vmatpush.msra.mxu0 %v6044
  %6071 = vmatmul.f32.gmra.mxu0 %v6053
  %v6072 = vpop.f32.mrf.mxu0
  %v6073 = vadd.f32 0.0, %v6072
  %6074 = vdwg.mxu0
  %v6075 = vadd.f32 %v6043, %v6073
  %v6076 = vld [vmem:[%s6 + $0x6c0] sm:$0xff]
  %v6077 = vld [vmem:[%s6 + $0x6c8] sm:$0xff]
  %v6078 = vld [vmem:[%s6 + $0x6d0] sm:$0xff]
  %v6079 = vld [vmem:[%s6 + $0x6d8] sm:$0xff]
  %v6080 = vld [vmem:[%s6 + $0x6e0] sm:$0xff]
  %v6081 = vld [vmem:[%s6 + $0x6e8] sm:$0xff]
  %v6082 = vld [vmem:[%s6 + $0x6f0] sm:$0xff]
  %v6083 = vld [vmem:[%s6 + $0x6f8] sm:$0xff]
  %v6085 = vsel %vm5229, %v5198, 0
  %6087 = vmatpush.msra.mxu0 0.0
  %6088 = vmatpush.msra.mxu0 0.0
  %6089 = vmatpush.msra.mxu0 0.0
  %6090 = vmatpush.msra.mxu0 0.0
  %6091 = vmatpush.msra.mxu0 0.0
  %6092 = vmatpush.msra.mxu0 0.0
  %6093 = vmatpush.msra.mxu0 0.0
  %6094 = vmatpush.msra.mxu0 0.0
  %6095 = vmatpush.msra.mxu0 %v6083
  %6096 = vmatpush.msra.mxu0 %v6082
  %6097 = vmatpush.msra.mxu0 %v6081
  %6098 = vmatpush.msra.mxu0 %v6080
  %6099 = vmatpush.msra.mxu0 %v6079
  %6100 = vmatpush.msra.mxu0 %v6078
  %6101 = vmatpush.msra.mxu0 %v6077
  %6102 = vmatpush.msra.mxu0 %v6076
  %6103 = vmatmul.f32.gmra.mxu0 %v6085
  %v6104 = vpop.f32.mrf.mxu0
  %v6105 = vadd.f32 0.0, %v6104
  %6106 = vdwg.mxu0
  %v6107 = vadd.f32 %v6075, %v6105
  %v6108 = vld [vmem:[%s6 + $0x700] sm:$0xff]
  %v6109 = vld [vmem:[%s6 + $0x708] sm:$0xff]
  %v6110 = vld [vmem:[%s6 + $0x710] sm:$0xff]
  %v6111 = vld [vmem:[%s6 + $0x718] sm:$0xff]
  %v6112 = vld [vmem:[%s6 + $0x720] sm:$0xff]
  %v6113 = vld [vmem:[%s6 + $0x728] sm:$0xff]
  %v6114 = vld [vmem:[%s6 + $0x730] sm:$0xff]
  %v6115 = vld [vmem:[%s6 + $0x738] sm:$0xff]
  %v6117 = vsel %vm5229, %v5199, 0
  %6119 = vmatpush.msra.mxu0 0.0
  %6120 = vmatpush.msra.mxu0 0.0
  %6121 = vmatpush.msra.mxu0 0.0
  %6122 = vmatpush.msra.mxu0 0.0
  %6123 = vmatpush.msra.mxu0 0.0
  %6124 = vmatpush.msra.mxu0 0.0
  %6125 = vmatpush.msra.mxu0 0.0
  %6126 = vmatpush.msra.mxu0 0.0
  %6127 = vmatpush.msra.mxu0 %v6115
  %6128 = vmatpush.msra.mxu0 %v6114
  %6129 = vmatpush.msra.mxu0 %v6113
  %6130 = vmatpush.msra.mxu0 %v6112
  %6131 = vmatpush.msra.mxu0 %v6111
  %6132 = vmatpush.msra.mxu0 %v6110
  %6133 = vmatpush.msra.mxu0 %v6109
  %6134 = vmatpush.msra.mxu0 %v6108
  %6135 = vmatmul.f32.gmra.mxu0 %v6117
  %v6136 = vpop.f32.mrf.mxu0
  %v6137 = vadd.f32 0.0, %v6136
  %6138 = vdwg.mxu0
  %v6139 = vadd.f32 %v6107, %v6137
  %v6140 = vld [vmem:[%s6 + $0x740] sm:$0xff]
  %v6141 = vld [vmem:[%s6 + $0x748] sm:$0xff]
  %v6142 = vld [vmem:[%s6 + $0x750] sm:$0xff]
  %v6143 = vld [vmem:[%s6 + $0x758] sm:$0xff]
  %v6144 = vld [vmem:[%s6 + $0x760] sm:$0xff]
  %v6145 = vld [vmem:[%s6 + $0x768] sm:$0xff]
  %v6146 = vld [vmem:[%s6 + $0x770] sm:$0xff]
  %v6147 = vld [vmem:[%s6 + $0x778] sm:$0xff]
  %v6149 = vsel %vm5229, %v5200, 0
  %6151 = vmatpush.msra.mxu0 0.0
  %6152 = vmatpush.msra.mxu0 0.0
  %6153 = vmatpush.msra.mxu0 0.0
  %6154 = vmatpush.msra.mxu0 0.0
  %6155 = vmatpush.msra.mxu0 0.0
  %6156 = vmatpush.msra.mxu0 0.0
  %6157 = vmatpush.msra.mxu0 0.0
  %6158 = vmatpush.msra.mxu0 0.0
  %6159 = vmatpush.msra.mxu0 %v6147
  %6160 = vmatpush.msra.mxu0 %v6146
  %6161 = vmatpush.msra.mxu0 %v6145
  %6162 = vmatpush.msra.mxu0 %v6144
  %6163 = vmatpush.msra.mxu0 %v6143
  %6164 = vmatpush.msra.mxu0 %v6142
  %6165 = vmatpush.msra.mxu0 %v6141
  %6166 = vmatpush.msra.mxu0 %v6140
  %6167 = vmatmul.f32.gmra.mxu0 %v6149
  %v6168 = vpop.f32.mrf.mxu0
  %v6169 = vadd.f32 0.0, %v6168
  %6170 = vdwg.mxu0
  %v6171 = vadd.f32 %v6139, %v6169
  %v6172 = vld [vmem:[%s6 + $0x780] sm:$0xff]
  %v6173 = vld [vmem:[%s6 + $0x788] sm:$0xff]
  %v6174 = vld [vmem:[%s6 + $0x790] sm:$0xff]
  %v6175 = vld [vmem:[%s6 + $0x798] sm:$0xff]
  %v6176 = vld [vmem:[%s6 + $0x7a0] sm:$0xff]
  %v6177 = vld [vmem:[%s6 + $0x7a8] sm:$0xff]
  %v6178 = vld [vmem:[%s6 + $0x7b0] sm:$0xff]
  %v6179 = vld [vmem:[%s6 + $0x7b8] sm:$0xff]
  %v6181 = vsel %vm5229, %v5201, 0
  %6183 = vmatpush.msra.mxu0 0.0
  %6184 = vmatpush.msra.mxu0 0.0
  %6185 = vmatpush.msra.mxu0 0.0
  %6186 = vmatpush.msra.mxu0 0.0
  %6187 = vmatpush.msra.mxu0 0.0
  %6188 = vmatpush.msra.mxu0 0.0
  %6189 = vmatpush.msra.mxu0 0.0
  %6190 = vmatpush.msra.mxu0 0.0
  %6191 = vmatpush.msra.mxu0 %v6179
  %6192 = vmatpush.msra.mxu0 %v6178
  %6193 = vmatpush.msra.mxu0 %v6177
  %6194 = vmatpush.msra.mxu0 %v6176
  %6195 = vmatpush.msra.mxu0 %v6175
  %6196 = vmatpush.msra.mxu0 %v6174
  %6197 = vmatpush.msra.mxu0 %v6173
  %6198 = vmatpush.msra.mxu0 %v6172
  %6199 = vmatmul.f32.gmra.mxu0 %v6181
  %v6200 = vpop.f32.mrf.mxu0
  %v6201 = vadd.f32 0.0, %v6200
  %6202 = vdwg.mxu0
  %v6203 = vadd.f32 %v6171, %v6201
  %v6204 = vld [vmem:[%s6 + $0x7c0] sm:$0xff]
  %v6205 = vld [vmem:[%s6 + $0x7c8] sm:$0xff]
  %v6206 = vld [vmem:[%s6 + $0x7d0] sm:$0xff]
  %v6207 = vld [vmem:[%s6 + $0x7d8] sm:$0xff]
  %v6208 = vld [vmem:[%s6 + $0x7e0] sm:$0xff]
  %v6209 = vld [vmem:[%s6 + $0x7e8] sm:$0xff]
  %v6210 = vld [vmem:[%s6 + $0x7f0] sm:$0xff]
  %v6211 = vld [vmem:[%s6 + $0x7f8] sm:$0xff]
  %v6213 = vsel %vm5229, %v5202, 0
  %6215 = vmatpush.msra.mxu0 0.0
  %6216 = vmatpush.msra.mxu0 0.0
  %6217 = vmatpush.msra.mxu0 0.0
  %6218 = vmatpush.msra.mxu0 0.0
  %6219 = vmatpush.msra.mxu0 0.0
  %6220 = vmatpush.msra.mxu0 0.0
  %6221 = vmatpush.msra.mxu0 0.0
  %6222 = vmatpush.msra.mxu0 0.0
  %6223 = vmatpush.msra.mxu0 %v6211
  %6224 = vmatpush.msra.mxu0 %v6210
  %6225 = vmatpush.msra.mxu0 %v6209
  %6226 = vmatpush.msra.mxu0 %v6208
  %6227 = vmatpush.msra.mxu0 %v6207
  %6228 = vmatpush.msra.mxu0 %v6206
  %6229 = vmatpush.msra.mxu0 %v6205
  %6230 = vmatpush.msra.mxu0 %v6204
  %6231 = vmatmul.f32.gmra.mxu0 %v6213
  %v6232 = vpop.f32.mrf.mxu0
  %v6233 = vadd.f32 0.0, %v6232
  %6234 = vdwg.mxu0
  %v6235 = vadd.f32 %v6203, %v6233
  %v6236 = vld [vmem:[%s6 + $0x800] sm:$0xff]
  %v6237 = vld [vmem:[%s6 + $0x808] sm:$0xff]
  %v6238 = vld [vmem:[%s6 + $0x810] sm:$0xff]
  %v6239 = vld [vmem:[%s6 + $0x818] sm:$0xff]
  %v6240 = vld [vmem:[%s6 + $0x820] sm:$0xff]
  %v6241 = vld [vmem:[%s6 + $0x828] sm:$0xff]
  %v6242 = vld [vmem:[%s6 + $0x830] sm:$0xff]
  %v6243 = vld [vmem:[%s6 + $0x838] sm:$0xff]
  %v6245 = vsel %vm5229, %v5203, 0
  %6247 = vmatpush.msra.mxu0 0.0
  %6248 = vmatpush.msra.mxu0 0.0
  %6249 = vmatpush.msra.mxu0 0.0
  %6250 = vmatpush.msra.mxu0 0.0
  %6251 = vmatpush.msra.mxu0 0.0
  %6252 = vmatpush.msra.mxu0 0.0
  %6253 = vmatpush.msra.mxu0 0.0
  %6254 = vmatpush.msra.mxu0 0.0
  %6255 = vmatpush.msra.mxu0 %v6243
  %6256 = vmatpush.msra.mxu0 %v6242
  %6257 = vmatpush.msra.mxu0 %v6241
  %6258 = vmatpush.msra.mxu0 %v6240
  %6259 = vmatpush.msra.mxu0 %v6239
  %6260 = vmatpush.msra.mxu0 %v6238
  %6261 = vmatpush.msra.mxu0 %v6237
  %6262 = vmatpush.msra.mxu0 %v6236
  %6263 = vmatmul.f32.gmra.mxu0 %v6245
  %v6264 = vpop.f32.mrf.mxu0
  %v6265 = vadd.f32 0.0, %v6264
  %6266 = vdwg.mxu0
  %v6267 = vadd.f32 %v6235, %v6265
  %v6268 = vld [vmem:[%s6 + $0x840] sm:$0xff]
  %v6269 = vld [vmem:[%s6 + $0x848] sm:$0xff]
  %v6270 = vld [vmem:[%s6 + $0x850] sm:$0xff]
  %v6271 = vld [vmem:[%s6 + $0x858] sm:$0xff]
  %v6272 = vld [vmem:[%s6 + $0x860] sm:$0xff]
  %v6273 = vld [vmem:[%s6 + $0x868] sm:$0xff]
  %v6274 = vld [vmem:[%s6 + $0x870] sm:$0xff]
  %v6275 = vld [vmem:[%s6 + $0x878] sm:$0xff]
  %v6277 = vsel %vm5229, %v5204, 0
  %6279 = vmatpush.msra.mxu0 0.0
  %6280 = vmatpush.msra.mxu0 0.0
  %6281 = vmatpush.msra.mxu0 0.0
  %6282 = vmatpush.msra.mxu0 0.0
  %6283 = vmatpush.msra.mxu0 0.0
  %6284 = vmatpush.msra.mxu0 0.0
  %6285 = vmatpush.msra.mxu0 0.0
  %6286 = vmatpush.msra.mxu0 0.0
  %6287 = vmatpush.msra.mxu0 %v6275
  %6288 = vmatpush.msra.mxu0 %v6274
  %6289 = vmatpush.msra.mxu0 %v6273
  %6290 = vmatpush.msra.mxu0 %v6272
  %6291 = vmatpush.msra.mxu0 %v6271
  %6292 = vmatpush.msra.mxu0 %v6270
  %6293 = vmatpush.msra.mxu0 %v6269
  %6294 = vmatpush.msra.mxu0 %v6268
  %6295 = vmatmul.f32.gmra.mxu0 %v6277
  %v6296 = vpop.f32.mrf.mxu0
  %v6297 = vadd.f32 0.0, %v6296
  %6298 = vdwg.mxu0
  %v6299 = vadd.f32 %v6267, %v6297
  %v6300 = vld [vmem:[%s6 + $0x880] sm:$0xff]
  %v6301 = vld [vmem:[%s6 + $0x888] sm:$0xff]
  %v6302 = vld [vmem:[%s6 + $0x890] sm:$0xff]
  %v6303 = vld [vmem:[%s6 + $0x898] sm:$0xff]
  %v6304 = vld [vmem:[%s6 + $0x8a0] sm:$0xff]
  %v6305 = vld [vmem:[%s6 + $0x8a8] sm:$0xff]
  %v6306 = vld [vmem:[%s6 + $0x8b0] sm:$0xff]
  %v6307 = vld [vmem:[%s6 + $0x8b8] sm:$0xff]
  %v6309 = vsel %vm5229, %v5205, 0
  %6311 = vmatpush.msra.mxu0 0.0
  %6312 = vmatpush.msra.mxu0 0.0
  %6313 = vmatpush.msra.mxu0 0.0
  %6314 = vmatpush.msra.mxu0 0.0
  %6315 = vmatpush.msra.mxu0 0.0
  %6316 = vmatpush.msra.mxu0 0.0
  %6317 = vmatpush.msra.mxu0 0.0
  %6318 = vmatpush.msra.mxu0 0.0
  %6319 = vmatpush.msra.mxu0 %v6307
  %6320 = vmatpush.msra.mxu0 %v6306
  %6321 = vmatpush.msra.mxu0 %v6305
  %6322 = vmatpush.msra.mxu0 %v6304
  %6323 = vmatpush.msra.mxu0 %v6303
  %6324 = vmatpush.msra.mxu0 %v6302
  %6325 = vmatpush.msra.mxu0 %v6301
  %6326 = vmatpush.msra.mxu0 %v6300
  %6327 = vmatmul.f32.gmra.mxu0 %v6309
  %v6328 = vpop.f32.mrf.mxu0
  %v6329 = vadd.f32 0.0, %v6328
  %6330 = vdwg.mxu0
  %v6331 = vadd.f32 %v6299, %v6329
  %v6332 = vld [vmem:[%s6 + $0x8c0] sm:$0xff]
  %v6333 = vld [vmem:[%s6 + $0x8c8] sm:$0xff]
  %v6334 = vld [vmem:[%s6 + $0x8d0] sm:$0xff]
  %v6335 = vld [vmem:[%s6 + $0x8d8] sm:$0xff]
  %v6336 = vld [vmem:[%s6 + $0x8e0] sm:$0xff]
  %v6337 = vld [vmem:[%s6 + $0x8e8] sm:$0xff]
  %v6338 = vld [vmem:[%s6 + $0x8f0] sm:$0xff]
  %v6339 = vld [vmem:[%s6 + $0x8f8] sm:$0xff]
  %v6341 = vsel %vm5229, %v5206, 0
  %6343 = vmatpush.msra.mxu0 0.0
  %6344 = vmatpush.msra.mxu0 0.0
  %6345 = vmatpush.msra.mxu0 0.0
  %6346 = vmatpush.msra.mxu0 0.0
  %6347 = vmatpush.msra.mxu0 0.0
  %6348 = vmatpush.msra.mxu0 0.0
  %6349 = vmatpush.msra.mxu0 0.0
  %6350 = vmatpush.msra.mxu0 0.0
  %6351 = vmatpush.msra.mxu0 %v6339
  %6352 = vmatpush.msra.mxu0 %v6338
  %6353 = vmatpush.msra.mxu0 %v6337
  %6354 = vmatpush.msra.mxu0 %v6336
  %6355 = vmatpush.msra.mxu0 %v6335
  %6356 = vmatpush.msra.mxu0 %v6334
  %6357 = vmatpush.msra.mxu0 %v6333
  %6358 = vmatpush.msra.mxu0 %v6332
  %6359 = vmatmul.f32.gmra.mxu0 %v6341
  %v6360 = vpop.f32.mrf.mxu0
  %v6361 = vadd.f32 0.0, %v6360
  %6362 = vdwg.mxu0
  %v6363 = vadd.f32 %v6331, %v6361
  %v6364 = vld [vmem:[%s6 + $0x900] sm:$0xff]
  %v6365 = vld [vmem:[%s6 + $0x908] sm:$0xff]
  %v6366 = vld [vmem:[%s6 + $0x910] sm:$0xff]
  %v6367 = vld [vmem:[%s6 + $0x918] sm:$0xff]
  %v6368 = vld [vmem:[%s6 + $0x920] sm:$0xff]
  %v6369 = vld [vmem:[%s6 + $0x928] sm:$0xff]
  %v6370 = vld [vmem:[%s6 + $0x930] sm:$0xff]
  %v6371 = vld [vmem:[%s6 + $0x938] sm:$0xff]
  %v6373 = vsel %vm5229, %v5207, 0
  %6375 = vmatpush.msra.mxu0 0.0
  %6376 = vmatpush.msra.mxu0 0.0
  %6377 = vmatpush.msra.mxu0 0.0
  %6378 = vmatpush.msra.mxu0 0.0
  %6379 = vmatpush.msra.mxu0 0.0
  %6380 = vmatpush.msra.mxu0 0.0
  %6381 = vmatpush.msra.mxu0 0.0
  %6382 = vmatpush.msra.mxu0 0.0
  %6383 = vmatpush.msra.mxu0 %v6371
  %6384 = vmatpush.msra.mxu0 %v6370
  %6385 = vmatpush.msra.mxu0 %v6369
  %6386 = vmatpush.msra.mxu0 %v6368
  %6387 = vmatpush.msra.mxu0 %v6367
  %6388 = vmatpush.msra.mxu0 %v6366
  %6389 = vmatpush.msra.mxu0 %v6365
  %6390 = vmatpush.msra.mxu0 %v6364
  %6391 = vmatmul.f32.gmra.mxu0 %v6373
  %v6392 = vpop.f32.mrf.mxu0
  %v6393 = vadd.f32 0.0, %v6392
  %6394 = vdwg.mxu0
  %v6395 = vadd.f32 %v6363, %v6393
  %v6396 = vld [vmem:[%s6 + $0x940] sm:$0xff]
  %v6397 = vld [vmem:[%s6 + $0x948] sm:$0xff]
  %v6398 = vld [vmem:[%s6 + $0x950] sm:$0xff]
  %v6399 = vld [vmem:[%s6 + $0x958] sm:$0xff]
  %v6400 = vld [vmem:[%s6 + $0x960] sm:$0xff]
  %v6401 = vld [vmem:[%s6 + $0x968] sm:$0xff]
  %v6402 = vld [vmem:[%s6 + $0x970] sm:$0xff]
  %v6403 = vld [vmem:[%s6 + $0x978] sm:$0xff]
  %v6405 = vsel %vm5229, %v5208, 0
  %6407 = vmatpush.msra.mxu0 0.0
  %6408 = vmatpush.msra.mxu0 0.0
  %6409 = vmatpush.msra.mxu0 0.0
  %6410 = vmatpush.msra.mxu0 0.0
  %6411 = vmatpush.msra.mxu0 0.0
  %6412 = vmatpush.msra.mxu0 0.0
  %6413 = vmatpush.msra.mxu0 0.0
  %6414 = vmatpush.msra.mxu0 0.0
  %6415 = vmatpush.msra.mxu0 %v6403
  %6416 = vmatpush.msra.mxu0 %v6402
  %6417 = vmatpush.msra.mxu0 %v6401
  %6418 = vmatpush.msra.mxu0 %v6400
  %6419 = vmatpush.msra.mxu0 %v6399
  %6420 = vmatpush.msra.mxu0 %v6398
  %6421 = vmatpush.msra.mxu0 %v6397
  %6422 = vmatpush.msra.mxu0 %v6396
  %6423 = vmatmul.f32.gmra.mxu0 %v6405
  %v6424 = vpop.f32.mrf.mxu0
  %v6425 = vadd.f32 0.0, %v6424
  %6426 = vdwg.mxu0
  %v6427 = vadd.f32 %v6395, %v6425
  %v6428 = vld [vmem:[%s6 + $0x980] sm:$0xff]
  %v6429 = vld [vmem:[%s6 + $0x988] sm:$0xff]
  %v6430 = vld [vmem:[%s6 + $0x990] sm:$0xff]
  %v6431 = vld [vmem:[%s6 + $0x998] sm:$0xff]
  %v6432 = vld [vmem:[%s6 + $0x9a0] sm:$0xff]
  %v6433 = vld [vmem:[%s6 + $0x9a8] sm:$0xff]
  %v6434 = vld [vmem:[%s6 + $0x9b0] sm:$0xff]
  %v6435 = vld [vmem:[%s6 + $0x9b8] sm:$0xff]
  %v6437 = vsel %vm5229, %v5209, 0
  %6439 = vmatpush.msra.mxu0 0.0
  %6440 = vmatpush.msra.mxu0 0.0
  %6441 = vmatpush.msra.mxu0 0.0
  %6442 = vmatpush.msra.mxu0 0.0
  %6443 = vmatpush.msra.mxu0 0.0
  %6444 = vmatpush.msra.mxu0 0.0
  %6445 = vmatpush.msra.mxu0 0.0
  %6446 = vmatpush.msra.mxu0 0.0
  %6447 = vmatpush.msra.mxu0 %v6435
  %6448 = vmatpush.msra.mxu0 %v6434
  %6449 = vmatpush.msra.mxu0 %v6433
  %6450 = vmatpush.msra.mxu0 %v6432
  %6451 = vmatpush.msra.mxu0 %v6431
  %6452 = vmatpush.msra.mxu0 %v6430
  %6453 = vmatpush.msra.mxu0 %v6429
  %6454 = vmatpush.msra.mxu0 %v6428
  %6455 = vmatmul.f32.gmra.mxu0 %v6437
  %v6456 = vpop.f32.mrf.mxu0
  %v6457 = vadd.f32 0.0, %v6456
  %6458 = vdwg.mxu0
  %v6459 = vadd.f32 %v6427, %v6457
  %v6460 = vld [vmem:[%s6 + $0x9c0] sm:$0xff]
  %v6461 = vld [vmem:[%s6 + $0x9c8] sm:$0xff]
  %v6462 = vld [vmem:[%s6 + $0x9d0] sm:$0xff]
  %v6463 = vld [vmem:[%s6 + $0x9d8] sm:$0xff]
  %v6464 = vld [vmem:[%s6 + $0x9e0] sm:$0xff]
  %v6465 = vld [vmem:[%s6 + $0x9e8] sm:$0xff]
  %v6466 = vld [vmem:[%s6 + $0x9f0] sm:$0xff]
  %v6467 = vld [vmem:[%s6 + $0x9f8] sm:$0xff]
  %v6469 = vsel %vm5229, %v5210, 0
  %6471 = vmatpush.msra.mxu0 0.0
  %6472 = vmatpush.msra.mxu0 0.0
  %6473 = vmatpush.msra.mxu0 0.0
  %6474 = vmatpush.msra.mxu0 0.0
  %6475 = vmatpush.msra.mxu0 0.0
  %6476 = vmatpush.msra.mxu0 0.0
  %6477 = vmatpush.msra.mxu0 0.0
  %6478 = vmatpush.msra.mxu0 0.0
  %6479 = vmatpush.msra.mxu0 %v6467
  %6480 = vmatpush.msra.mxu0 %v6466
  %6481 = vmatpush.msra.mxu0 %v6465
  %6482 = vmatpush.msra.mxu0 %v6464
  %6483 = vmatpush.msra.mxu0 %v6463
  %6484 = vmatpush.msra.mxu0 %v6462
  %6485 = vmatpush.msra.mxu0 %v6461
  %6486 = vmatpush.msra.mxu0 %v6460
  %6487 = vmatmul.f32.gmra.mxu0 %v6469
  %v6488 = vpop.f32.mrf.mxu0
  %v6489 = vadd.f32 0.0, %v6488
  %6490 = vdwg.mxu0
  %v6491 = vadd.f32 %v6459, %v6489
  %v6492 = vld [vmem:[%s6 + $0xa00] sm:$0xff]
  %v6493 = vld [vmem:[%s6 + $0xa08] sm:$0xff]
  %v6494 = vld [vmem:[%s6 + $0xa10] sm:$0xff]
  %v6495 = vld [vmem:[%s6 + $0xa18] sm:$0xff]
  %v6496 = vld [vmem:[%s6 + $0xa20] sm:$0xff]
  %v6497 = vld [vmem:[%s6 + $0xa28] sm:$0xff]
  %v6498 = vld [vmem:[%s6 + $0xa30] sm:$0xff]
  %v6499 = vld [vmem:[%s6 + $0xa38] sm:$0xff]
  %v6501 = vsel %vm5229, %v5211, 0
  %6503 = vmatpush.msra.mxu0 0.0
  %6504 = vmatpush.msra.mxu0 0.0
  %6505 = vmatpush.msra.mxu0 0.0
  %6506 = vmatpush.msra.mxu0 0.0
  %6507 = vmatpush.msra.mxu0 0.0
  %6508 = vmatpush.msra.mxu0 0.0
  %6509 = vmatpush.msra.mxu0 0.0
  %6510 = vmatpush.msra.mxu0 0.0
  %6511 = vmatpush.msra.mxu0 %v6499
  %6512 = vmatpush.msra.mxu0 %v6498
  %6513 = vmatpush.msra.mxu0 %v6497
  %6514 = vmatpush.msra.mxu0 %v6496
  %6515 = vmatpush.msra.mxu0 %v6495
  %6516 = vmatpush.msra.mxu0 %v6494
  %6517 = vmatpush.msra.mxu0 %v6493
  %6518 = vmatpush.msra.mxu0 %v6492
  %6519 = vmatmul.f32.gmra.mxu0 %v6501
  %v6520 = vpop.f32.mrf.mxu0
  %v6521 = vadd.f32 0.0, %v6520
  %6522 = vdwg.mxu0
  %v6523 = vadd.f32 %v6491, %v6521
  %v6524 = vld [vmem:[%s6 + $0xa40] sm:$0xff]
  %v6525 = vld [vmem:[%s6 + $0xa48] sm:$0xff]
  %v6526 = vld [vmem:[%s6 + $0xa50] sm:$0xff]
  %v6527 = vld [vmem:[%s6 + $0xa58] sm:$0xff]
  %v6528 = vld [vmem:[%s6 + $0xa60] sm:$0xff]
  %v6529 = vld [vmem:[%s6 + $0xa68] sm:$0xff]
  %v6530 = vld [vmem:[%s6 + $0xa70] sm:$0xff]
  %v6531 = vld [vmem:[%s6 + $0xa78] sm:$0xff]
  %v6533 = vsel %vm5229, %v5212, 0
  %6535 = vmatpush.msra.mxu0 0.0
  %6536 = vmatpush.msra.mxu0 0.0
  %6537 = vmatpush.msra.mxu0 0.0
  %6538 = vmatpush.msra.mxu0 0.0
  %6539 = vmatpush.msra.mxu0 0.0
  %6540 = vmatpush.msra.mxu0 0.0
  %6541 = vmatpush.msra.mxu0 0.0
  %6542 = vmatpush.msra.mxu0 0.0
  %6543 = vmatpush.msra.mxu0 %v6531
  %6544 = vmatpush.msra.mxu0 %v6530
  %6545 = vmatpush.msra.mxu0 %v6529
  %6546 = vmatpush.msra.mxu0 %v6528
  %6547 = vmatpush.msra.mxu0 %v6527
  %6548 = vmatpush.msra.mxu0 %v6526
  %6549 = vmatpush.msra.mxu0 %v6525
  %6550 = vmatpush.msra.mxu0 %v6524
  %6551 = vmatmul.f32.gmra.mxu0 %v6533
  %v6552 = vpop.f32.mrf.mxu0
  %v6553 = vadd.f32 0.0, %v6552
  %6554 = vdwg.mxu0
  %v6555 = vadd.f32 %v6523, %v6553
  %v6556 = vld [vmem:[%s7] sm:$0x1]
  %v6558 = vperm.slane %v6556, 0
  %v6560 = vadd.f32 %v6555, %v6558
  %v6561 = vmax.f32 %v6560, 0.0
  %v6562 = vld [vmem:[%s8] sm:$0xff]
  %v6563 = vld [vmem:[%s8 + $0x8] sm:$0xff]
  %v6564 = vld [vmem:[%s8 + $0x10] sm:$0xff]
  %v6565 = vld [vmem:[%s8 + $0x18] sm:$0xff]
  %v6566 = vld [vmem:[%s8 + $0x20] sm:$0xff]
  %v6567 = vld [vmem:[%s8 + $0x28] sm:$0xff]
  %v6568 = vld [vmem:[%s8 + $0x30] sm:$0xff]
  %v6569 = vld [vmem:[%s8 + $0x38] sm:$0xff]
  %v6570 = vld [vmem:[%s8 + $0x40] sm:$0xff]
  %v6571 = vld [vmem:[%s8 + $0x48] sm:$0xff]
  %v6572 = vld [vmem:[%s8 + $0x50] sm:$0xff]
  %v6573 = vld [vmem:[%s8 + $0x58] sm:$0xff]
  %v6574 = vld [vmem:[%s8 + $0x60] sm:$0xff]
  %v6575 = vld [vmem:[%s8 + $0x68] sm:$0xff]
  %v6576 = vld [vmem:[%s8 + $0x70] sm:$0xff]
  %v6577 = vld [vmem:[%s8 + $0x78] sm:$0xff]
  %v6578 = vld [vmem:[%s9] sm:$0x1]
  %v6580 = vperm.slane %v6578, 0
  %6582 = vmatpush.msra.mxu0 %v6577
  %6583 = vmatpush.msra.mxu0 %v6576
  %6584 = vmatpush.msra.mxu0 %v6575
  %6585 = vmatpush.msra.mxu0 %v6574
  %6586 = vmatpush.msra.mxu0 %v6573
  %6587 = vmatpush.msra.mxu0 %v6572
  %6588 = vmatpush.msra.mxu0 %v6571
  %6589 = vmatpush.msra.mxu0 %v6570
  %6590 = vmatpush.msra.mxu0 %v6569
  %6591 = vmatpush.msra.mxu0 %v6568
  %6592 = vmatpush.msra.mxu0 %v6567
  %6593 = vmatpush.msra.mxu0 %v6566
  %6594 = vmatpush.msra.mxu0 %v6565
  %6595 = vmatpush.msra.mxu0 %v6564
  %6596 = vmatpush.msra.mxu0 %v6563
  %6597 = vmatpush.msra.mxu0 %v6562
  %6598 = vmatmul.f32.gmra.mxu0 %v6561
  %v6599 = vpop.f32.mrf.mxu0
  %v6600 = vadd.f32 %v6580, %v6599
  %6601 = vdwg.mxu0
  %v6602 = vlaneseq
  %v6603 = vand.u32 %v6602, 127
  %vm6604 = vcmp.eq.s32.totalorder %v6603, 7
  %v6605 = vtanh.pop %v6600
  %v6606 = vsel %vm6604, %v6605, %v6600
  %6607 = vst [vmem:[%s10] sm:$0xff] %v6606
  // Predicated region
  $region42: #{connect4_forward.1} parent=0 // pred_check
    _
  $region43: #{connect4_forward.1} parent=0 // pred_check_branch
    %6609 = sbr.rel (0) target = $region45
  $region44: #{connect4_forward.1} parent=0 // pred_region
    _
  $region45: #{connect4_forward.1} parent=0 // pred_fallthru
    _
  // Predicated region
  $region46: #{connect4_forward.1} parent=0 // pred_check
    _
  $region47: #{connect4_forward.1} parent=0 // pred_check_branch
    %6611 = sbr.rel (0) target = $region49
  $region48: #{connect4_forward.1} parent=0 // pred_region
    _
  $region49: #{connect4_forward.1} parent=0 // pred_fallthru
    _

</llo_original>
